<compile_context>
chip_gen: v7x
topology: tpu7x:2x2x1
jax: 0.10.0
libtpu: 0.0.40
codegen_flags: <defaults>
</compile_context>

<pallas_src>
import jax
import jax.numpy as jnp
from jax import lax
from jax.experimental import pallas as pl
from jax.experimental.pallas import tpu as pltpu

EMB = 100   # embedding dim
HID = 100   # LSTM hidden dim
FC1 = 50    # fc1 out dim
OUT = 2     # fc2 out dim

# lane-padded sizes
HIDP = 128
G4 = 4 * HIDP      # 512
FC1P = 128
OUTP = 128


def _sigmoid1(x):
    # single-EUP-op sigmoid: 0.5 * tanh(0.5 x) + 0.5
    return 0.5 * jnp.tanh(0.5 * x) + 0.5


def lstm_mlp_kernel(ids_ref, tbl_ref, w_hh_ref, w1_ref, b1_ref, w2_ref, b2_ref,
                    out_ref, gx_ref, hs_ref):
    # ids_ref : (T, TB)          int32 token ids, time-major (one batch tile)
    # tbl_ref : (VP, 4*HIDP)     fused per-token gate table E@W_ih^T + (b_ih+b_hh),
    #                            gate order (i, f, g, o), zero-padded
    # w_hh_ref: (HIDP, 4*HIDP)   fused hidden->gate weights (zero-padded)
    # w1_ref  : (T, HIDP, FC1P)  fc1 per-timestep weight slabs
    # b1_ref  : (1, FC1P), w2_ref: (FC1P, OUTP), b2_ref: (1, OUTP)
    # out_ref : (TB, OUTP)
    # gx_ref  : (T, TB, 4*HIDP)  scratch: x-side gate pre-activations (bias folded in)
    # hs_ref  : (T, TB, HIDP)    scratch: relu(h_t), stored in the MXU operand dtype
    T, TB = ids_ref.shape
    VP = tbl_ref.shape[0]
    half = TB // 2
    mm_dtype = w_hh_ref.dtype
    gate_dtype = gx_ref.dtype

    # (1) In-kernel embedding gather fused with the x-side gate matmul:
    #     one-hot(ids) @ (E @ W_ih^T + b)  ->  per-token gate pre-activations.
    ids = ids_ref[...]
    onehot = (ids[:, :, None] ==
              lax.broadcasted_iota(jnp.int32, (T, TB, VP), 2)).astype(tbl_ref.dtype)
    gx = jnp.dot(onehot.reshape(T * TB, VP), tbl_ref[...],
                 preferred_element_type=jnp.float32)
    gx_ref[...] = gx.reshape(T, TB, G4).astype(gate_dtype)

    w_hh = w_hh_ref[...]

    def cell(z, c):
        z = z.astype(gate_dtype)
        i = _sigmoid1(z[:, 0 * HIDP:1 * HIDP])
        f = _sigmoid1(z[:, 1 * HIDP:2 * HIDP])
        g = jnp.tanh(z[:, 2 * HIDP:3 * HIDP])
        o = _sigmoid1(z[:, 3 * HIDP:4 * HIDP])
        c_new = f * c + i * g                                  # c accumulates in f32
        h_new = o.astype(jnp.float32) * jnp.tanh(c_new)
        return h_new, c_new

    # (2) Recurrence with TWO independent batch sub-tiles per step, so tile-B's
    #     h @ W_hh matmul can overlap tile-A's sigmoid/tanh + c/h update chain.
    def step(t, carry):
        ha, ca, hb, cb = carry
        gx_t = gx_ref[t]                                       # (TB, 4H)
        za = gx_t[:half].astype(jnp.float32) + jnp.dot(
            ha.astype(mm_dtype), w_hh, preferred_element_type=jnp.float32)
        zb = gx_t[half:].astype(jnp.float32) + jnp.dot(
            hb.astype(mm_dtype), w_hh, preferred_element_type=jnp.float32)
        ha, ca = cell(za, ca)
        hb, cb = cell(zb, cb)
        # torch.relu(lstm output); store off the critical path in matmul dtype.
        hs_ref[t] = jnp.concatenate(
            [jnp.maximum(ha, 0.0), jnp.maximum(hb, 0.0)], axis=0).astype(hs_ref.dtype)
        return ha, ca, hb, cb

    h0 = jnp.zeros((half, HIDP), jnp.float32)
    c0 = jnp.zeros((half, HIDP), jnp.float32)
    _ = lax.fori_loop(0, T, step, (h0, c0, h0, c0), unroll=True)

    # (3) fc1 over the flattened (B, T*H) activations, after the recurrence.
    def fc1_step(t, acc):
        return acc + jnp.dot(hs_ref[t], w1_ref[t], preferred_element_type=jnp.float32)

    acc = lax.fori_loop(0, T, fc1_step,
                        jnp.zeros((TB, FC1P), jnp.float32), unroll=True)

    z1 = jnp.maximum(acc + b1_ref[...], 0.0)                   # relu(fc1)
    out_ref[...] = (jnp.dot(z1.astype(mm_dtype), w2_ref[...],
                            preferred_element_type=jnp.float32)
                    + b2_ref[...])                              # fc2


def lstm_model_forward(token_ids, params, *,
                       matmul_dtype=jnp.float32, gate_dtype=jnp.float32):
    # matmul_dtype: MXU operand dtype (bf16 recommended on v5e/v6e/v7x).
    # gate_dtype  : elementwise gate/activation dtype (bf16 only on v6e/v7x; the
    #               cell state c always accumulates in f32).
    B, T = token_ids.shape
    vocab = params['embedding'].shape[0]
    VP = ((vocab + 127) // 128) * 128          # lane-padded vocab for the one-hot K dim

    # Batch padded to a multiple of 16 so each in-kernel half-tile has >= 8 rows.
    BP = max(16, ((B + 15) // 16) * 16)
    TB = min(BP, 128)                          # batch tile per grid step
    BP = ((BP + TB - 1) // TB) * TB

    ids_p = jnp.zeros((T, BP), jnp.int32).at[:, :B].set(token_ids.T.astype(jnp.int32))

    # Fused per-token gate table: row v = E[v] @ W_ih^T + (b_ih + b_hh).
    # PyTorch nn.LSTM gate order along the 4*H axis is (i, f, g, o).
    gtab = (params['embedding'] @ params['w_ih'].T
            + params['b_ih'] + params['b_hh']).reshape(vocab, 4, HID)
    gtab_p = (jnp.zeros((VP, 4, HIDP), jnp.float32)
              .at[:vocab, :, :HID].set(gtab)
              .reshape(VP, G4).astype(matmul_dtype))

    # Fused hidden->gate weights in x @ W form, zero-padded to (HIDP, 4*HIDP).
    whh = jnp.transpose(params['w_hh'].reshape(4, HID, HID), (0, 2, 1))   # (4, in, out)
    whh_p = jnp.zeros((4, HIDP, HIDP), jnp.float32).at[:, :HID, :HID].set(whh)
    whh_p = jnp.transpose(whh_p, (1, 0, 2)).reshape(HIDP, G4).astype(matmul_dtype)

    # fc1 weight (FC1, T*HID) -> per-timestep (T, HIDP, FC1P) slabs so the
    # (B, T, H) -> (B, T*H) flatten order is reproduced exactly.
    w1 = jnp.transpose(params['w1'].reshape(FC1, T, HID), (1, 2, 0))      # (T, HID, FC1)
    w1_p = (jnp.zeros((T, HIDP, FC1P), jnp.float32)
            .at[:, :HID, :FC1].set(w1).astype(matmul_dtype))
    b1_p = jnp.zeros((1, FC1P), jnp.float32).at[0, :FC1].set(params['b1'])
    w2_p = (jnp.zeros((FC1P, OUTP), jnp.float32)
            .at[:FC1, :OUT].set(params['w2'].T).astype(matmul_dtype))
    b2_p = jnp.zeros((1, OUTP), jnp.float32).at[0, :OUT].set(params['b2'])

    def full_spec(*shape):
        return pl.BlockSpec(shape, lambda i, _n=len(shape): (0,) * _n)

    out_p = pl.pallas_call(
        lstm_mlp_kernel,
        out_shape=jax.ShapeDtypeStruct((BP, OUTP), jnp.float32),
        grid=(BP // TB,),
        in_specs=[
            pl.BlockSpec((T, TB), lambda i: (0, i)),   # batch-tiled token ids (only stream)
            full_spec(VP, G4),                         # fused gate table (VMEM resident)
            full_spec(HIDP, G4),
            full_spec(T, HIDP, FC1P),
            full_spec(1, FC1P),
            full_spec(FC1P, OUTP),
            full_spec(1, OUTP),
        ],
        out_specs=pl.BlockSpec((TB, OUTP), lambda i: (i, 0)),
        scratch_shapes=[
            pltpu.VMEM((T, TB, G4), gate_dtype),       # x-side gate pre-activations
            pltpu.VMEM((T, TB, HIDP), matmul_dtype),   # relu(h_t)
        ],
        compiler_params=pltpu.CompilerParams(
            dimension_semantics=("parallel",)),        # batch tiles across cores
    )(ids_p, gtab_p, whh_p, w1_p, b1_p, w2_p, b2_p)

    return out_p[:B, :OUT]


def reference_forward(token_ids, params):
    # Pure-JAX reference with identical semantics to the PyTorch module.
    emb = params['embedding'][token_ids]
    B, T, _ = emb.shape
    b = params['b_ih'] + params['b_hh']
    h = jnp.zeros((B, HID), jnp.float32)
    c = jnp.zeros((B, HID), jnp.float32)
    outs = []
    for t in range(T):
        gates = emb[:, t, :] @ params['w_ih'].T + h @ params['w_hh'].T + b
        i = jax.nn.sigmoid(gates[:, :HID])
        f = jax.nn.sigmoid(gates[:, HID:2 * HID])
        g = jnp.tanh(gates[:, 2 * HID:3 * HID])
        o = jax.nn.sigmoid(gates[:, 3 * HID:])
        c = f * c + i * g
        h = o * jnp.tanh(c)
        outs.append(h)
    x = jnp.stack(outs, axis=1)                     # (B, T, HID)
    x = jax.nn.relu(x).reshape(B, -1)
    x = jax.nn.relu(x @ params['w1'].T + params['b1'])
    return x @ params['w2'].T + params['b2']


def init_params(key, vocab_size, max_len):
    ks = jax.random.split(key, 9)
    s = 0.1
    return {
        'embedding': s * jax.random.normal(ks[0], (vocab_size, EMB), jnp.float32),
        'w_ih': s * jax.random.normal(ks[1], (4 * HID, EMB), jnp.float32),
        'w_hh': s * jax.random.normal(ks[2], (4 * HID, HID), jnp.float32),
        'b_ih': s * jax.random.normal(ks[3], (4 * HID,), jnp.float32),
        'b_hh': s * jax.random.normal(ks[4], (4 * HID,), jnp.float32),
        'w1': s * jax.random.normal(ks[5], (FC1, HID * max_len), jnp.float32),
        'b1': s * jax.random.normal(ks[6], (FC1,), jnp.float32),
        'w2': s * jax.random.normal(ks[7], (OUT, FC1), jnp.float32),
        'b2': s * jax.random.normal(ks[8], (OUT,), jnp.float32),
    }


if __name__ == "__main__":
    vocab_size = 30
    max_len = 8
    batch = 2

    key = jax.random.PRNGKey(0)
    k_tok, k_par = jax.random.split(key)
    params = init_params(k_par, vocab_size, max_len)
    token_ids = jax.random.randint(k_tok, (batch, max_len), 0, vocab_size, jnp.int32)

    ref = reference_forward(token_ids, params)

    # f32 everywhere: strict check against the reference.
    out = jax.block_until_ready(lstm_model_forward(token_ids, params))
    assert out.shape == (batch, OUT)
    assert jnp.allclose(out, ref, atol=1e-4, rtol=1e-4), (out, ref)

    # v5e setting: bf16 MXU operands, f32 gate math (no bf16 VPU/EUP on v5e).
    out_v5e = jax.block_until_ready(
        lstm_model_forward(token_ids, params,
                           matmul_dtype=jnp.bfloat16, gate_dtype=jnp.float32))
    assert jnp.allclose(out_v5e, ref, atol=5e-2, rtol=5e-2), (out_v5e, ref)

    # v6e/v7x setting: bf16 MXU operands AND bf16 gate elementwise (c stays f32).
    out_v6e = jax.block_until_ready(
        lstm_model_forward(token_ids, params,
                           matmul_dtype=jnp.bfloat16, gate_dtype=jnp.bfloat16))
    assert jnp.allclose(out_v6e, ref, atol=5e-2, rtol=5e-2), (out_v6e, ref)

    print("KERNEL_OK")
</pallas_src>

<mosaic_0001>
module attributes {stable_mosaic.version = 11 : i64} {
  func.func @lstm_mlp_kernel(%arg0: i32, %arg1: memref<8x16xi32, #tpu.memory_space<vmem>>, %arg2: memref<128x512xf32, #tpu.memory_space<vmem>>, %arg3: memref<128x512xf32, #tpu.memory_space<vmem>>, %arg4: memref<8x128x128xf32, #tpu.memory_space<vmem>>, %arg5: memref<1x128xf32, #tpu.memory_space<vmem>>, %arg6: memref<128x128xf32, #tpu.memory_space<vmem>>, %arg7: memref<1x128xf32, #tpu.memory_space<vmem>>, %arg8: memref<16x128xf32, #tpu.memory_space<vmem>>, %arg9: memref<8x16x512xf32, #tpu.memory_space<vmem>>, %arg10: memref<8x16x128xf32, #tpu.memory_space<vmem>>) attributes {dimension_semantics = [#tpu.dimension_semantics<parallel>], iteration_bounds = array<i64: 1>, scalar_prefetch = 0 : i64, scratch_operands = 2 : i64, tpu.core_type = #tpu.core_type<tc>, window_params = [{transform_indices = @transform_0, window_bounds = array<i64: 8, 16>}, {pipeline_mode = #tpu.pipeline_mode<synchronous>, transform_indices = @transform_1, window_bounds = array<i64: 128, 512>}, {pipeline_mode = #tpu.pipeline_mode<synchronous>, transform_indices = @transform_2, window_bounds = array<i64: 128, 512>}, {pipeline_mode = #tpu.pipeline_mode<synchronous>, transform_indices = @transform_3, window_bounds = array<i64: 8, 128, 128>}, {pipeline_mode = #tpu.pipeline_mode<synchronous>, transform_indices = @transform_4, window_bounds = array<i64: 1, 128>}, {pipeline_mode = #tpu.pipeline_mode<synchronous>, transform_indices = @transform_5, window_bounds = array<i64: 128, 128>}, {pipeline_mode = #tpu.pipeline_mode<synchronous>, transform_indices = @transform_6, window_bounds = array<i64: 1, 128>}, {transform_indices = @transform_7, window_bounds = array<i64: 16, 128>}]} {
    %c0 = arith.constant 0 : index
    %c0_0 = arith.constant 0 : index
    %0 = vector.load %arg1[%c0, %c0_0] : memref<8x16xi32, #tpu.memory_space<vmem>>, vector<8x16xi32>
    %1 = vector.shape_cast %0 : vector<8x16xi32> to vector<8x16x1xi32>
    %2 = tpu.iota {dimensions = array<i32: 2>} : vector<8x16x128xi32>
    %3 = vector.broadcast %1 : vector<8x16x1xi32> to vector<8x16x128xi32>
    %4 = arith.cmpi eq, %3, %2 : vector<8x16x128xi32>
    %5 = arith.extui %4 : vector<8x16x128xi1> to vector<8x16x128xi32>
    %6 = arith.sitofp %5 : vector<8x16x128xi32> to vector<8x16x128xf32>
    %7 = vector.shape_cast %6 : vector<8x16x128xf32> to vector<128x128xf32>
    %c0_1 = arith.constant 0 : index
    %c0_2 = arith.constant 0 : index
    %8 = vector.load %arg2[%c0_1, %c0_2] : memref<128x512xf32, #tpu.memory_space<vmem>>, vector<128x512xf32>
    %cst = arith.constant dense<0.000000e+00> : vector<128x512xf32>
    %9 = tpu.matmul %7, %8, %cst {dimension_numbers = #tpu.dot_dimension_numbers<[1], [0], [0], [1], [0, 0, 1, 1], [], []>} : vector<128x128xf32>, vector<128x512xf32>, vector<128x512xf32> -> vector<128x512xf32>
    %10 = vector.shape_cast %9 : vector<128x512xf32> to vector<8x16x512xf32>
    %c0_3 = arith.constant 0 : index
    %c0_4 = arith.constant 0 : index
    %c0_5 = arith.constant 0 : index
    %11 = vector.load %arg9[%c0_3, %c0_4, %c0_5] : memref<8x16x512xf32, #tpu.memory_space<vmem>>, vector<8x16x512xf32>
    tpu.vector_store %arg9[%c0_3, %c0_4, %c0_5], %10 {strides = array<i32>} : memref<8x16x512xf32, #tpu.memory_space<vmem>>, vector<8x16x512xf32>,
    %c0_6 = arith.constant 0 : index
    %c0_7 = arith.constant 0 : index
    %12 = vector.load %arg3[%c0_6, %c0_7] : memref<128x512xf32, #tpu.memory_space<vmem>>, vector<128x512xf32>
    %cst_8 = arith.constant 0.000000e+00 : f32
    %13 = vector.broadcast %cst_8 : f32 to vector<8x128xf32>
    %cst_9 = arith.constant 0.000000e+00 : f32
    %14 = vector.broadcast %cst_9 : f32 to vector<8x128xf32>
    %c0_i32 = arith.constant 0 : i32
    %15 = arith.index_cast %c0_i32 : i32 to index
    %c0_10 = arith.constant 0 : index
    %c0_11 = arith.constant 0 : index
    %16 = vector.load %arg9[%15, %c0_10, %c0_11] : memref<8x16x512xf32, #tpu.memory_space<vmem>>, vector<1x16x512xf32>
    %17 = vector.shape_cast %16 : vector<1x16x512xf32> to vector<16x512xf32>
    %18 = vector.extract_strided_slice %17 {offsets = [0, 0], sizes = [8, 512], strides = [1, 1]} : vector<16x512xf32> to vector<8x512xf32>
    %cst_12 = arith.constant dense<0.000000e+00> : vector<8x512xf32>
    %19 = tpu.matmul %13, %12, %cst_12 {dimension_numbers = #tpu.dot_dimension_numbers<[1], [0], [0], [1], [0, 0, 1, 1], [], []>} : vector<8x128xf32>, vector<128x512xf32>, vector<8x512xf32> -> vector<8x512xf32>
    %20 = arith.addf %18, %19 : vector<8x512xf32>
    %21 = vector.extract_strided_slice %17 {offsets = [8, 0], sizes = [8, 512], strides = [1, 1]} : vector<16x512xf32> to vector<8x512xf32>
    %cst_13 = arith.constant dense<0.000000e+00> : vector<8x512xf32>
    %22 = tpu.matmul %13, %12, %cst_13 {dimension_numbers = #tpu.dot_dimension_numbers<[1], [0], [0], [1], [0, 0, 1, 1], [], []>} : vector<8x128xf32>, vector<128x512xf32>, vector<8x512xf32> -> vector<8x512xf32>
    %23 = arith.addf %21, %22 : vector<8x512xf32>
    %24 = vector.extract_strided_slice %20 {offsets = [0, 0], sizes = [8, 128], strides = [1, 1]} : vector<8x512xf32> to vector<8x128xf32>
    %cst_14 = arith.constant 5.000000e-01 : f32
    %25 = vector.broadcast %cst_14 : f32 to vector<8x128xf32>
    %26 = arith.mulf %25, %24 : vector<8x128xf32>
    %27 = math.tanh %26 : vector<8x128xf32>
    %cst_15 = arith.constant 5.000000e-01 : f32
    %28 = vector.broadcast %cst_15 : f32 to vector<8x128xf32>
    %29 = arith.mulf %28, %27 : vector<8x128xf32>
    %cst_16 = arith.constant 5.000000e-01 : f32
    %30 = vector.broadcast %cst_16 : f32 to vector<8x128xf32>
    %31 = arith.addf %29, %30 : vector<8x128xf32>
    %32 = vector.extract_strided_slice %20 {offsets = [0, 128], sizes = [8, 128], strides = [1, 1]} : vector<8x512xf32> to vector<8x128xf32>
    %cst_17 = arith.constant 5.000000e-01 : f32
    %33 = vector.broadcast %cst_17 : f32 to vector<8x128xf32>
    %34 = arith.mulf %33, %32 : vector<8x128xf32>
    %35 = math.tanh %34 : vector<8x128xf32>
    %cst_18 = arith.constant 5.000000e-01 : f32
    %36 = vector.broadcast %cst_18 : f32 to vector<8x128xf32>
    %37 = arith.mulf %36, %35 : vector<8x128xf32>
    %cst_19 = arith.constant 5.000000e-01 : f32
    %38 = vector.broadcast %cst_19 : f32 to vector<8x128xf32>
    %39 = arith.addf %37, %38 : vector<8x128xf32>
    %40 = vector.extract_strided_slice %20 {offsets = [0, 256], sizes = [8, 128], strides = [1, 1]} : vector<8x512xf32> to vector<8x128xf32>
    %41 = math.tanh %40 : vector<8x128xf32>
    %42 = vector.extract_strided_slice %20 {offsets = [0, 384], sizes = [8, 128], strides = [1, 1]} : vector<8x512xf32> to vector<8x128xf32>
    %cst_20 = arith.constant 5.000000e-01 : f32
    %43 = vector.broadcast %cst_20 : f32 to vector<8x128xf32>
    %44 = arith.mulf %43, %42 : vector<8x128xf32>
    %45 = math.tanh %44 : vector<8x128xf32>
    %cst_21 = arith.constant 5.000000e-01 : f32
    %46 = vector.broadcast %cst_21 : f32 to vector<8x128xf32>
    %47 = arith.mulf %46, %45 : vector<8x128xf32>
    %cst_22 = arith.constant 5.000000e-01 : f32
    %48 = vector.broadcast %cst_22 : f32 to vector<8x128xf32>
    %49 = arith.addf %47, %48 : vector<8x128xf32>
    %50 = arith.mulf %39, %14 : vector<8x128xf32>
    %51 = arith.mulf %31, %41 : vector<8x128xf32>
    %52 = arith.addf %50, %51 : vector<8x128xf32>
    %53 = math.tanh %52 : vector<8x128xf32>
    %54 = arith.mulf %49, %53 : vector<8x128xf32>
    %55 = vector.extract_strided_slice %23 {offsets = [0, 0], sizes = [8, 128], strides = [1, 1]} : vector<8x512xf32> to vector<8x128xf32>
    %cst_23 = arith.constant 5.000000e-01 : f32
    %56 = vector.broadcast %cst_23 : f32 to vector<8x128xf32>
    %57 = arith.mulf %56, %55 : vector<8x128xf32>
    %58 = math.tanh %57 : vector<8x128xf32>
    %cst_24 = arith.constant 5.000000e-01 : f32
    %59 = vector.broadcast %cst_24 : f32 to vector<8x128xf32>
    %60 = arith.mulf %59, %58 : vector<8x128xf32>
    %cst_25 = arith.constant 5.000000e-01 : f32
    %61 = vector.broadcast %cst_25 : f32 to vector<8x128xf32>
    %62 = arith.addf %60, %61 : vector<8x128xf32>
    %63 = vector.extract_strided_slice %23 {offsets = [0, 128], sizes = [8, 128], strides = [1, 1]} : vector<8x512xf32> to vector<8x128xf32>
    %cst_26 = arith.constant 5.000000e-01 : f32
    %64 = vector.broadcast %cst_26 : f32 to vector<8x128xf32>
    %65 = arith.mulf %64, %63 : vector<8x128xf32>
    %66 = math.tanh %65 : vector<8x128xf32>
    %cst_27 = arith.constant 5.000000e-01 : f32
    %67 = vector.broadcast %cst_27 : f32 to vector<8x128xf32>
    %68 = arith.mulf %67, %66 : vector<8x128xf32>
    %cst_28 = arith.constant 5.000000e-01 : f32
    %69 = vector.broadcast %cst_28 : f32 to vector<8x128xf32>
    %70 = arith.addf %68, %69 : vector<8x128xf32>
    %71 = vector.extract_strided_slice %23 {offsets = [0, 256], sizes = [8, 128], strides = [1, 1]} : vector<8x512xf32> to vector<8x128xf32>
    %72 = math.tanh %71 : vector<8x128xf32>
    %73 = vector.extract_strided_slice %23 {offsets = [0, 384], sizes = [8, 128], strides = [1, 1]} : vector<8x512xf32> to vector<8x128xf32>
    %cst_29 = arith.constant 5.000000e-01 : f32
    %74 = vector.broadcast %cst_29 : f32 to vector<8x128xf32>
    %75 = arith.mulf %74, %73 : vector<8x128xf32>
    %76 = math.tanh %75 : vector<8x128xf32>
    %cst_30 = arith.constant 5.000000e-01 : f32
    %77 = vector.broadcast %cst_30 : f32 to vector<8x128xf32>
    %78 = arith.mulf %77, %76 : vector<8x128xf32>
    %cst_31 = arith.constant 5.000000e-01 : f32
    %79 = vector.broadcast %cst_31 : f32 to vector<8x128xf32>
    %80 = arith.addf %78, %79 : vector<8x128xf32>
    %81 = arith.mulf %70, %14 : vector<8x128xf32>
    %82 = arith.mulf %62, %72 : vector<8x128xf32>
    %83 = arith.addf %81, %82 : vector<8x128xf32>
    %84 = math.tanh %83 : vector<8x128xf32>
    %85 = arith.mulf %80, %84 : vector<8x128xf32>
    %cst_32 = arith.constant 0.000000e+00 : f32
    %86 = vector.broadcast %cst_32 : f32 to vector<8x128xf32>
    %87 = arith.maximumf %54, %86 : vector<8x128xf32>
    %cst_33 = arith.constant 0.000000e+00 : f32
    %88 = vector.broadcast %cst_33 : f32 to vector<8x128xf32>
    %89 = arith.maximumf %85, %88 : vector<8x128xf32>
    %90 = tpu.concatenate %87, %89 in 0 : vector<8x128xf32>, vector<8x128xf32> -> vector<16x128xf32>
    %91 = arith.index_cast %c0_i32 : i32 to index
    %c0_34 = arith.constant 0 : index
    %c0_35 = arith.constant 0 : index
    %92 = vector.load %arg10[%91, %c0_34, %c0_35] : memref<8x16x128xf32, #tpu.memory_space<vmem>>, vector<1x16x128xf32>
    %93 = vector.shape_cast %92 : vector<1x16x128xf32> to vector<16x128xf32>
    %94 = vector.shape_cast %90 : vector<16x128xf32> to vector<1x16x128xf32>
    tpu.vector_store %arg10[%91, %c0_34, %c0_35], %94 {strides = array<i32>} : memref<8x16x128xf32, #tpu.memory_space<vmem>>, vector<1x16x128xf32>,
    %c1_i32 = arith.constant 1 : i32
    %95 = arith.index_cast %c1_i32 : i32 to index
    %c0_36 = arith.constant 0 : index
    %c0_37 = arith.constant 0 : index
    %96 = vector.load %arg9[%95, %c0_36, %c0_37] : memref<8x16x512xf32, #tpu.memory_space<vmem>>, vector<1x16x512xf32>
    %97 = vector.shape_cast %96 : vector<1x16x512xf32> to vector<16x512xf32>
    %98 = vector.extract_strided_slice %97 {offsets = [0, 0], sizes = [8, 512], strides = [1, 1]} : vector<16x512xf32> to vector<8x512xf32>
    %cst_38 = arith.constant dense<0.000000e+00> : vector<8x512xf32>
    %99 = tpu.matmul %54, %12, %cst_38 {dimension_numbers = #tpu.dot_dimension_numbers<[1], [0], [0], [1], [0, 0, 1, 1], [], []>} : vector<8x128xf32>, vector<128x512xf32>, vector<8x512xf32> -> vector<8x512xf32>
    %100 = arith.addf %98, %99 : vector<8x512xf32>
    %101 = vector.extract_strided_slice %97 {offsets = [8, 0], sizes = [8, 512], strides = [1, 1]} : vector<16x512xf32> to vector<8x512xf32>
    %cst_39 = arith.constant dense<0.000000e+00> : vector<8x512xf32>
    %102 = tpu.matmul %85, %12, %cst_39 {dimension_numbers = #tpu.dot_dimension_numbers<[1], [0], [0], [1], [0, 0, 1, 1], [], []>} : vector<8x128xf32>, vector<128x512xf32>, vector<8x512xf32> -> vector<8x512xf32>
    %103 = arith.addf %101, %102 : vector<8x512xf32>
    %104 = vector.extract_strided_slice %100 {offsets = [0, 0], sizes = [8, 128], strides = [1, 1]} : vector<8x512xf32> to vector<8x128xf32>
    %cst_40 = arith.constant 5.000000e-01 : f32
    %105 = vector.broadcast %cst_40 : f32 to vector<8x128xf32>
    %106 = arith.mulf %105, %104 : vector<8x128xf32>
    %107 = math.tanh %106 : vector<8x128xf32>
    %cst_41 = arith.constant 5.000000e-01 : f32
    %108 = vector.broadcast %cst_41 : f32 to vector<8x128xf32>
    %109 = arith.mulf %108, %107 : vector<8x128xf32>
    %cst_42 = arith.constant 5.000000e-01 : f32
    %110 = vector.broadcast %cst_42 : f32 to vector<8x128xf32>
    %111 = arith.addf %109, %110 : vector<8x128xf32>
    %112 = vector.extract_strided_slice %100 {offsets = [0, 128], sizes = [8, 128], strides = [1, 1]} : vector<8x512xf32> to vector<8x128xf32>
    %cst_43 = arith.constant 5.000000e-01 : f32
    %113 = vector.broadcast %cst_43 : f32 to vector<8x128xf32>
    %114 = arith.mulf %113, %112 : vector<8x128xf32>
    %115 = math.tanh %114 : vector<8x128xf32>
    %cst_44 = arith.constant 5.000000e-01 : f32
    %116 = vector.broadcast %cst_44 : f32 to vector<8x128xf32>
    %117 = arith.mulf %116, %115 : vector<8x128xf32>
    %cst_45 = arith.constant 5.000000e-01 : f32
    %118 = vector.broadcast %cst_45 : f32 to vector<8x128xf32>
    %119 = arith.addf %117, %118 : vector<8x128xf32>
    %120 = vector.extract_strided_slice %100 {offsets = [0, 256], sizes = [8, 128], strides = [1, 1]} : vector<8x512xf32> to vector<8x128xf32>
    %121 = math.tanh %120 : vector<8x128xf32>
    %122 = vector.extract_strided_slice %100 {offsets = [0, 384], sizes = [8, 128], strides = [1, 1]} : vector<8x512xf32> to vector<8x128xf32>
    %cst_46 = arith.constant 5.000000e-01 : f32
    %123 = vector.broadcast %cst_46 : f32 to vector<8x128xf32>
    %124 = arith.mulf %123, %122 : vector<8x128xf32>
    %125 = math.tanh %124 : vector<8x128xf32>
    %cst_47 = arith.constant 5.000000e-01 : f32
    %126 = vector.broadcast %cst_47 : f32 to vector<8x128xf32>
    %127 = arith.mulf %126, %125 : vector<8x128xf32>
    %cst_48 = arith.constant 5.000000e-01 : f32
    %128 = vector.broadcast %cst_48 : f32 to vector<8x128xf32>
    %129 = arith.addf %127, %128 : vector<8x128xf32>
    %130 = arith.mulf %119, %52 : vector<8x128xf32>
    %131 = arith.mulf %111, %121 : vector<8x128xf32>
    %132 = arith.addf %130, %131 : vector<8x128xf32>
    %133 = math.tanh %132 : vector<8x128xf32>
    %134 = arith.mulf %129, %133 : vector<8x128xf32>
    %135 = vector.extract_strided_slice %103 {offsets = [0, 0], sizes = [8, 128], strides = [1, 1]} : vector<8x512xf32> to vector<8x128xf32>
    %cst_49 = arith.constant 5.000000e-01 : f32
    %136 = vector.broadcast %cst_49 : f32 to vector<8x128xf32>
    %137 = arith.mulf %136, %135 : vector<8x128xf32>
    %138 = math.tanh %137 : vector<8x128xf32>
    %cst_50 = arith.constant 5.000000e-01 : f32
    %139 = vector.broadcast %cst_50 : f32 to vector<8x128xf32>
    %140 = arith.mulf %139, %138 : vector<8x128xf32>
    %cst_51 = arith.constant 5.000000e-01 : f32
    %141 = vector.broadcast %cst_51 : f32 to vector<8x128xf32>
    %142 = arith.addf %140, %141 : vector<8x128xf32>
    %143 = vector.extract_strided_slice %103 {offsets = [0, 128], sizes = [8, 128], strides = [1, 1]} : vector<8x512xf32> to vector<8x128xf32>
    %cst_52 = arith.constant 5.000000e-01 : f32
    %144 = vector.broadcast %cst_52 : f32 to vector<8x128xf32>
    %145 = arith.mulf %144, %143 : vector<8x128xf32>
    %146 = math.tanh %145 : vector<8x128xf32>
    %cst_53 = arith.constant 5.000000e-01 : f32
    %147 = vector.broadcast %cst_53 : f32 to vector<8x128xf32>
    %148 = arith.mulf %147, %146 : vector<8x128xf32>
    %cst_54 = arith.constant 5.000000e-01 : f32
    %149 = vector.broadcast %cst_54 : f32 to vector<8x128xf32>
    %150 = arith.addf %148, %149 : vector<8x128xf32>
    %151 = vector.extract_strided_slice %103 {offsets = [0, 256], sizes = [8, 128], strides = [1, 1]} : vector<8x512xf32> to vector<8x128xf32>
    %152 = math.tanh %151 : vector<8x128xf32>
    %153 = vector.extract_strided_slice %103 {offsets = [0, 384], sizes = [8, 128], strides = [1, 1]} : vector<8x512xf32> to vector<8x128xf32>
    %cst_55 = arith.constant 5.000000e-01 : f32
    %154 = vector.broadcast %cst_55 : f32 to vector<8x128xf32>
    %155 = arith.mulf %154, %153 : vector<8x128xf32>
    %156 = math.tanh %155 : vector<8x128xf32>
    %cst_56 = arith.constant 5.000000e-01 : f32
    %157 = vector.broadcast %cst_56 : f32 to vector<8x128xf32>
    %158 = arith.mulf %157, %156 : vector<8x128xf32>
    %cst_57 = arith.constant 5.000000e-01 : f32
    %159 = vector.broadcast %cst_57 : f32 to vector<8x128xf32>
    %160 = arith.addf %158, %159 : vector<8x128xf32>
    %161 = arith.mulf %150, %83 : vector<8x128xf32>
    %162 = arith.mulf %142, %152 : vector<8x128xf32>
    %163 = arith.addf %161, %162 : vector<8x128xf32>
    %164 = math.tanh %163 : vector<8x128xf32>
    %165 = arith.mulf %160, %164 : vector<8x128xf32>
    %cst_58 = arith.constant 0.000000e+00 : f32
    %166 = vector.broadcast %cst_58 : f32 to vector<8x128xf32>
    %167 = arith.maximumf %134, %166 : vector<8x128xf32>
    %cst_59 = arith.constant 0.000000e+00 : f32
    %168 = vector.broadcast %cst_59 : f32 to vector<8x128xf32>
    %169 = arith.maximumf %165, %168 : vector<8x128xf32>
    %170 = tpu.concatenate %167, %169 in 0 : vector<8x128xf32>, vector<8x128xf32> -> vector<16x128xf32>
    %171 = arith.index_cast %c1_i32 : i32 to index
    %c0_60 = arith.constant 0 : index
    %c0_61 = arith.constant 0 : index
    %172 = vector.load %arg10[%171, %c0_60, %c0_61] : memref<8x16x128xf32, #tpu.memory_space<vmem>>, vector<1x16x128xf32>
    %173 = vector.shape_cast %172 : vector<1x16x128xf32> to vector<16x128xf32>
    %174 = vector.shape_cast %170 : vector<16x128xf32> to vector<1x16x128xf32>
    tpu.vector_store %arg10[%171, %c0_60, %c0_61], %174 {strides = array<i32>} : memref<8x16x128xf32, #tpu.memory_space<vmem>>, vector<1x16x128xf32>,
    %c2_i32 = arith.constant 2 : i32
    %175 = arith.index_cast %c2_i32 : i32 to index
    %c0_62 = arith.constant 0 : index
    %c0_63 = arith.constant 0 : index
    %176 = vector.load %arg9[%175, %c0_62, %c0_63] : memref<8x16x512xf32, #tpu.memory_space<vmem>>, vector<1x16x512xf32>
    %177 = vector.shape_cast %176 : vector<1x16x512xf32> to vector<16x512xf32>
    %178 = vector.extract_strided_slice %177 {offsets = [0, 0], sizes = [8, 512], strides = [1, 1]} : vector<16x512xf32> to vector<8x512xf32>
    %cst_64 = arith.constant dense<0.000000e+00> : vector<8x512xf32>
    %179 = tpu.matmul %134, %12, %cst_64 {dimension_numbers = #tpu.dot_dimension_numbers<[1], [0], [0], [1], [0, 0, 1, 1], [], []>} : vector<8x128xf32>, vector<128x512xf32>, vector<8x512xf32> -> vector<8x512xf32>
    %180 = arith.addf %178, %179 : vector<8x512xf32>
    %181 = vector.extract_strided_slice %177 {offsets = [8, 0], sizes = [8, 512], strides = [1, 1]} : vector<16x512xf32> to vector<8x512xf32>
    %cst_65 = arith.constant dense<0.000000e+00> : vector<8x512xf32>
    %182 = tpu.matmul %165, %12, %cst_65 {dimension_numbers = #tpu.dot_dimension_numbers<[1], [0], [0], [1], [0, 0, 1, 1], [], []>} : vector<8x128xf32>, vector<128x512xf32>, vector<8x512xf32> -> vector<8x512xf32>
    %183 = arith.addf %181, %182 : vector<8x512xf32>
    %184 = vector.extract_strided_slice %180 {offsets = [0, 0], sizes = [8, 128], strides = [1, 1]} : vector<8x512xf32> to vector<8x128xf32>
    %cst_66 = arith.constant 5.000000e-01 : f32
    %185 = vector.broadcast %cst_66 : f32 to vector<8x128xf32>
    %186 = arith.mulf %185, %184 : vector<8x128xf32>
    %187 = math.tanh %186 : vector<8x128xf32>
    %cst_67 = arith.constant 5.000000e-01 : f32
    %188 = vector.broadcast %cst_67 : f32 to vector<8x128xf32>
    %189 = arith.mulf %188, %187 : vector<8x128xf32>
    %cst_68 = arith.constant 5.000000e-01 : f32
    %190 = vector.broadcast %cst_68 : f32 to vector<8x128xf32>
    %191 = arith.addf %189, %190 : vector<8x128xf32>
    %192 = vector.extract_strided_slice %180 {offsets = [0, 128], sizes = [8, 128], strides = [1, 1]} : vector<8x512xf32> to vector<8x128xf32>
    %cst_69 = arith.constant 5.000000e-01 : f32
    %193 = vector.broadcast %cst_69 : f32 to vector<8x128xf32>
    %194 = arith.mulf %193, %192 : vector<8x128xf32>
    %195 = math.tanh %194 : vector<8x128xf32>
    %cst_70 = arith.constant 5.000000e-01 : f32
    %196 = vector.broadcast %cst_70 : f32 to vector<8x128xf32>
    %197 = arith.mulf %196, %195 : vector<8x128xf32>
    %cst_71 = arith.constant 5.000000e-01 : f32
    %198 = vector.broadcast %cst_71 : f32 to vector<8x128xf32>
    %199 = arith.addf %197, %198 : vector<8x128xf32>
    %200 = vector.extract_strided_slice %180 {offsets = [0, 256], sizes = [8, 128], strides = [1, 1]} : vector<8x512xf32> to vector<8x128xf32>
    %201 = math.tanh %200 : vector<8x128xf32>
    %202 = vector.extract_strided_slice %180 {offsets = [0, 384], sizes = [8, 128], strides = [1, 1]} : vector<8x512xf32> to vector<8x128xf32>
    %cst_72 = arith.constant 5.000000e-01 : f32
    %203 = vector.broadcast %cst_72 : f32 to vector<8x128xf32>
    %204 = arith.mulf %203, %202 : vector<8x128xf32>
    %205 = math.tanh %204 : vector<8x128xf32>
    %cst_73 = arith.constant 5.000000e-01 : f32
    %206 = vector.broadcast %cst_73 : f32 to vector<8x128xf32>
    %207 = arith.mulf %206, %205 : vector<8x128xf32>
    %cst_74 = arith.constant 5.000000e-01 : f32
    %208 = vector.broadcast %cst_74 : f32 to vector<8x128xf32>
    %209 = arith.addf %207, %208 : vector<8x128xf32>
    %210 = arith.mulf %199, %132 : vector<8x128xf32>
    %211 = arith.mulf %191, %201 : vector<8x128xf32>
    %212 = arith.addf %210, %211 : vector<8x128xf32>
    %213 = math.tanh %212 : vector<8x128xf32>
    %214 = arith.mulf %209, %213 : vector<8x128xf32>
    %215 = vector.extract_strided_slice %183 {offsets = [0, 0], sizes = [8, 128], strides = [1, 1]} : vector<8x512xf32> to vector<8x128xf32>
    %cst_75 = arith.constant 5.000000e-01 : f32
    %216 = vector.broadcast %cst_75 : f32 to vector<8x128xf32>
    %217 = arith.mulf %216, %215 : vector<8x128xf32>
    %218 = math.tanh %217 : vector<8x128xf32>
    %cst_76 = arith.constant 5.000000e-01 : f32
    %219 = vector.broadcast %cst_76 : f32 to vector<8x128xf32>
    %220 = arith.mulf %219, %218 : vector<8x128xf32>
    %cst_77 = arith.constant 5.000000e-01 : f32
    %221 = vector.broadcast %cst_77 : f32 to vector<8x128xf32>
    %222 = arith.addf %220, %221 : vector<8x128xf32>
    %223 = vector.extract_strided_slice %183 {offsets = [0, 128], sizes = [8, 128], strides = [1, 1]} : vector<8x512xf32> to vector<8x128xf32>
    %cst_78 = arith.constant 5.000000e-01 : f32
    %224 = vector.broadcast %cst_78 : f32 to vector<8x128xf32>
    %225 = arith.mulf %224, %223 : vector<8x128xf32>
    %226 = math.tanh %225 : vector<8x128xf32>
    %cst_79 = arith.constant 5.000000e-01 : f32
    %227 = vector.broadcast %cst_79 : f32 to vector<8x128xf32>
    %228 = arith.mulf %227, %226 : vector<8x128xf32>
    %cst_80 = arith.constant 5.000000e-01 : f32
    %229 = vector.broadcast %cst_80 : f32 to vector<8x128xf32>
    %230 = arith.addf %228, %229 : vector<8x128xf32>
    %231 = vector.extract_strided_slice %183 {offsets = [0, 256], sizes = [8, 128], strides = [1, 1]} : vector<8x512xf32> to vector<8x128xf32>
    %232 = math.tanh %231 : vector<8x128xf32>
    %233 = vector.extract_strided_slice %183 {offsets = [0, 384], sizes = [8, 128], strides = [1, 1]} : vector<8x512xf32> to vector<8x128xf32>
    %cst_81 = arith.constant 5.000000e-01 : f32
    %234 = vector.broadcast %cst_81 : f32 to vector<8x128xf32>
    %235 = arith.mulf %234, %233 : vector<8x128xf32>
    %236 = math.tanh %235 : vector<8x128xf32>
    %cst_82 = arith.constant 5.000000e-01 : f32
    %237 = vector.broadcast %cst_82 : f32 to vector<8x128xf32>
    %238 = arith.mulf %237, %236 : vector<8x128xf32>
    %cst_83 = arith.constant 5.000000e-01 : f32
    %239 = vector.broadcast %cst_83 : f32 to vector<8x128xf32>
    %240 = arith.addf %238, %239 : vector<8x128xf32>
    %241 = arith.mulf %230, %163 : vector<8x128xf32>
    %242 = arith.mulf %222, %232 : vector<8x128xf32>
    %243 = arith.addf %241, %242 : vector<8x128xf32>
    %244 = math.tanh %243 : vector<8x128xf32>
    %245 = arith.mulf %240, %244 : vector<8x128xf32>
    %cst_84 = arith.constant 0.000000e+00 : f32
    %246 = vector.broadcast %cst_84 : f32 to vector<8x128xf32>
    %247 = arith.maximumf %214, %246 : vector<8x128xf32>
    %cst_85 = arith.constant 0.000000e+00 : f32
    %248 = vector.broadcast %cst_85 : f32 to vector<8x128xf32>
    %249 = arith.maximumf %245, %248 : vector<8x128xf32>
    %250 = tpu.concatenate %247, %249 in 0 : vector<8x128xf32>, vector<8x128xf32> -> vector<16x128xf32>
    %251 = arith.index_cast %c2_i32 : i32 to index
    %c0_86 = arith.constant 0 : index
    %c0_87 = arith.constant 0 : index
    %252 = vector.load %arg10[%251, %c0_86, %c0_87] : memref<8x16x128xf32, #tpu.memory_space<vmem>>, vector<1x16x128xf32>
    %253 = vector.shape_cast %252 : vector<1x16x128xf32> to vector<16x128xf32>
    %254 = vector.shape_cast %250 : vector<16x128xf32> to vector<1x16x128xf32>
    tpu.vector_store %arg10[%251, %c0_86, %c0_87], %254 {strides = array<i32>} : memref<8x16x128xf32, #tpu.memory_space<vmem>>, vector<1x16x128xf32>,
    %c3_i32 = arith.constant 3 : i32
    %255 = arith.index_cast %c3_i32 : i32 to index
    %c0_88 = arith.constant 0 : index
    %c0_89 = arith.constant 0 : index
    %256 = vector.load %arg9[%255, %c0_88, %c0_89] : memref<8x16x512xf32, #tpu.memory_space<vmem>>, vector<1x16x512xf32>
    %257 = vector.shape_cast %256 : vector<1x16x512xf32> to vector<16x512xf32>
    %258 = vector.extract_strided_slice %257 {offsets = [0, 0], sizes = [8, 512], strides = [1, 1]} : vector<16x512xf32> to vector<8x512xf32>
    %cst_90 = arith.constant dense<0.000000e+00> : vector<8x512xf32>
    %259 = tpu.matmul %214, %12, %cst_90 {dimension_numbers = #tpu.dot_dimension_numbers<[1], [0], [0], [1], [0, 0, 1, 1], [], []>} : vector<8x128xf32>, vector<128x512xf32>, vector<8x512xf32> -> vector<8x512xf32>
    %260 = arith.addf %258, %259 : vector<8x512xf32>
    %261 = vector.extract_strided_slice %257 {offsets = [8, 0], sizes = [8, 512], strides = [1, 1]} : vector<16x512xf32> to vector<8x512xf32>
    %cst_91 = arith.constant dense<0.000000e+00> : vector<8x512xf32>
    %262 = tpu.matmul %245, %12, %cst_91 {dimension_numbers = #tpu.dot_dimension_numbers<[1], [0], [0], [1], [0, 0, 1, 1], [], []>} : vector<8x128xf32>, vector<128x512xf32>, vector<8x512xf32> -> vector<8x512xf32>
    %263 = arith.addf %261, %262 : vector<8x512xf32>
    %264 = vector.extract_strided_slice %260 {offsets = [0, 0], sizes = [8, 128], strides = [1, 1]} : vector<8x512xf32> to vector<8x128xf32>
    %cst_92 = arith.constant 5.000000e-01 : f32
    %265 = vector.broadcast %cst_92 : f32 to vector<8x128xf32>
    %266 = arith.mulf %265, %264 : vector<8x128xf32>
    %267 = math.tanh %266 : vector<8x128xf32>
    %cst_93 = arith.constant 5.000000e-01 : f32
    %268 = vector.broadcast %cst_93 : f32 to vector<8x128xf32>
    %269 = arith.mulf %268, %267 : vector<8x128xf32>
    %cst_94 = arith.constant 5.000000e-01 : f32
    %270 = vector.broadcast %cst_94 : f32 to vector<8x128xf32>
    %271 = arith.addf %269, %270 : vector<8x128xf32>
    %272 = vector.extract_strided_slice %260 {offsets = [0, 128], sizes = [8, 128], strides = [1, 1]} : vector<8x512xf32> to vector<8x128xf32>
    %cst_95 = arith.constant 5.000000e-01 : f32
    %273 = vector.broadcast %cst_95 : f32 to vector<8x128xf32>
    %274 = arith.mulf %273, %272 : vector<8x128xf32>
    %275 = math.tanh %274 : vector<8x128xf32>
    %cst_96 = arith.constant 5.000000e-01 : f32
    %276 = vector.broadcast %cst_96 : f32 to vector<8x128xf32>
    %277 = arith.mulf %276, %275 : vector<8x128xf32>
    %cst_97 = arith.constant 5.000000e-01 : f32
    %278 = vector.broadcast %cst_97 : f32 to vector<8x128xf32>
    %279 = arith.addf %277, %278 : vector<8x128xf32>
    %280 = vector.extract_strided_slice %260 {offsets = [0, 256], sizes = [8, 128], strides = [1, 1]} : vector<8x512xf32> to vector<8x128xf32>
    %281 = math.tanh %280 : vector<8x128xf32>
    %282 = vector.extract_strided_slice %260 {offsets = [0, 384], sizes = [8, 128], strides = [1, 1]} : vector<8x512xf32> to vector<8x128xf32>
    %cst_98 = arith.constant 5.000000e-01 : f32
    %283 = vector.broadcast %cst_98 : f32 to vector<8x128xf32>
    %284 = arith.mulf %283, %282 : vector<8x128xf32>
    %285 = math.tanh %284 : vector<8x128xf32>
    %cst_99 = arith.constant 5.000000e-01 : f32
    %286 = vector.broadcast %cst_99 : f32 to vector<8x128xf32>
    %287 = arith.mulf %286, %285 : vector<8x128xf32>
    %cst_100 = arith.constant 5.000000e-01 : f32
    %288 = vector.broadcast %cst_100 : f32 to vector<8x128xf32>
    %289 = arith.addf %287, %288 : vector<8x128xf32>
    %290 = arith.mulf %279, %212 : vector<8x128xf32>
    %291 = arith.mulf %271, %281 : vector<8x128xf32>
    %292 = arith.addf %290, %291 : vector<8x128xf32>
    %293 = math.tanh %292 : vector<8x128xf32>
    %294 = arith.mulf %289, %293 : vector<8x128xf32>
    %295 = vector.extract_strided_slice %263 {offsets = [0, 0], sizes = [8, 128], strides = [1, 1]} : vector<8x512xf32> to vector<8x128xf32>
    %cst_101 = arith.constant 5.000000e-01 : f32
    %296 = vector.broadcast %cst_101 : f32 to vector<8x128xf32>
    %297 = arith.mulf %296, %295 : vector<8x128xf32>
    %298 = math.tanh %297 : vector<8x128xf32>
    %cst_102 = arith.constant 5.000000e-01 : f32
    %299 = vector.broadcast %cst_102 : f32 to vector<8x128xf32>
    %300 = arith.mulf %299, %298 : vector<8x128xf32>
    %cst_103 = arith.constant 5.000000e-01 : f32
    %301 = vector.broadcast %cst_103 : f32 to vector<8x128xf32>
    %302 = arith.addf %300, %301 : vector<8x128xf32>
    %303 = vector.extract_strided_slice %263 {offsets = [0, 128], sizes = [8, 128], strides = [1, 1]} : vector<8x512xf32> to vector<8x128xf32>
    %cst_104 = arith.constant 5.000000e-01 : f32
    %304 = vector.broadcast %cst_104 : f32 to vector<8x128xf32>
    %305 = arith.mulf %304, %303 : vector<8x128xf32>
    %306 = math.tanh %305 : vector<8x128xf32>
    %cst_105 = arith.constant 5.000000e-01 : f32
    %307 = vector.broadcast %cst_105 : f32 to vector<8x128xf32>
    %308 = arith.mulf %307, %306 : vector<8x128xf32>
    %cst_106 = arith.constant 5.000000e-01 : f32
    %309 = vector.broadcast %cst_106 : f32 to vector<8x128xf32>
    %310 = arith.addf %308, %309 : vector<8x128xf32>
    %311 = vector.extract_strided_slice %263 {offsets = [0, 256], sizes = [8, 128], strides = [1, 1]} : vector<8x512xf32> to vector<8x128xf32>
    %312 = math.tanh %311 : vector<8x128xf32>
    %313 = vector.extract_strided_slice %263 {offsets = [0, 384], sizes = [8, 128], strides = [1, 1]} : vector<8x512xf32> to vector<8x128xf32>
    %cst_107 = arith.constant 5.000000e-01 : f32
    %314 = vector.broadcast %cst_107 : f32 to vector<8x128xf32>
    %315 = arith.mulf %314, %313 : vector<8x128xf32>
    %316 = math.tanh %315 : vector<8x128xf32>
    %cst_108 = arith.constant 5.000000e-01 : f32
    %317 = vector.broadcast %cst_108 : f32 to vector<8x128xf32>
    %318 = arith.mulf %317, %316 : vector<8x128xf32>
    %cst_109 = arith.constant 5.000000e-01 : f32
    %319 = vector.broadcast %cst_109 : f32 to vector<8x128xf32>
    %320 = arith.addf %318, %319 : vector<8x128xf32>
    %321 = arith.mulf %310, %243 : vector<8x128xf32>
    %322 = arith.mulf %302, %312 : vector<8x128xf32>
    %323 = arith.addf %321, %322 : vector<8x128xf32>
    %324 = math.tanh %323 : vector<8x128xf32>
    %325 = arith.mulf %320, %324 : vector<8x128xf32>
    %cst_110 = arith.constant 0.000000e+00 : f32
    %326 = vector.broadcast %cst_110 : f32 to vector<8x128xf32>
    %327 = arith.maximumf %294, %326 : vector<8x128xf32>
    %cst_111 = arith.constant 0.000000e+00 : f32
    %328 = vector.broadcast %cst_111 : f32 to vector<8x128xf32>
    %329 = arith.maximumf %325, %328 : vector<8x128xf32>
    %330 = tpu.concatenate %327, %329 in 0 : vector<8x128xf32>, vector<8x128xf32> -> vector<16x128xf32>
    %331 = arith.index_cast %c3_i32 : i32 to index
    %c0_112 = arith.constant 0 : index
    %c0_113 = arith.constant 0 : index
    %332 = vector.load %arg10[%331, %c0_112, %c0_113] : memref<8x16x128xf32, #tpu.memory_space<vmem>>, vector<1x16x128xf32>
    %333 = vector.shape_cast %332 : vector<1x16x128xf32> to vector<16x128xf32>
    %334 = vector.shape_cast %330 : vector<16x128xf32> to vector<1x16x128xf32>
    tpu.vector_store %arg10[%331, %c0_112, %c0_113], %334 {strides = array<i32>} : memref<8x16x128xf32, #tpu.memory_space<vmem>>, vector<1x16x128xf32>,
    %c4_i32 = arith.constant 4 : i32
    %335 = arith.index_cast %c4_i32 : i32 to index
    %c0_114 = arith.constant 0 : index
    %c0_115 = arith.constant 0 : index
    %336 = vector.load %arg9[%335, %c0_114, %c0_115] : memref<8x16x512xf32, #tpu.memory_space<vmem>>, vector<1x16x512xf32>
    %337 = vector.shape_cast %336 : vector<1x16x512xf32> to vector<16x512xf32>
    %338 = vector.extract_strided_slice %337 {offsets = [0, 0], sizes = [8, 512], strides = [1, 1]} : vector<16x512xf32> to vector<8x512xf32>
    %cst_116 = arith.constant dense<0.000000e+00> : vector<8x512xf32>
    %339 = tpu.matmul %294, %12, %cst_116 {dimension_numbers = #tpu.dot_dimension_numbers<[1], [0], [0], [1], [0, 0, 1, 1], [], []>} : vector<8x128xf32>, vector<128x512xf32>, vector<8x512xf32> -> vector<8x512xf32>
    %340 = arith.addf %338, %339 : vector<8x512xf32>
    %341 = vector.extract_strided_slice %337 {offsets = [8, 0], sizes = [8, 512], strides = [1, 1]} : vector<16x512xf32> to vector<8x512xf32>
    %cst_117 = arith.constant dense<0.000000e+00> : vector<8x512xf32>
    %342 = tpu.matmul %325, %12, %cst_117 {dimension_numbers = #tpu.dot_dimension_numbers<[1], [0], [0], [1], [0, 0, 1, 1], [], []>} : vector<8x128xf32>, vector<128x512xf32>, vector<8x512xf32> -> vector<8x512xf32>
    %343 = arith.addf %341, %342 : vector<8x512xf32>
    %344 = vector.extract_strided_slice %340 {offsets = [0, 0], sizes = [8, 128], strides = [1, 1]} : vector<8x512xf32> to vector<8x128xf32>
    %cst_118 = arith.constant 5.000000e-01 : f32
    %345 = vector.broadcast %cst_118 : f32 to vector<8x128xf32>
    %346 = arith.mulf %345, %344 : vector<8x128xf32>
    %347 = math.tanh %346 : vector<8x128xf32>
    %cst_119 = arith.constant 5.000000e-01 : f32
    %348 = vector.broadcast %cst_119 : f32 to vector<8x128xf32>
    %349 = arith.mulf %348, %347 : vector<8x128xf32>
    %cst_120 = arith.constant 5.000000e-01 : f32
    %350 = vector.broadcast %cst_120 : f32 to vector<8x128xf32>
    %351 = arith.addf %349, %350 : vector<8x128xf32>
    %352 = vector.extract_strided_slice %340 {offsets = [0, 128], sizes = [8, 128], strides = [1, 1]} : vector<8x512xf32> to vector<8x128xf32>
    %cst_121 = arith.constant 5.000000e-01 : f32
    %353 = vector.broadcast %cst_121 : f32 to vector<8x128xf32>
    %354 = arith.mulf %353, %352 : vector<8x128xf32>
    %355 = math.tanh %354 : vector<8x128xf32>
    %cst_122 = arith.constant 5.000000e-01 : f32
    %356 = vector.broadcast %cst_122 : f32 to vector<8x128xf32>
    %357 = arith.mulf %356, %355 : vector<8x128xf32>
    %cst_123 = arith.constant 5.000000e-01 : f32
    %358 = vector.broadcast %cst_123 : f32 to vector<8x128xf32>
    %359 = arith.addf %357, %358 : vector<8x128xf32>
    %360 = vector.extract_strided_slice %340 {offsets = [0, 256], sizes = [8, 128], strides = [1, 1]} : vector<8x512xf32> to vector<8x128xf32>
    %361 = math.tanh %360 : vector<8x128xf32>
    %362 = vector.extract_strided_slice %340 {offsets = [0, 384], sizes = [8, 128], strides = [1, 1]} : vector<8x512xf32> to vector<8x128xf32>
    %cst_124 = arith.constant 5.000000e-01 : f32
    %363 = vector.broadcast %cst_124 : f32 to vector<8x128xf32>
    %364 = arith.mulf %363, %362 : vector<8x128xf32>
    %365 = math.tanh %364 : vector<8x128xf32>
    %cst_125 = arith.constant 5.000000e-01 : f32
    %366 = vector.broadcast %cst_125 : f32 to vector<8x128xf32>
    %367 = arith.mulf %366, %365 : vector<8x128xf32>
    %cst_126 = arith.constant 5.000000e-01 : f32
    %368 = vector.broadcast %cst_126 : f32 to vector<8x128xf32>
    %369 = arith.addf %367, %368 : vector<8x128xf32>
    %370 = arith.mulf %359, %292 : vector<8x128xf32>
    %371 = arith.mulf %351, %361 : vector<8x128xf32>
    %372 = arith.addf %370, %371 : vector<8x128xf32>
    %373 = math.tanh %372 : vector<8x128xf32>
    %374 = arith.mulf %369, %373 : vector<8x128xf32>
    %375 = vector.extract_strided_slice %343 {offsets = [0, 0], sizes = [8, 128], strides = [1, 1]} : vector<8x512xf32> to vector<8x128xf32>
    %cst_127 = arith.constant 5.000000e-01 : f32
    %376 = vector.broadcast %cst_127 : f32 to vector<8x128xf32>
    %377 = arith.mulf %376, %375 : vector<8x128xf32>
    %378 = math.tanh %377 : vector<8x128xf32>
    %cst_128 = arith.constant 5.000000e-01 : f32
    %379 = vector.broadcast %cst_128 : f32 to vector<8x128xf32>
    %380 = arith.mulf %379, %378 : vector<8x128xf32>
    %cst_129 = arith.constant 5.000000e-01 : f32
    %381 = vector.broadcast %cst_129 : f32 to vector<8x128xf32>
    %382 = arith.addf %380, %381 : vector<8x128xf32>
    %383 = vector.extract_strided_slice %343 {offsets = [0, 128], sizes = [8, 128], strides = [1, 1]} : vector<8x512xf32> to vector<8x128xf32>
    %cst_130 = arith.constant 5.000000e-01 : f32
    %384 = vector.broadcast %cst_130 : f32 to vector<8x128xf32>
    %385 = arith.mulf %384, %383 : vector<8x128xf32>
    %386 = math.tanh %385 : vector<8x128xf32>
    %cst_131 = arith.constant 5.000000e-01 : f32
    %387 = vector.broadcast %cst_131 : f32 to vector<8x128xf32>
    %388 = arith.mulf %387, %386 : vector<8x128xf32>
    %cst_132 = arith.constant 5.000000e-01 : f32
    %389 = vector.broadcast %cst_132 : f32 to vector<8x128xf32>
    %390 = arith.addf %388, %389 : vector<8x128xf32>
    %391 = vector.extract_strided_slice %343 {offsets = [0, 256], sizes = [8, 128], strides = [1, 1]} : vector<8x512xf32> to vector<8x128xf32>
    %392 = math.tanh %391 : vector<8x128xf32>
    %393 = vector.extract_strided_slice %343 {offsets = [0, 384], sizes = [8, 128], strides = [1, 1]} : vector<8x512xf32> to vector<8x128xf32>
    %cst_133 = arith.constant 5.000000e-01 : f32
    %394 = vector.broadcast %cst_133 : f32 to vector<8x128xf32>
    %395 = arith.mulf %394, %393 : vector<8x128xf32>
    %396 = math.tanh %395 : vector<8x128xf32>
    %cst_134 = arith.constant 5.000000e-01 : f32
    %397 = vector.broadcast %cst_134 : f32 to vector<8x128xf32>
    %398 = arith.mulf %397, %396 : vector<8x128xf32>
    %cst_135 = arith.constant 5.000000e-01 : f32
    %399 = vector.broadcast %cst_135 : f32 to vector<8x128xf32>
    %400 = arith.addf %398, %399 : vector<8x128xf32>
    %401 = arith.mulf %390, %323 : vector<8x128xf32>
    %402 = arith.mulf %382, %392 : vector<8x128xf32>
    %403 = arith.addf %401, %402 : vector<8x128xf32>
    %404 = math.tanh %403 : vector<8x128xf32>
    %405 = arith.mulf %400, %404 : vector<8x128xf32>
    %cst_136 = arith.constant 0.000000e+00 : f32
    %406 = vector.broadcast %cst_136 : f32 to vector<8x128xf32>
    %407 = arith.maximumf %374, %406 : vector<8x128xf32>
    %cst_137 = arith.constant 0.000000e+00 : f32
    %408 = vector.broadcast %cst_137 : f32 to vector<8x128xf32>
    %409 = arith.maximumf %405, %408 : vector<8x128xf32>
    %410 = tpu.concatenate %407, %409 in 0 : vector<8x128xf32>, vector<8x128xf32> -> vector<16x128xf32>
    %411 = arith.index_cast %c4_i32 : i32 to index
    %c0_138 = arith.constant 0 : index
    %c0_139 = arith.constant 0 : index
    %412 = vector.load %arg10[%411, %c0_138, %c0_139] : memref<8x16x128xf32, #tpu.memory_space<vmem>>, vector<1x16x128xf32>
    %413 = vector.shape_cast %412 : vector<1x16x128xf32> to vector<16x128xf32>
    %414 = vector.shape_cast %410 : vector<16x128xf32> to vector<1x16x128xf32>
    tpu.vector_store %arg10[%411, %c0_138, %c0_139], %414 {strides = array<i32>} : memref<8x16x128xf32, #tpu.memory_space<vmem>>, vector<1x16x128xf32>,
    %c5_i32 = arith.constant 5 : i32
    %415 = arith.index_cast %c5_i32 : i32 to index
    %c0_140 = arith.constant 0 : index
    %c0_141 = arith.constant 0 : index
    %416 = vector.load %arg9[%415, %c0_140, %c0_141] : memref<8x16x512xf32, #tpu.memory_space<vmem>>, vector<1x16x512xf32>
    %417 = vector.shape_cast %416 : vector<1x16x512xf32> to vector<16x512xf32>
    %418 = vector.extract_strided_slice %417 {offsets = [0, 0], sizes = [8, 512], strides = [1, 1]} : vector<16x512xf32> to vector<8x512xf32>
    %cst_142 = arith.constant dense<0.000000e+00> : vector<8x512xf32>
    %419 = tpu.matmul %374, %12, %cst_142 {dimension_numbers = #tpu.dot_dimension_numbers<[1], [0], [0], [1], [0, 0, 1, 1], [], []>} : vector<8x128xf32>, vector<128x512xf32>, vector<8x512xf32> -> vector<8x512xf32>
    %420 = arith.addf %418, %419 : vector<8x512xf32>
    %421 = vector.extract_strided_slice %417 {offsets = [8, 0], sizes = [8, 512], strides = [1, 1]} : vector<16x512xf32> to vector<8x512xf32>
    %cst_143 = arith.constant dense<0.000000e+00> : vector<8x512xf32>
    %422 = tpu.matmul %405, %12, %cst_143 {dimension_numbers = #tpu.dot_dimension_numbers<[1], [0], [0], [1], [0, 0, 1, 1], [], []>} : vector<8x128xf32>, vector<128x512xf32>, vector<8x512xf32> -> vector<8x512xf32>
    %423 = arith.addf %421, %422 : vector<8x512xf32>
    %424 = vector.extract_strided_slice %420 {offsets = [0, 0], sizes = [8, 128], strides = [1, 1]} : vector<8x512xf32> to vector<8x128xf32>
    %cst_144 = arith.constant 5.000000e-01 : f32
    %425 = vector.broadcast %cst_144 : f32 to vector<8x128xf32>
    %426 = arith.mulf %425, %424 : vector<8x128xf32>
    %427 = math.tanh %426 : vector<8x128xf32>
    %cst_145 = arith.constant 5.000000e-01 : f32
    %428 = vector.broadcast %cst_145 : f32 to vector<8x128xf32>
    %429 = arith.mulf %428, %427 : vector<8x128xf32>
    %cst_146 = arith.constant 5.000000e-01 : f32
    %430 = vector.broadcast %cst_146 : f32 to vector<8x128xf32>
    %431 = arith.addf %429, %430 : vector<8x128xf32>
    %432 = vector.extract_strided_slice %420 {offsets = [0, 128], sizes = [8, 128], strides = [1, 1]} : vector<8x512xf32> to vector<8x128xf32>
    %cst_147 = arith.constant 5.000000e-01 : f32
    %433 = vector.broadcast %cst_147 : f32 to vector<8x128xf32>
    %434 = arith.mulf %433, %432 : vector<8x128xf32>
    %435 = math.tanh %434 : vector<8x128xf32>
    %cst_148 = arith.constant 5.000000e-01 : f32
    %436 = vector.broadcast %cst_148 : f32 to vector<8x128xf32>
    %437 = arith.mulf %436, %435 : vector<8x128xf32>
    %cst_149 = arith.constant 5.000000e-01 : f32
    %438 = vector.broadcast %cst_149 : f32 to vector<8x128xf32>
    %439 = arith.addf %437, %438 : vector<8x128xf32>
    %440 = vector.extract_strided_slice %420 {offsets = [0, 256], sizes = [8, 128], strides = [1, 1]} : vector<8x512xf32> to vector<8x128xf32>
    %441 = math.tanh %440 : vector<8x128xf32>
    %442 = vector.extract_strided_slice %420 {offsets = [0, 384], sizes = [8, 128], strides = [1, 1]} : vector<8x512xf32> to vector<8x128xf32>
    %cst_150 = arith.constant 5.000000e-01 : f32
    %443 = vector.broadcast %cst_150 : f32 to vector<8x128xf32>
    %444 = arith.mulf %443, %442 : vector<8x128xf32>
    %445 = math.tanh %444 : vector<8x128xf32>
    %cst_151 = arith.constant 5.000000e-01 : f32
    %446 = vector.broadcast %cst_151 : f32 to vector<8x128xf32>
    %447 = arith.mulf %446, %445 : vector<8x128xf32>
    %cst_152 = arith.constant 5.000000e-01 : f32
    %448 = vector.broadcast %cst_152 : f32 to vector<8x128xf32>
    %449 = arith.addf %447, %448 : vector<8x128xf32>
    %450 = arith.mulf %439, %372 : vector<8x128xf32>
    %451 = arith.mulf %431, %441 : vector<8x128xf32>
    %452 = arith.addf %450, %451 : vector<8x128xf32>
    %453 = math.tanh %452 : vector<8x128xf32>
    %454 = arith.mulf %449, %453 : vector<8x128xf32>
    %455 = vector.extract_strided_slice %423 {offsets = [0, 0], sizes = [8, 128], strides = [1, 1]} : vector<8x512xf32> to vector<8x128xf32>
    %cst_153 = arith.constant 5.000000e-01 : f32
    %456 = vector.broadcast %cst_153 : f32 to vector<8x128xf32>
    %457 = arith.mulf %456, %455 : vector<8x128xf32>
    %458 = math.tanh %457 : vector<8x128xf32>
    %cst_154 = arith.constant 5.000000e-01 : f32
    %459 = vector.broadcast %cst_154 : f32 to vector<8x128xf32>
    %460 = arith.mulf %459, %458 : vector<8x128xf32>
    %cst_155 = arith.constant 5.000000e-01 : f32
    %461 = vector.broadcast %cst_155 : f32 to vector<8x128xf32>
    %462 = arith.addf %460, %461 : vector<8x128xf32>
    %463 = vector.extract_strided_slice %423 {offsets = [0, 128], sizes = [8, 128], strides = [1, 1]} : vector<8x512xf32> to vector<8x128xf32>
    %cst_156 = arith.constant 5.000000e-01 : f32
    %464 = vector.broadcast %cst_156 : f32 to vector<8x128xf32>
    %465 = arith.mulf %464, %463 : vector<8x128xf32>
    %466 = math.tanh %465 : vector<8x128xf32>
    %cst_157 = arith.constant 5.000000e-01 : f32
    %467 = vector.broadcast %cst_157 : f32 to vector<8x128xf32>
    %468 = arith.mulf %467, %466 : vector<8x128xf32>
    %cst_158 = arith.constant 5.000000e-01 : f32
    %469 = vector.broadcast %cst_158 : f32 to vector<8x128xf32>
    %470 = arith.addf %468, %469 : vector<8x128xf32>
    %471 = vector.extract_strided_slice %423 {offsets = [0, 256], sizes = [8, 128], strides = [1, 1]} : vector<8x512xf32> to vector<8x128xf32>
    %472 = math.tanh %471 : vector<8x128xf32>
    %473 = vector.extract_strided_slice %423 {offsets = [0, 384], sizes = [8, 128], strides = [1, 1]} : vector<8x512xf32> to vector<8x128xf32>
    %cst_159 = arith.constant 5.000000e-01 : f32
    %474 = vector.broadcast %cst_159 : f32 to vector<8x128xf32>
    %475 = arith.mulf %474, %473 : vector<8x128xf32>
    %476 = math.tanh %475 : vector<8x128xf32>
    %cst_160 = arith.constant 5.000000e-01 : f32
    %477 = vector.broadcast %cst_160 : f32 to vector<8x128xf32>
    %478 = arith.mulf %477, %476 : vector<8x128xf32>
    %cst_161 = arith.constant 5.000000e-01 : f32
    %479 = vector.broadcast %cst_161 : f32 to vector<8x128xf32>
    %480 = arith.addf %478, %479 : vector<8x128xf32>
    %481 = arith.mulf %470, %403 : vector<8x128xf32>
    %482 = arith.mulf %462, %472 : vector<8x128xf32>
    %483 = arith.addf %481, %482 : vector<8x128xf32>
    %484 = math.tanh %483 : vector<8x128xf32>
    %485 = arith.mulf %480, %484 : vector<8x128xf32>
    %cst_162 = arith.constant 0.000000e+00 : f32
    %486 = vector.broadcast %cst_162 : f32 to vector<8x128xf32>
    %487 = arith.maximumf %454, %486 : vector<8x128xf32>
    %cst_163 = arith.constant 0.000000e+00 : f32
    %488 = vector.broadcast %cst_163 : f32 to vector<8x128xf32>
    %489 = arith.maximumf %485, %488 : vector<8x128xf32>
    %490 = tpu.concatenate %487, %489 in 0 : vector<8x128xf32>, vector<8x128xf32> -> vector<16x128xf32>
    %491 = arith.index_cast %c5_i32 : i32 to index
    %c0_164 = arith.constant 0 : index
    %c0_165 = arith.constant 0 : index
    %492 = vector.load %arg10[%491, %c0_164, %c0_165] : memref<8x16x128xf32, #tpu.memory_space<vmem>>, vector<1x16x128xf32>
    %493 = vector.shape_cast %492 : vector<1x16x128xf32> to vector<16x128xf32>
    %494 = vector.shape_cast %490 : vector<16x128xf32> to vector<1x16x128xf32>
    tpu.vector_store %arg10[%491, %c0_164, %c0_165], %494 {strides = array<i32>} : memref<8x16x128xf32, #tpu.memory_space<vmem>>, vector<1x16x128xf32>,
    %c6_i32 = arith.constant 6 : i32
    %495 = arith.index_cast %c6_i32 : i32 to index
    %c0_166 = arith.constant 0 : index
    %c0_167 = arith.constant 0 : index
    %496 = vector.load %arg9[%495, %c0_166, %c0_167] : memref<8x16x512xf32, #tpu.memory_space<vmem>>, vector<1x16x512xf32>
    %497 = vector.shape_cast %496 : vector<1x16x512xf32> to vector<16x512xf32>
    %498 = vector.extract_strided_slice %497 {offsets = [0, 0], sizes = [8, 512], strides = [1, 1]} : vector<16x512xf32> to vector<8x512xf32>
    %cst_168 = arith.constant dense<0.000000e+00> : vector<8x512xf32>
    %499 = tpu.matmul %454, %12, %cst_168 {dimension_numbers = #tpu.dot_dimension_numbers<[1], [0], [0], [1], [0, 0, 1, 1], [], []>} : vector<8x128xf32>, vector<128x512xf32>, vector<8x512xf32> -> vector<8x512xf32>
    %500 = arith.addf %498, %499 : vector<8x512xf32>
    %501 = vector.extract_strided_slice %497 {offsets = [8, 0], sizes = [8, 512], strides = [1, 1]} : vector<16x512xf32> to vector<8x512xf32>
    %cst_169 = arith.constant dense<0.000000e+00> : vector<8x512xf32>
    %502 = tpu.matmul %485, %12, %cst_169 {dimension_numbers = #tpu.dot_dimension_numbers<[1], [0], [0], [1], [0, 0, 1, 1], [], []>} : vector<8x128xf32>, vector<128x512xf32>, vector<8x512xf32> -> vector<8x512xf32>
    %503 = arith.addf %501, %502 : vector<8x512xf32>
    %504 = vector.extract_strided_slice %500 {offsets = [0, 0], sizes = [8, 128], strides = [1, 1]} : vector<8x512xf32> to vector<8x128xf32>
    %cst_170 = arith.constant 5.000000e-01 : f32
    %505 = vector.broadcast %cst_170 : f32 to vector<8x128xf32>
    %506 = arith.mulf %505, %504 : vector<8x128xf32>
    %507 = math.tanh %506 : vector<8x128xf32>
    %cst_171 = arith.constant 5.000000e-01 : f32
    %508 = vector.broadcast %cst_171 : f32 to vector<8x128xf32>
    %509 = arith.mulf %508, %507 : vector<8x128xf32>
    %cst_172 = arith.constant 5.000000e-01 : f32
    %510 = vector.broadcast %cst_172 : f32 to vector<8x128xf32>
    %511 = arith.addf %509, %510 : vector<8x128xf32>
    %512 = vector.extract_strided_slice %500 {offsets = [0, 128], sizes = [8, 128], strides = [1, 1]} : vector<8x512xf32> to vector<8x128xf32>
    %cst_173 = arith.constant 5.000000e-01 : f32
    %513 = vector.broadcast %cst_173 : f32 to vector<8x128xf32>
    %514 = arith.mulf %513, %512 : vector<8x128xf32>
    %515 = math.tanh %514 : vector<8x128xf32>
    %cst_174 = arith.constant 5.000000e-01 : f32
    %516 = vector.broadcast %cst_174 : f32 to vector<8x128xf32>
    %517 = arith.mulf %516, %515 : vector<8x128xf32>
    %cst_175 = arith.constant 5.000000e-01 : f32
    %518 = vector.broadcast %cst_175 : f32 to vector<8x128xf32>
    %519 = arith.addf %517, %518 : vector<8x128xf32>
    %520 = vector.extract_strided_slice %500 {offsets = [0, 256], sizes = [8, 128], strides = [1, 1]} : vector<8x512xf32> to vector<8x128xf32>
    %521 = math.tanh %520 : vector<8x128xf32>
    %522 = vector.extract_strided_slice %500 {offsets = [0, 384], sizes = [8, 128], strides = [1, 1]} : vector<8x512xf32> to vector<8x128xf32>
    %cst_176 = arith.constant 5.000000e-01 : f32
    %523 = vector.broadcast %cst_176 : f32 to vector<8x128xf32>
    %524 = arith.mulf %523, %522 : vector<8x128xf32>
    %525 = math.tanh %524 : vector<8x128xf32>
    %cst_177 = arith.constant 5.000000e-01 : f32
    %526 = vector.broadcast %cst_177 : f32 to vector<8x128xf32>
    %527 = arith.mulf %526, %525 : vector<8x128xf32>
    %cst_178 = arith.constant 5.000000e-01 : f32
    %528 = vector.broadcast %cst_178 : f32 to vector<8x128xf32>
    %529 = arith.addf %527, %528 : vector<8x128xf32>
    %530 = arith.mulf %519, %452 : vector<8x128xf32>
    %531 = arith.mulf %511, %521 : vector<8x128xf32>
    %532 = arith.addf %530, %531 : vector<8x128xf32>
    %533 = math.tanh %532 : vector<8x128xf32>
    %534 = arith.mulf %529, %533 : vector<8x128xf32>
    %535 = vector.extract_strided_slice %503 {offsets = [0, 0], sizes = [8, 128], strides = [1, 1]} : vector<8x512xf32> to vector<8x128xf32>
    %cst_179 = arith.constant 5.000000e-01 : f32
    %536 = vector.broadcast %cst_179 : f32 to vector<8x128xf32>
    %537 = arith.mulf %536, %535 : vector<8x128xf32>
    %538 = math.tanh %537 : vector<8x128xf32>
    %cst_180 = arith.constant 5.000000e-01 : f32
    %539 = vector.broadcast %cst_180 : f32 to vector<8x128xf32>
    %540 = arith.mulf %539, %538 : vector<8x128xf32>
    %cst_181 = arith.constant 5.000000e-01 : f32
    %541 = vector.broadcast %cst_181 : f32 to vector<8x128xf32>
    %542 = arith.addf %540, %541 : vector<8x128xf32>
    %543 = vector.extract_strided_slice %503 {offsets = [0, 128], sizes = [8, 128], strides = [1, 1]} : vector<8x512xf32> to vector<8x128xf32>
    %cst_182 = arith.constant 5.000000e-01 : f32
    %544 = vector.broadcast %cst_182 : f32 to vector<8x128xf32>
    %545 = arith.mulf %544, %543 : vector<8x128xf32>
    %546 = math.tanh %545 : vector<8x128xf32>
    %cst_183 = arith.constant 5.000000e-01 : f32
    %547 = vector.broadcast %cst_183 : f32 to vector<8x128xf32>
    %548 = arith.mulf %547, %546 : vector<8x128xf32>
    %cst_184 = arith.constant 5.000000e-01 : f32
    %549 = vector.broadcast %cst_184 : f32 to vector<8x128xf32>
    %550 = arith.addf %548, %549 : vector<8x128xf32>
    %551 = vector.extract_strided_slice %503 {offsets = [0, 256], sizes = [8, 128], strides = [1, 1]} : vector<8x512xf32> to vector<8x128xf32>
    %552 = math.tanh %551 : vector<8x128xf32>
    %553 = vector.extract_strided_slice %503 {offsets = [0, 384], sizes = [8, 128], strides = [1, 1]} : vector<8x512xf32> to vector<8x128xf32>
    %cst_185 = arith.constant 5.000000e-01 : f32
    %554 = vector.broadcast %cst_185 : f32 to vector<8x128xf32>
    %555 = arith.mulf %554, %553 : vector<8x128xf32>
    %556 = math.tanh %555 : vector<8x128xf32>
    %cst_186 = arith.constant 5.000000e-01 : f32
    %557 = vector.broadcast %cst_186 : f32 to vector<8x128xf32>
    %558 = arith.mulf %557, %556 : vector<8x128xf32>
    %cst_187 = arith.constant 5.000000e-01 : f32
    %559 = vector.broadcast %cst_187 : f32 to vector<8x128xf32>
    %560 = arith.addf %558, %559 : vector<8x128xf32>
    %561 = arith.mulf %550, %483 : vector<8x128xf32>
    %562 = arith.mulf %542, %552 : vector<8x128xf32>
    %563 = arith.addf %561, %562 : vector<8x128xf32>
    %564 = math.tanh %563 : vector<8x128xf32>
    %565 = arith.mulf %560, %564 : vector<8x128xf32>
    %cst_188 = arith.constant 0.000000e+00 : f32
    %566 = vector.broadcast %cst_188 : f32 to vector<8x128xf32>
    %567 = arith.maximumf %534, %566 : vector<8x128xf32>
    %cst_189 = arith.constant 0.000000e+00 : f32
    %568 = vector.broadcast %cst_189 : f32 to vector<8x128xf32>
    %569 = arith.maximumf %565, %568 : vector<8x128xf32>
    %570 = tpu.concatenate %567, %569 in 0 : vector<8x128xf32>, vector<8x128xf32> -> vector<16x128xf32>
    %571 = arith.index_cast %c6_i32 : i32 to index
    %c0_190 = arith.constant 0 : index
    %c0_191 = arith.constant 0 : index
    %572 = vector.load %arg10[%571, %c0_190, %c0_191] : memref<8x16x128xf32, #tpu.memory_space<vmem>>, vector<1x16x128xf32>
    %573 = vector.shape_cast %572 : vector<1x16x128xf32> to vector<16x128xf32>
    %574 = vector.shape_cast %570 : vector<16x128xf32> to vector<1x16x128xf32>
    tpu.vector_store %arg10[%571, %c0_190, %c0_191], %574 {strides = array<i32>} : memref<8x16x128xf32, #tpu.memory_space<vmem>>, vector<1x16x128xf32>,
    %c7_i32 = arith.constant 7 : i32
    %575 = arith.index_cast %c7_i32 : i32 to index
    %c0_192 = arith.constant 0 : index
    %c0_193 = arith.constant 0 : index
    %576 = vector.load %arg9[%575, %c0_192, %c0_193] : memref<8x16x512xf32, #tpu.memory_space<vmem>>, vector<1x16x512xf32>
    %577 = vector.shape_cast %576 : vector<1x16x512xf32> to vector<16x512xf32>
    %578 = vector.extract_strided_slice %577 {offsets = [0, 0], sizes = [8, 512], strides = [1, 1]} : vector<16x512xf32> to vector<8x512xf32>
    %cst_194 = arith.constant dense<0.000000e+00> : vector<8x512xf32>
    %579 = tpu.matmul %534, %12, %cst_194 {dimension_numbers = #tpu.dot_dimension_numbers<[1], [0], [0], [1], [0, 0, 1, 1], [], []>} : vector<8x128xf32>, vector<128x512xf32>, vector<8x512xf32> -> vector<8x512xf32>
    %580 = arith.addf %578, %579 : vector<8x512xf32>
    %581 = vector.extract_strided_slice %577 {offsets = [8, 0], sizes = [8, 512], strides = [1, 1]} : vector<16x512xf32> to vector<8x512xf32>
    %cst_195 = arith.constant dense<0.000000e+00> : vector<8x512xf32>
    %582 = tpu.matmul %565, %12, %cst_195 {dimension_numbers = #tpu.dot_dimension_numbers<[1], [0], [0], [1], [0, 0, 1, 1], [], []>} : vector<8x128xf32>, vector<128x512xf32>, vector<8x512xf32> -> vector<8x512xf32>
    %583 = arith.addf %581, %582 : vector<8x512xf32>
    %584 = vector.extract_strided_slice %580 {offsets = [0, 0], sizes = [8, 128], strides = [1, 1]} : vector<8x512xf32> to vector<8x128xf32>
    %cst_196 = arith.constant 5.000000e-01 : f32
    %585 = vector.broadcast %cst_196 : f32 to vector<8x128xf32>
    %586 = arith.mulf %585, %584 : vector<8x128xf32>
    %587 = math.tanh %586 : vector<8x128xf32>
    %cst_197 = arith.constant 5.000000e-01 : f32
    %588 = vector.broadcast %cst_197 : f32 to vector<8x128xf32>
    %589 = arith.mulf %588, %587 : vector<8x128xf32>
    %cst_198 = arith.constant 5.000000e-01 : f32
    %590 = vector.broadcast %cst_198 : f32 to vector<8x128xf32>
    %591 = arith.addf %589, %590 : vector<8x128xf32>
    %592 = vector.extract_strided_slice %580 {offsets = [0, 128], sizes = [8, 128], strides = [1, 1]} : vector<8x512xf32> to vector<8x128xf32>
    %cst_199 = arith.constant 5.000000e-01 : f32
    %593 = vector.broadcast %cst_199 : f32 to vector<8x128xf32>
    %594 = arith.mulf %593, %592 : vector<8x128xf32>
    %595 = math.tanh %594 : vector<8x128xf32>
    %cst_200 = arith.constant 5.000000e-01 : f32
    %596 = vector.broadcast %cst_200 : f32 to vector<8x128xf32>
    %597 = arith.mulf %596, %595 : vector<8x128xf32>
    %cst_201 = arith.constant 5.000000e-01 : f32
    %598 = vector.broadcast %cst_201 : f32 to vector<8x128xf32>
    %599 = arith.addf %597, %598 : vector<8x128xf32>
    %600 = vector.extract_strided_slice %580 {offsets = [0, 256], sizes = [8, 128], strides = [1, 1]} : vector<8x512xf32> to vector<8x128xf32>
    %601 = math.tanh %600 : vector<8x128xf32>
    %602 = vector.extract_strided_slice %580 {offsets = [0, 384], sizes = [8, 128], strides = [1, 1]} : vector<8x512xf32> to vector<8x128xf32>
    %cst_202 = arith.constant 5.000000e-01 : f32
    %603 = vector.broadcast %cst_202 : f32 to vector<8x128xf32>
    %604 = arith.mulf %603, %602 : vector<8x128xf32>
    %605 = math.tanh %604 : vector<8x128xf32>
    %cst_203 = arith.constant 5.000000e-01 : f32
    %606 = vector.broadcast %cst_203 : f32 to vector<8x128xf32>
    %607 = arith.mulf %606, %605 : vector<8x128xf32>
    %cst_204 = arith.constant 5.000000e-01 : f32
    %608 = vector.broadcast %cst_204 : f32 to vector<8x128xf32>
    %609 = arith.addf %607, %608 : vector<8x128xf32>
    %610 = arith.mulf %599, %532 : vector<8x128xf32>
    %611 = arith.mulf %591, %601 : vector<8x128xf32>
    %612 = arith.addf %610, %611 : vector<8x128xf32>
    %613 = math.tanh %612 : vector<8x128xf32>
    %614 = arith.mulf %609, %613 : vector<8x128xf32>
    %615 = vector.extract_strided_slice %583 {offsets = [0, 0], sizes = [8, 128], strides = [1, 1]} : vector<8x512xf32> to vector<8x128xf32>
    %cst_205 = arith.constant 5.000000e-01 : f32
    %616 = vector.broadcast %cst_205 : f32 to vector<8x128xf32>
    %617 = arith.mulf %616, %615 : vector<8x128xf32>
    %618 = math.tanh %617 : vector<8x128xf32>
    %cst_206 = arith.constant 5.000000e-01 : f32
    %619 = vector.broadcast %cst_206 : f32 to vector<8x128xf32>
    %620 = arith.mulf %619, %618 : vector<8x128xf32>
    %cst_207 = arith.constant 5.000000e-01 : f32
    %621 = vector.broadcast %cst_207 : f32 to vector<8x128xf32>
    %622 = arith.addf %620, %621 : vector<8x128xf32>
    %623 = vector.extract_strided_slice %583 {offsets = [0, 128], sizes = [8, 128], strides = [1, 1]} : vector<8x512xf32> to vector<8x128xf32>
    %cst_208 = arith.constant 5.000000e-01 : f32
    %624 = vector.broadcast %cst_208 : f32 to vector<8x128xf32>
    %625 = arith.mulf %624, %623 : vector<8x128xf32>
    %626 = math.tanh %625 : vector<8x128xf32>
    %cst_209 = arith.constant 5.000000e-01 : f32
    %627 = vector.broadcast %cst_209 : f32 to vector<8x128xf32>
    %628 = arith.mulf %627, %626 : vector<8x128xf32>
    %cst_210 = arith.constant 5.000000e-01 : f32
    %629 = vector.broadcast %cst_210 : f32 to vector<8x128xf32>
    %630 = arith.addf %628, %629 : vector<8x128xf32>
    %631 = vector.extract_strided_slice %583 {offsets = [0, 256], sizes = [8, 128], strides = [1, 1]} : vector<8x512xf32> to vector<8x128xf32>
    %632 = math.tanh %631 : vector<8x128xf32>
    %633 = vector.extract_strided_slice %583 {offsets = [0, 384], sizes = [8, 128], strides = [1, 1]} : vector<8x512xf32> to vector<8x128xf32>
    %cst_211 = arith.constant 5.000000e-01 : f32
    %634 = vector.broadcast %cst_211 : f32 to vector<8x128xf32>
    %635 = arith.mulf %634, %633 : vector<8x128xf32>
    %636 = math.tanh %635 : vector<8x128xf32>
    %cst_212 = arith.constant 5.000000e-01 : f32
    %637 = vector.broadcast %cst_212 : f32 to vector<8x128xf32>
    %638 = arith.mulf %637, %636 : vector<8x128xf32>
    %cst_213 = arith.constant 5.000000e-01 : f32
    %639 = vector.broadcast %cst_213 : f32 to vector<8x128xf32>
    %640 = arith.addf %638, %639 : vector<8x128xf32>
    %641 = arith.mulf %630, %563 : vector<8x128xf32>
    %642 = arith.mulf %622, %632 : vector<8x128xf32>
    %643 = arith.addf %641, %642 : vector<8x128xf32>
    %644 = math.tanh %643 : vector<8x128xf32>
    %645 = arith.mulf %640, %644 : vector<8x128xf32>
    %cst_214 = arith.constant 0.000000e+00 : f32
    %646 = vector.broadcast %cst_214 : f32 to vector<8x128xf32>
    %647 = arith.maximumf %614, %646 : vector<8x128xf32>
    %cst_215 = arith.constant 0.000000e+00 : f32
    %648 = vector.broadcast %cst_215 : f32 to vector<8x128xf32>
    %649 = arith.maximumf %645, %648 : vector<8x128xf32>
    %650 = tpu.concatenate %647, %649 in 0 : vector<8x128xf32>, vector<8x128xf32> -> vector<16x128xf32>
    %651 = arith.index_cast %c7_i32 : i32 to index
    %c0_216 = arith.constant 0 : index
    %c0_217 = arith.constant 0 : index
    %652 = vector.load %arg10[%651, %c0_216, %c0_217] : memref<8x16x128xf32, #tpu.memory_space<vmem>>, vector<1x16x128xf32>
    %653 = vector.shape_cast %652 : vector<1x16x128xf32> to vector<16x128xf32>
    %654 = vector.shape_cast %650 : vector<16x128xf32> to vector<1x16x128xf32>
    tpu.vector_store %arg10[%651, %c0_216, %c0_217], %654 {strides = array<i32>} : memref<8x16x128xf32, #tpu.memory_space<vmem>>, vector<1x16x128xf32>,
    %c8_i32 = arith.constant 8 : i32
    %cst_218 = arith.constant 0.000000e+00 : f32
    %655 = vector.broadcast %cst_218 : f32 to vector<16x128xf32>
    %c0_i32_219 = arith.constant 0 : i32
    %656 = arith.index_cast %c0_i32_219 : i32 to index
    %c0_220 = arith.constant 0 : index
    %c0_221 = arith.constant 0 : index
    %657 = vector.load %arg10[%656, %c0_220, %c0_221] : memref<8x16x128xf32, #tpu.memory_space<vmem>>, vector<1x16x128xf32>
    %658 = vector.shape_cast %657 : vector<1x16x128xf32> to vector<16x128xf32>
    %659 = arith.index_cast %c0_i32_219 : i32 to index
    %c0_222 = arith.constant 0 : index
    %c0_223 = arith.constant 0 : index
    %660 = vector.load %arg4[%659, %c0_222, %c0_223] : memref<8x128x128xf32, #tpu.memory_space<vmem>>, vector<1x128x128xf32>
    %661 = vector.shape_cast %660 : vector<1x128x128xf32> to vector<128x128xf32>
    %cst_224 = arith.constant dense<0.000000e+00> : vector<16x128xf32>
    %662 = tpu.matmul %658, %661, %cst_224 {dimension_numbers = #tpu.dot_dimension_numbers<[1], [0], [0], [1], [0, 0, 1, 1], [], []>} : vector<16x128xf32>, vector<128x128xf32>, vector<16x128xf32> -> vector<16x128xf32>
    %663 = arith.addf %655, %662 : vector<16x128xf32>
    %c1_i32_225 = arith.constant 1 : i32
    %664 = arith.index_cast %c1_i32_225 : i32 to index
    %c0_226 = arith.constant 0 : index
    %c0_227 = arith.constant 0 : index
    %665 = vector.load %arg10[%664, %c0_226, %c0_227] : memref<8x16x128xf32, #tpu.memory_space<vmem>>, vector<1x16x128xf32>
    %666 = vector.shape_cast %665 : vector<1x16x128xf32> to vector<16x128xf32>
    %667 = arith.index_cast %c1_i32_225 : i32 to index
    %c0_228 = arith.constant 0 : index
    %c0_229 = arith.constant 0 : index
    %668 = vector.load %arg4[%667, %c0_228, %c0_229] : memref<8x128x128xf32, #tpu.memory_space<vmem>>, vector<1x128x128xf32>
    %669 = vector.shape_cast %668 : vector<1x128x128xf32> to vector<128x128xf32>
    %cst_230 = arith.constant dense<0.000000e+00> : vector<16x128xf32>
    %670 = tpu.matmul %666, %669, %cst_230 {dimension_numbers = #tpu.dot_dimension_numbers<[1], [0], [0], [1], [0, 0, 1, 1], [], []>} : vector<16x128xf32>, vector<128x128xf32>, vector<16x128xf32> -> vector<16x128xf32>
    %671 = arith.addf %663, %670 : vector<16x128xf32>
    %c2_i32_231 = arith.constant 2 : i32
    %672 = arith.index_cast %c2_i32_231 : i32 to index
    %c0_232 = arith.constant 0 : index
    %c0_233 = arith.constant 0 : index
    %673 = vector.load %arg10[%672, %c0_232, %c0_233] : memref<8x16x128xf32, #tpu.memory_space<vmem>>, vector<1x16x128xf32>
    %674 = vector.shape_cast %673 : vector<1x16x128xf32> to vector<16x128xf32>
    %675 = arith.index_cast %c2_i32_231 : i32 to index
    %c0_234 = arith.constant 0 : index
    %c0_235 = arith.constant 0 : index
    %676 = vector.load %arg4[%675, %c0_234, %c0_235] : memref<8x128x128xf32, #tpu.memory_space<vmem>>, vector<1x128x128xf32>
    %677 = vector.shape_cast %676 : vector<1x128x128xf32> to vector<128x128xf32>
    %cst_236 = arith.constant dense<0.000000e+00> : vector<16x128xf32>
    %678 = tpu.matmul %674, %677, %cst_236 {dimension_numbers = #tpu.dot_dimension_numbers<[1], [0], [0], [1], [0, 0, 1, 1], [], []>} : vector<16x128xf32>, vector<128x128xf32>, vector<16x128xf32> -> vector<16x128xf32>
    %679 = arith.addf %671, %678 : vector<16x128xf32>
    %c3_i32_237 = arith.constant 3 : i32
    %680 = arith.index_cast %c3_i32_237 : i32 to index
    %c0_238 = arith.constant 0 : index
    %c0_239 = arith.constant 0 : index
    %681 = vector.load %arg10[%680, %c0_238, %c0_239] : memref<8x16x128xf32, #tpu.memory_space<vmem>>, vector<1x16x128xf32>
    %682 = vector.shape_cast %681 : vector<1x16x128xf32> to vector<16x128xf32>
    %683 = arith.index_cast %c3_i32_237 : i32 to index
    %c0_240 = arith.constant 0 : index
    %c0_241 = arith.constant 0 : index
    %684 = vector.load %arg4[%683, %c0_240, %c0_241] : memref<8x128x128xf32, #tpu.memory_space<vmem>>, vector<1x128x128xf32>
    %685 = vector.shape_cast %684 : vector<1x128x128xf32> to vector<128x128xf32>
    %cst_242 = arith.constant dense<0.000000e+00> : vector<16x128xf32>
    %686 = tpu.matmul %682, %685, %cst_242 {dimension_numbers = #tpu.dot_dimension_numbers<[1], [0], [0], [1], [0, 0, 1, 1], [], []>} : vector<16x128xf32>, vector<128x128xf32>, vector<16x128xf32> -> vector<16x128xf32>
    %687 = arith.addf %679, %686 : vector<16x128xf32>
    %c4_i32_243 = arith.constant 4 : i32
    %688 = arith.index_cast %c4_i32_243 : i32 to index
    %c0_244 = arith.constant 0 : index
    %c0_245 = arith.constant 0 : index
    %689 = vector.load %arg10[%688, %c0_244, %c0_245] : memref<8x16x128xf32, #tpu.memory_space<vmem>>, vector<1x16x128xf32>
    %690 = vector.shape_cast %689 : vector<1x16x128xf32> to vector<16x128xf32>
    %691 = arith.index_cast %c4_i32_243 : i32 to index
    %c0_246 = arith.constant 0 : index
    %c0_247 = arith.constant 0 : index
    %692 = vector.load %arg4[%691, %c0_246, %c0_247] : memref<8x128x128xf32, #tpu.memory_space<vmem>>, vector<1x128x128xf32>
    %693 = vector.shape_cast %692 : vector<1x128x128xf32> to vector<128x128xf32>
    %cst_248 = arith.constant dense<0.000000e+00> : vector<16x128xf32>
    %694 = tpu.matmul %690, %693, %cst_248 {dimension_numbers = #tpu.dot_dimension_numbers<[1], [0], [0], [1], [0, 0, 1, 1], [], []>} : vector<16x128xf32>, vector<128x128xf32>, vector<16x128xf32> -> vector<16x128xf32>
    %695 = arith.addf %687, %694 : vector<16x128xf32>
    %c5_i32_249 = arith.constant 5 : i32
    %696 = arith.index_cast %c5_i32_249 : i32 to index
    %c0_250 = arith.constant 0 : index
    %c0_251 = arith.constant 0 : index
    %697 = vector.load %arg10[%696, %c0_250, %c0_251] : memref<8x16x128xf32, #tpu.memory_space<vmem>>, vector<1x16x128xf32>
    %698 = vector.shape_cast %697 : vector<1x16x128xf32> to vector<16x128xf32>
    %699 = arith.index_cast %c5_i32_249 : i32 to index
    %c0_252 = arith.constant 0 : index
    %c0_253 = arith.constant 0 : index
    %700 = vector.load %arg4[%699, %c0_252, %c0_253] : memref<8x128x128xf32, #tpu.memory_space<vmem>>, vector<1x128x128xf32>
    %701 = vector.shape_cast %700 : vector<1x128x128xf32> to vector<128x128xf32>
    %cst_254 = arith.constant dense<0.000000e+00> : vector<16x128xf32>
    %702 = tpu.matmul %698, %701, %cst_254 {dimension_numbers = #tpu.dot_dimension_numbers<[1], [0], [0], [1], [0, 0, 1, 1], [], []>} : vector<16x128xf32>, vector<128x128xf32>, vector<16x128xf32> -> vector<16x128xf32>
    %703 = arith.addf %695, %702 : vector<16x128xf32>
    %c6_i32_255 = arith.constant 6 : i32
    %704 = arith.index_cast %c6_i32_255 : i32 to index
    %c0_256 = arith.constant 0 : index
    %c0_257 = arith.constant 0 : index
    %705 = vector.load %arg10[%704, %c0_256, %c0_257] : memref<8x16x128xf32, #tpu.memory_space<vmem>>, vector<1x16x128xf32>
    %706 = vector.shape_cast %705 : vector<1x16x128xf32> to vector<16x128xf32>
    %707 = arith.index_cast %c6_i32_255 : i32 to index
    %c0_258 = arith.constant 0 : index
    %c0_259 = arith.constant 0 : index
    %708 = vector.load %arg4[%707, %c0_258, %c0_259] : memref<8x128x128xf32, #tpu.memory_space<vmem>>, vector<1x128x128xf32>
    %709 = vector.shape_cast %708 : vector<1x128x128xf32> to vector<128x128xf32>
    %cst_260 = arith.constant dense<0.000000e+00> : vector<16x128xf32>
    %710 = tpu.matmul %706, %709, %cst_260 {dimension_numbers = #tpu.dot_dimension_numbers<[1], [0], [0], [1], [0, 0, 1, 1], [], []>} : vector<16x128xf32>, vector<128x128xf32>, vector<16x128xf32> -> vector<16x128xf32>
    %711 = arith.addf %703, %710 : vector<16x128xf32>
    %c7_i32_261 = arith.constant 7 : i32
    %712 = arith.index_cast %c7_i32_261 : i32 to index
    %c0_262 = arith.constant 0 : index
    %c0_263 = arith.constant 0 : index
    %713 = vector.load %arg10[%712, %c0_262, %c0_263] : memref<8x16x128xf32, #tpu.memory_space<vmem>>, vector<1x16x128xf32>
    %714 = vector.shape_cast %713 : vector<1x16x128xf32> to vector<16x128xf32>
    %715 = arith.index_cast %c7_i32_261 : i32 to index
    %c0_264 = arith.constant 0 : index
    %c0_265 = arith.constant 0 : index
    %716 = vector.load %arg4[%715, %c0_264, %c0_265] : memref<8x128x128xf32, #tpu.memory_space<vmem>>, vector<1x128x128xf32>
    %717 = vector.shape_cast %716 : vector<1x128x128xf32> to vector<128x128xf32>
    %cst_266 = arith.constant dense<0.000000e+00> : vector<16x128xf32>
    %718 = tpu.matmul %714, %717, %cst_266 {dimension_numbers = #tpu.dot_dimension_numbers<[1], [0], [0], [1], [0, 0, 1, 1], [], []>} : vector<16x128xf32>, vector<128x128xf32>, vector<16x128xf32> -> vector<16x128xf32>
    %719 = arith.addf %711, %718 : vector<16x128xf32>
    %c8_i32_267 = arith.constant 8 : i32
    %c0_268 = arith.constant 0 : index
    %c0_269 = arith.constant 0 : index
    %720 = vector.load %arg5[%c0_268, %c0_269] : memref<1x128xf32, #tpu.memory_space<vmem>>, vector<1x128xf32>
    %721 = vector.broadcast %720 : vector<1x128xf32> to vector<16x128xf32>
    %722 = arith.addf %719, %721 : vector<16x128xf32>
    %cst_270 = arith.constant 0.000000e+00 : f32
    %723 = vector.broadcast %cst_270 : f32 to vector<16x128xf32>
    %724 = arith.maximumf %722, %723 : vector<16x128xf32>
    %c0_271 = arith.constant 0 : index
    %c0_272 = arith.constant 0 : index
    %725 = vector.load %arg6[%c0_271, %c0_272] : memref<128x128xf32, #tpu.memory_space<vmem>>, vector<128x128xf32>
    %cst_273 = arith.constant dense<0.000000e+00> : vector<16x128xf32>
    %726 = tpu.matmul %724, %725, %cst_273 {dimension_numbers = #tpu.dot_dimension_numbers<[1], [0], [0], [1], [0, 0, 1, 1], [], []>} : vector<16x128xf32>, vector<128x128xf32>, vector<16x128xf32> -> vector<16x128xf32>
    %c0_274 = arith.constant 0 : index
    %c0_275 = arith.constant 0 : index
    %727 = vector.load %arg7[%c0_274, %c0_275] : memref<1x128xf32, #tpu.memory_space<vmem>>, vector<1x128xf32>
    %728 = vector.broadcast %727 : vector<1x128xf32> to vector<16x128xf32>
    %729 = arith.addf %726, %728 : vector<16x128xf32>
    %c0_276 = arith.constant 0 : index
    %c0_277 = arith.constant 0 : index
    %730 = vector.load %arg8[%c0_276, %c0_277] : memref<16x128xf32, #tpu.memory_space<vmem>>, vector<16x128xf32>
    tpu.vector_store %arg8[%c0_276, %c0_277], %729 {strides = array<i32>} : memref<16x128xf32, #tpu.memory_space<vmem>>, vector<16x128xf32>,
    return
  }
  func.func @transform_0(%arg0: i32) -> (i32, i32) {
    %c0_i32 = arith.constant 0 : i32
    %c0_i32_0 = arith.constant 0 : i32
    return %c0_i32, %arg0 : i32, i32
  }
  func.func @transform_1(%arg0: i32) -> (i32, i32) {
    %c0_i32 = arith.constant 0 : i32
    %c0_i32_0 = arith.constant 0 : i32
    %c0_i32_1 = arith.constant 0 : i32
    return %c0_i32, %c0_i32_0 : i32, i32
  }
  func.func @transform_2(%arg0: i32) -> (i32, i32) {
    %c0_i32 = arith.constant 0 : i32
    %c0_i32_0 = arith.constant 0 : i32
    %c0_i32_1 = arith.constant 0 : i32
    return %c0_i32, %c0_i32_0 : i32, i32
  }
  func.func @transform_3(%arg0: i32) -> (i32, i32, i32) {
    %c0_i32 = arith.constant 0 : i32
    %c0_i32_0 = arith.constant 0 : i32
    %c0_i32_1 = arith.constant 0 : i32
    %c0_i32_2 = arith.constant 0 : i32
    return %c0_i32, %c0_i32_0, %c0_i32_1 : i32, i32, i32
  }
  func.func @transform_4(%arg0: i32) -> (i32, i32) {
    %c0_i32 = arith.constant 0 : i32
    %c0_i32_0 = arith.constant 0 : i32
    %c0_i32_1 = arith.constant 0 : i32
    return %c0_i32, %c0_i32_0 : i32, i32
  }
  func.func @transform_5(%arg0: i32) -> (i32, i32) {
    %c0_i32 = arith.constant 0 : i32
    %c0_i32_0 = arith.constant 0 : i32
    %c0_i32_1 = arith.constant 0 : i32
    return %c0_i32, %c0_i32_0 : i32, i32
  }
  func.func @transform_6(%arg0: i32) -> (i32, i32) {
    %c0_i32 = arith.constant 0 : i32
    %c0_i32_0 = arith.constant 0 : i32
    %c0_i32_1 = arith.constant 0 : i32
    return %c0_i32, %c0_i32_0 : i32, i32
  }
  func.func @transform_7(%arg0: i32) -> (i32, i32) {
    %c0_i32 = arith.constant 0 : i32
    %c0_i32_0 = arith.constant 0 : i32
    return %arg0, %c0_i32 : i32, i32
  }
}

</mosaic_0001>

<llo_original>
// kernel: tpu_custom_call.1
$region0: #{tpu_custom_call.1}
  #allocation0 [shape = 'u32[]', space=smem, size = 0x4, offset = 0x4, fixed_abs, tag = 'smem constant byte address 0x4 - core index']
  #allocation1 [shape = 'u32[144,128]{1,0:T(1,128)}', space=vmem, size = 0x12000, scoped, tag = 'internal scratch']
  #allocation2 [shape = 'f32[8,16,512]{2,1,0:T(8,128)}', space=vmem, size = 0x40000, scoped, tag = 'scratch operand']
  #allocation3 [shape = 'f32[8,16,128]{2,1,0:T(8,128)}', space=vmem, size = 0x10000, scoped, tag = 'scratch operand']
  %s0 = inlined_call_operand.hbm [shape: s32[8,16], index: 0, kind: input, shape index: {}]
  %s1 = inlined_call_operand.hbm [shape: f32[128,512], index: 1, kind: input, shape index: {}]
  %s2 = inlined_call_operand.hbm [shape: f32[128,512], index: 2, kind: input, shape index: {}]
  %s3 = inlined_call_operand.hbm [shape: f32[8,128,128], index: 3, kind: input, shape index: {}]
  %s4 = inlined_call_operand.vmem [shape: f32[1,128], index: 4, kind: input, shape index: {}]
  %s5 = inlined_call_operand.hbm [shape: f32[128,128], index: 5, kind: input, shape index: {}]
  %s6 = inlined_call_operand.vmem [shape: f32[1,128], index: 6, kind: input, shape index: {}]
  %s7 = inlined_call_operand.hbm [shape: f32[16,128], index: 7, kind: output, shape index: {}]
  %s8 = sld [smem:[#allocation0]]
  $region58: #{tpu_custom_call.1} parent=0
    _
  %s10 = ssub.s32 1, %s8
  %s11 = scalar_select 0, %s10, %s8
  $region1: #{tpu_custom_call.1} parent=0
    #allocation4 [shape = 'u8[4096]{0}', space=vmem, size = 0x1000, scoped, tag = 'input window, operand 0, single buffered']
    #allocation5 [shape = 's32[1]{0}', space=sflag, size = 0x4, scoped, tag = 'scoped memory for tpu_custom_call.1']
    #allocation6 [shape = 's32[1]{0}', space=sflag, size = 0x4, scoped, tag = 'scoped memory for tpu_custom_call.1']
    #allocation7 [shape = 'u8[262144]{0}', space=vmem, size = 0x40000, scoped, tag = 'input window, operand 1, single buffered']
    #allocation8 [shape = 's32[1]{0}', space=sflag, size = 0x4, scoped, tag = 'scoped memory for tpu_custom_call.1']
    #allocation9 [shape = 'u8[262144]{0}', space=vmem, size = 0x40000, scoped, tag = 'input window, operand 2, single buffered']
    #allocation10 [shape = 'u8[524288]{0}', space=vmem, size = 0x80000, scoped, tag = 'input window, operand 3, single buffered']
    #allocation11 [shape = 's32[1]{0}', space=sflag, size = 0x4, scoped, tag = 'scoped memory for tpu_custom_call.1']
    #allocation12 [shape = 'u8[65536]{0}', space=vmem, size = 0x10000, scoped, tag = 'input window, operand 5, single buffered']
    #allocation13 [shape = 'u8[8192]{0}', space=vmem, size = 0x2000, scoped, tag = 'output window, operand 0, single buffered']
    %12 = vsyncpa [#allocation5], 0
    %13 = vsyncpa [#allocation8], 0
    %14 = vsyncpa [#allocation11], 0
    %15 = vsyncpa [#allocation6], 0
    // Predicated region
    $region2: #{tpu_custom_call.1} parent=1 // pred_check
      _
    $region3: #{tpu_custom_call.1} parent=1 // pred_check_branch
      %17 = sbr.rel (0) target = $region5
    $region4: #{tpu_custom_call.1} parent=1 // pred_region
      %s19 = ssub.s32 128, 128
      %20 = vsyncadd [#allocation5], %s19
      %s22 = sshll.u32 [#allocation4], 4
      %s23 = int_to_ptr.vmem [resolvable:$true] %s22
      %25 = dma.hbm_to_vmem [thread:$0]  %s0, 128, %s23, [#allocation5]
    $region5: #{tpu_custom_call.1} parent=1 // pred_fallthru
      _
    // Predicated region
    $region6: #{tpu_custom_call.1} parent=1 // pred_check
      _
    $region7: #{tpu_custom_call.1} parent=1 // pred_check_branch
      %27 = sbr.rel (0) target = $region9
    $region8: #{tpu_custom_call.1} parent=1 // pred_region
      %s29 = ssub.s32 8192, 8192
      %30 = vsyncadd [#allocation8], %s29
      %s31 = sshll.u32 [#allocation7], 4
      %s32 = int_to_ptr.vmem [resolvable:$true] %s31
      %37 = dma.hbm_to_vmem [thread:$0]  %s1, 8192, %s32, [#allocation8], 512, 512, 32
    $region9: #{tpu_custom_call.1} parent=1 // pred_fallthru
      _
    // Predicated region
    $region10: #{tpu_custom_call.1} parent=1 // pred_check
      _
    $region11: #{tpu_custom_call.1} parent=1 // pred_check_branch
      %39 = sbr.rel (0) target = $region13
    $region12: #{tpu_custom_call.1} parent=1 // pred_region
      %s41 = ssub.s32 8192, 8192
      %42 = vsyncadd [#allocation8], %s41
      %s43 = sshll.u32 [#allocation9], 4
      %s44 = int_to_ptr.vmem [resolvable:$true] %s43
      %49 = dma.hbm_to_vmem [thread:$0]  %s2, 8192, %s44, [#allocation8], 512, 512, 32
    $region13: #{tpu_custom_call.1} parent=1 // pred_fallthru
      _
    // Predicated region
    $region14: #{tpu_custom_call.1} parent=1 // pred_check
      _
    $region15: #{tpu_custom_call.1} parent=1 // pred_check_branch
      %51 = sbr.rel (0) target = $region17
    $region16: #{tpu_custom_call.1} parent=1 // pred_region
      %s53 = ssub.s32 16384, 16384
      %54 = vsyncadd [#allocation11], %s53
      %s55 = sshll.u32 [#allocation10], 4
      %s56 = int_to_ptr.vmem [resolvable:$true] %s55
      %61 = dma.hbm_to_vmem [thread:$0]  %s3, 16384, %s56, [#allocation11], 128, 128, 8
    $region17: #{tpu_custom_call.1} parent=1 // pred_fallthru
      _
    // Predicated region
    $region18: #{tpu_custom_call.1} parent=1 // pred_check
      _
    $region19: #{tpu_custom_call.1} parent=1 // pred_check_branch
      %63 = sbr.rel (0) target = $region21
    $region20: #{tpu_custom_call.1} parent=1 // pred_region
      _
    $region21: #{tpu_custom_call.1} parent=1 // pred_fallthru
      _
    // Predicated region
    $region22: #{tpu_custom_call.1} parent=1 // pred_check
      _
    $region23: #{tpu_custom_call.1} parent=1 // pred_check_branch
      %65 = sbr.rel (0) target = $region25
    $region24: #{tpu_custom_call.1} parent=1 // pred_region
      %s67 = ssub.s32 2048, 2048
      %68 = vsyncadd [#allocation11], %s67
      %s69 = sshll.u32 [#allocation12], 4
      %s70 = int_to_ptr.vmem [resolvable:$true] %s69
      %75 = dma.hbm_to_vmem [thread:$0]  %s5, 2048, %s70, [#allocation11], 128, 128, 8
    $region25: #{tpu_custom_call.1} parent=1 // pred_fallthru
      _
    // Predicated region
    $region26: #{tpu_custom_call.1} parent=1 // pred_check
      _
    $region27: #{tpu_custom_call.1} parent=1 // pred_check_branch
      %77 = sbr.rel (0) target = $region29
    $region28: #{tpu_custom_call.1} parent=1 // pred_region
      _
    $region29: #{tpu_custom_call.1} parent=1 // pred_fallthru
      _
    // Predicated region
    $region30: #{tpu_custom_call.1} parent=1 // pred_check
      _
    $region31: #{tpu_custom_call.1} parent=1 // pred_check_branch
      %79 = sbr.rel (0) target = $region33
    $region32: #{tpu_custom_call.1} parent=1 // pred_region
      %80 = dma.done [#allocation5], 128
    $region33: #{tpu_custom_call.1} parent=1 // pred_fallthru
      _
    // Predicated region
    $region34: #{tpu_custom_call.1} parent=1 // pred_check
      _
    $region35: #{tpu_custom_call.1} parent=1 // pred_check_branch
      %82 = sbr.rel (0) target = $region37
    $region36: #{tpu_custom_call.1} parent=1 // pred_region
      %83 = dma.done [#allocation8], 8192
    $region37: #{tpu_custom_call.1} parent=1 // pred_fallthru
      _
    // Predicated region
    $region38: #{tpu_custom_call.1} parent=1 // pred_check
      _
    $region39: #{tpu_custom_call.1} parent=1 // pred_check_branch
      %85 = sbr.rel (0) target = $region41
    $region40: #{tpu_custom_call.1} parent=1 // pred_region
      %86 = dma.done [#allocation8], 8192
    $region41: #{tpu_custom_call.1} parent=1 // pred_fallthru
      _
    // Predicated region
    $region42: #{tpu_custom_call.1} parent=1 // pred_check
      _
    $region43: #{tpu_custom_call.1} parent=1 // pred_check_branch
      %88 = sbr.rel (0) target = $region45
    $region44: #{tpu_custom_call.1} parent=1 // pred_region
      %89 = dma.done [#allocation11], 16384
    $region45: #{tpu_custom_call.1} parent=1 // pred_fallthru
      _
    // Predicated region
    $region46: #{tpu_custom_call.1} parent=1 // pred_check
      _
    $region47: #{tpu_custom_call.1} parent=1 // pred_check_branch
      %91 = sbr.rel (0) target = $region49
    $region48: #{tpu_custom_call.1} parent=1 // pred_region
      %92 = dma.done [#allocation11], 2048
    $region49: #{tpu_custom_call.1} parent=1 // pred_fallthru
      _
    %v93 = vld [vmem:[#allocation4] sm:$0xff]
    %v94 = vlaneseq
    %v95 = vshrl.u32 %v94, 7
    %v96 = vsub.s32 0, %v95
    %v97 = vrot.slane %v93, %v96
    %99 = vbcast.lane.b32.xlu0 %v97, 256
    %v100 = vpop.permute.xlu0 %99
    %s102 = sor.u32 256, 8
    %103 = vbcast.lane.b32.xlu0 %v97, %s102
    %v104 = vpop.permute.xlu0 %103
    %v105 = vlaneseq
    %v106 = vshrl.u32 %v105, 7
    %v107 = vsub.s32 1, %v106
    %v108 = vrot.slane %v93, %v107
    %110 = vbcast.lane.b32.xlu0 %v108, 256
    %v111 = vpop.permute.xlu0 %110
    %s113 = sor.u32 256, 8
    %114 = vbcast.lane.b32.xlu0 %v108, %s113
    %v115 = vpop.permute.xlu0 %114
    %v116 = vlaneseq
    %v117 = vshrl.u32 %v116, 7
    %v118 = vsub.s32 2, %v117
    %v119 = vrot.slane %v93, %v118
    %121 = vbcast.lane.b32.xlu0 %v119, 256
    %v122 = vpop.permute.xlu0 %121
    %s124 = sor.u32 256, 8
    %125 = vbcast.lane.b32.xlu0 %v119, %s124
    %v126 = vpop.permute.xlu0 %125
    %v127 = vlaneseq
    %v128 = vshrl.u32 %v127, 7
    %v129 = vsub.s32 3, %v128
    %v130 = vrot.slane %v93, %v129
    %132 = vbcast.lane.b32.xlu0 %v130, 256
    %v133 = vpop.permute.xlu0 %132
    %s135 = sor.u32 256, 8
    %136 = vbcast.lane.b32.xlu0 %v130, %s135
    %v137 = vpop.permute.xlu0 %136
    %v138 = vlaneseq
    %v139 = vshrl.u32 %v138, 7
    %v140 = vsub.s32 4, %v139
    %v141 = vrot.slane %v93, %v140
    %143 = vbcast.lane.b32.xlu0 %v141, 256
    %v144 = vpop.permute.xlu0 %143
    %s146 = sor.u32 256, 8
    %147 = vbcast.lane.b32.xlu0 %v141, %s146
    %v148 = vpop.permute.xlu0 %147
    %v149 = vlaneseq
    %v150 = vshrl.u32 %v149, 7
    %v151 = vsub.s32 5, %v150
    %v152 = vrot.slane %v93, %v151
    %154 = vbcast.lane.b32.xlu0 %v152, 256
    %v155 = vpop.permute.xlu0 %154
    %s157 = sor.u32 256, 8
    %158 = vbcast.lane.b32.xlu0 %v152, %s157
    %v159 = vpop.permute.xlu0 %158
    %v160 = vlaneseq
    %v161 = vshrl.u32 %v160, 7
    %v162 = vsub.s32 6, %v161
    %v163 = vrot.slane %v93, %v162
    %165 = vbcast.lane.b32.xlu0 %v163, 256
    %v166 = vpop.permute.xlu0 %165
    %s168 = sor.u32 256, 8
    %169 = vbcast.lane.b32.xlu0 %v163, %s168
    %v170 = vpop.permute.xlu0 %169
    %v171 = vlaneseq
    %v172 = vshrl.u32 %v171, 7
    %v173 = vsub.s32 7, %v172
    %v174 = vrot.slane %v93, %v173
    %176 = vbcast.lane.b32.xlu0 %v174, 256
    %v177 = vpop.permute.xlu0 %176
    %s179 = sor.u32 256, 8
    %180 = vbcast.lane.b32.xlu0 %v174, %s179
    %v181 = vpop.permute.xlu0 %180
    %v182 = vlaneseq
    %v183 = vand.u32 %v182, 127
    %vm184 = vcmp.eq.s32.totalorder %v100, %v183
    %vm185 = vcmp.eq.s32.totalorder %v104, %v183
    %vm186 = vcmp.eq.s32.totalorder %v111, %v183
    %vm187 = vcmp.eq.s32.totalorder %v115, %v183
    %vm188 = vcmp.eq.s32.totalorder %v122, %v183
    %vm189 = vcmp.eq.s32.totalorder %v126, %v183
    %vm190 = vcmp.eq.s32.totalorder %v133, %v183
    %vm191 = vcmp.eq.s32.totalorder %v137, %v183
    %vm192 = vcmp.eq.s32.totalorder %v144, %v183
    %vm193 = vcmp.eq.s32.totalorder %v148, %v183
    %vm194 = vcmp.eq.s32.totalorder %v155, %v183
    %vm195 = vcmp.eq.s32.totalorder %v159, %v183
    %vm196 = vcmp.eq.s32.totalorder %v166, %v183
    %vm197 = vcmp.eq.s32.totalorder %v170, %v183
    %vm198 = vcmp.eq.s32.totalorder %v177, %v183
    %vm199 = vcmp.eq.s32.totalorder %v181, %v183
    %v200 = vsel %vm184, 1, 0
    %v201 = vsel %vm185, 1, 0
    %v202 = vsel %vm186, 1, 0
    %v203 = vsel %vm187, 1, 0
    %v204 = vsel %vm188, 1, 0
    %v205 = vsel %vm189, 1, 0
    %v206 = vsel %vm190, 1, 0
    %v207 = vsel %vm191, 1, 0
    %v208 = vsel %vm192, 1, 0
    %v209 = vsel %vm193, 1, 0
    %v210 = vsel %vm194, 1, 0
    %v211 = vsel %vm195, 1, 0
    %v212 = vsel %vm196, 1, 0
    %v213 = vsel %vm197, 1, 0
    %v214 = vsel %vm198, 1, 0
    %v215 = vsel %vm199, 1, 0
    %v216 = vcvt.s32.f32 %v200
    %v217 = vcvt.s32.f32 %v201
    %v218 = vcvt.s32.f32 %v202
    %v219 = vcvt.s32.f32 %v203
    %v220 = vcvt.s32.f32 %v204
    %v221 = vcvt.s32.f32 %v205
    %v222 = vcvt.s32.f32 %v206
    %v223 = vcvt.s32.f32 %v207
    %v224 = vcvt.s32.f32 %v208
    %v225 = vcvt.s32.f32 %v209
    %v226 = vcvt.s32.f32 %v210
    %v227 = vcvt.s32.f32 %v211
    %v228 = vcvt.s32.f32 %v212
    %v229 = vcvt.s32.f32 %v213
    %v230 = vcvt.s32.f32 %v214
    %v231 = vcvt.s32.f32 %v215
    %v232 = vld [vmem:[#allocation7] sm:$0xff]
    %v233 = vld [vmem:[#allocation7 + $0x8] sm:$0xff]
    %v234 = vld [vmem:[#allocation7 + $0x10] sm:$0xff]
    %v235 = vld [vmem:[#allocation7 + $0x18] sm:$0xff]
    %v236 = vld [vmem:[#allocation7 + $0x20] sm:$0xff]
    %v237 = vld [vmem:[#allocation7 + $0x28] sm:$0xff]
    %v238 = vld [vmem:[#allocation7 + $0x30] sm:$0xff]
    %v239 = vld [vmem:[#allocation7 + $0x38] sm:$0xff]
    %v240 = vld [vmem:[#allocation7 + $0x40] sm:$0xff]
    %v241 = vld [vmem:[#allocation7 + $0x48] sm:$0xff]
    %v242 = vld [vmem:[#allocation7 + $0x50] sm:$0xff]
    %v243 = vld [vmem:[#allocation7 + $0x58] sm:$0xff]
    %v244 = vld [vmem:[#allocation7 + $0x60] sm:$0xff]
    %v245 = vld [vmem:[#allocation7 + $0x68] sm:$0xff]
    %v246 = vld [vmem:[#allocation7 + $0x70] sm:$0xff]
    %v247 = vld [vmem:[#allocation7 + $0x78] sm:$0xff]
    %v248 = vld [vmem:[#allocation7 + $0x80] sm:$0xff]
    %v249 = vld [vmem:[#allocation7 + $0x88] sm:$0xff]
    %v250 = vld [vmem:[#allocation7 + $0x90] sm:$0xff]
    %v251 = vld [vmem:[#allocation7 + $0x98] sm:$0xff]
    %v252 = vld [vmem:[#allocation7 + $0xa0] sm:$0xff]
    %v253 = vld [vmem:[#allocation7 + $0xa8] sm:$0xff]
    %v254 = vld [vmem:[#allocation7 + $0xb0] sm:$0xff]
    %v255 = vld [vmem:[#allocation7 + $0xb8] sm:$0xff]
    %v256 = vld [vmem:[#allocation7 + $0xc0] sm:$0xff]
    %v257 = vld [vmem:[#allocation7 + $0xc8] sm:$0xff]
    %v258 = vld [vmem:[#allocation7 + $0xd0] sm:$0xff]
    %v259 = vld [vmem:[#allocation7 + $0xd8] sm:$0xff]
    %v260 = vld [vmem:[#allocation7 + $0xe0] sm:$0xff]
    %v261 = vld [vmem:[#allocation7 + $0xe8] sm:$0xff]
    %v262 = vld [vmem:[#allocation7 + $0xf0] sm:$0xff]
    %v263 = vld [vmem:[#allocation7 + $0xf8] sm:$0xff]
    %v264 = vld [vmem:[#allocation7 + $0x100] sm:$0xff]
    %v265 = vld [vmem:[#allocation7 + $0x108] sm:$0xff]
    %v266 = vld [vmem:[#allocation7 + $0x110] sm:$0xff]
    %v267 = vld [vmem:[#allocation7 + $0x118] sm:$0xff]
    %v268 = vld [vmem:[#allocation7 + $0x120] sm:$0xff]
    %v269 = vld [vmem:[#allocation7 + $0x128] sm:$0xff]
    %v270 = vld [vmem:[#allocation7 + $0x130] sm:$0xff]
    %v271 = vld [vmem:[#allocation7 + $0x138] sm:$0xff]
    %v272 = vld [vmem:[#allocation7 + $0x140] sm:$0xff]
    %v273 = vld [vmem:[#allocation7 + $0x148] sm:$0xff]
    %v274 = vld [vmem:[#allocation7 + $0x150] sm:$0xff]
    %v275 = vld [vmem:[#allocation7 + $0x158] sm:$0xff]
    %v276 = vld [vmem:[#allocation7 + $0x160] sm:$0xff]
    %v277 = vld [vmem:[#allocation7 + $0x168] sm:$0xff]
    %v278 = vld [vmem:[#allocation7 + $0x170] sm:$0xff]
    %v279 = vld [vmem:[#allocation7 + $0x178] sm:$0xff]
    %v280 = vld [vmem:[#allocation7 + $0x180] sm:$0xff]
    %v281 = vld [vmem:[#allocation7 + $0x188] sm:$0xff]
    %v282 = vld [vmem:[#allocation7 + $0x190] sm:$0xff]
    %v283 = vld [vmem:[#allocation7 + $0x198] sm:$0xff]
    %v284 = vld [vmem:[#allocation7 + $0x1a0] sm:$0xff]
    %v285 = vld [vmem:[#allocation7 + $0x1a8] sm:$0xff]
    %v286 = vld [vmem:[#allocation7 + $0x1b0] sm:$0xff]
    %v287 = vld [vmem:[#allocation7 + $0x1b8] sm:$0xff]
    %v288 = vld [vmem:[#allocation7 + $0x1c0] sm:$0xff]
    %v289 = vld [vmem:[#allocation7 + $0x1c8] sm:$0xff]
    %v290 = vld [vmem:[#allocation7 + $0x1d0] sm:$0xff]
    %v291 = vld [vmem:[#allocation7 + $0x1d8] sm:$0xff]
    %v292 = vld [vmem:[#allocation7 + $0x1e0] sm:$0xff]
    %v293 = vld [vmem:[#allocation7 + $0x1e8] sm:$0xff]
    %v294 = vld [vmem:[#allocation7 + $0x1f0] sm:$0xff]
    %v295 = vld [vmem:[#allocation7 + $0x1f8] sm:$0xff]
    %296 = vmatprep.subr.mxu0 %v233
    %297 = vmatpush1.msra.mxu0 %v232
    %298 = vmatprep.subr.mxu0 %v237
    %299 = vmatpush1.msra.mxu0 %v236
    %300 = vmatprep.subr.mxu0 %v241
    %301 = vmatpush1.msra.mxu0 %v240
    %302 = vmatprep.subr.mxu0 %v245
    %303 = vmatpush1.msra.mxu0 %v244
    %304 = vmatprep.subr.mxu0 %v249
    %305 = vmatpush1.msra.mxu0 %v248
    %306 = vmatprep.subr.mxu0 %v253
    %307 = vmatpush1.msra.mxu0 %v252
    %308 = vmatprep.subr.mxu0 %v257
    %309 = vmatpush1.msra.mxu0 %v256
    %310 = vmatprep.subr.mxu0 %v261
    %311 = vmatpush1.msra.mxu0 %v260
    %312 = vmatprep.subr.mxu0 %v265
    %313 = vmatpush1.msra.mxu0 %v264
    %314 = vmatprep.subr.mxu0 %v269
    %315 = vmatpush1.msra.mxu0 %v268
    %316 = vmatprep.subr.mxu0 %v273
    %317 = vmatpush1.msra.mxu0 %v272
    %318 = vmatprep.subr.mxu0 %v277
    %319 = vmatpush1.msra.mxu0 %v276
    %320 = vmatprep.subr.mxu0 %v281
    %321 = vmatpush1.msra.mxu0 %v280
    %322 = vmatprep.subr.mxu0 %v285
    %323 = vmatpush1.msra.mxu0 %v284
    %324 = vmatprep.subr.mxu0 %v289
    %325 = vmatpush1.msra.mxu0 %v288
    %326 = vmatprep.subr.mxu0 %v293
    %327 = vmatpush1.msra.mxu0 %v292
    %328 = vmatprep.subr.mxu0 0.0
    %329 = vmatpush1.msra.mxu0 0.0
    %330 = vmatprep.subr.mxu0 0.0
    %331 = vmatpush1.msra.mxu0 0.0
    %332 = vmatprep.subr.mxu0 0.0
    %333 = vmatpush1.msra.mxu0 0.0
    %334 = vmatprep.subr.mxu0 0.0
    %335 = vmatpush1.msra.mxu0 0.0
    %336 = vmatprep.subr.mxu0 0.0
    %337 = vmatpush1.msra.mxu0 0.0
    %338 = vmatprep.subr.mxu0 0.0
    %339 = vmatpush1.msra.mxu0 0.0
    %340 = vmatprep.subr.mxu0 0.0
    %341 = vmatpush1.msra.mxu0 0.0
    %342 = vmatprep.subr.mxu0 0.0
    %343 = vmatpush1.msra.mxu0 0.0
    %344 = vmatprep.subr.mxu0 0.0
    %345 = vmatpush1.msra.mxu0 0.0
    %346 = vmatprep.subr.mxu0 0.0
    %347 = vmatpush1.msra.mxu0 0.0
    %348 = vmatprep.subr.mxu0 0.0
    %349 = vmatpush1.msra.mxu0 0.0
    %350 = vmatprep.subr.mxu0 0.0
    %351 = vmatpush1.msra.mxu0 0.0
    %352 = vmatprep.subr.mxu0 0.0
    %353 = vmatpush1.msra.mxu0 0.0
    %354 = vmatprep.subr.mxu0 0.0
    %355 = vmatpush1.msra.mxu0 0.0
    %356 = vmatprep.subr.mxu0 0.0
    %357 = vmatpush1.msra.mxu0 0.0
    %358 = vmatprep.subr.mxu0 0.0
    %359 = vmatpush1.msra.mxu0 0.0
    %360 = vmatprep.mubr.f32.mxu0 0.0
    %361 = vmatmul.mubr.f32.gmra.mrb[0].mxu0 %v216
    %v362 = vpop.f32.mrb[0].mxu0
    %v363 = vadd.f32 0.0, %v362
    %v364 = vpop.f32.mrb[0].mxu0
    %v365 = vadd.f32 0.0, %v364
    %366 = vmatprep.mubr.f32.mxu0 0.0
    %367 = vmatmul.mubr.f32.gmra.mrb[0].mxu0 %v217
    %v368 = vpop.f32.mrb[0].mxu0
    %v369 = vadd.f32 0.0, %v368
    %v370 = vpop.f32.mrb[0].mxu0
    %v371 = vadd.f32 0.0, %v370
    %372 = vmatprep.mubr.f32.mxu0 0.0
    %373 = vmatmul.mubr.f32.gmra.mrb[0].mxu0 %v218
    %v374 = vpop.f32.mrb[0].mxu0
    %v375 = vadd.f32 0.0, %v374
    %v376 = vpop.f32.mrb[0].mxu0
    %v377 = vadd.f32 0.0, %v376
    %378 = vmatprep.mubr.f32.mxu0 0.0
    %379 = vmatmul.mubr.f32.gmra.mrb[0].mxu0 %v219
    %v380 = vpop.f32.mrb[0].mxu0
    %v381 = vadd.f32 0.0, %v380
    %v382 = vpop.f32.mrb[0].mxu0
    %v383 = vadd.f32 0.0, %v382
    %384 = vmatprep.mubr.f32.mxu0 0.0
    %385 = vmatmul.mubr.f32.gmra.mrb[0].mxu0 %v220
    %v386 = vpop.f32.mrb[0].mxu0
    %v387 = vadd.f32 0.0, %v386
    %v388 = vpop.f32.mrb[0].mxu0
    %v389 = vadd.f32 0.0, %v388
    %390 = vmatprep.mubr.f32.mxu0 0.0
    %391 = vmatmul.mubr.f32.gmra.mrb[0].mxu0 %v221
    %v392 = vpop.f32.mrb[0].mxu0
    %v393 = vadd.f32 0.0, %v392
    %v394 = vpop.f32.mrb[0].mxu0
    %v395 = vadd.f32 0.0, %v394
    %396 = vmatprep.mubr.f32.mxu0 0.0
    %397 = vmatmul.mubr.f32.gmra.mrb[0].mxu0 %v222
    %v398 = vpop.f32.mrb[0].mxu0
    %v399 = vadd.f32 0.0, %v398
    %v400 = vpop.f32.mrb[0].mxu0
    %v401 = vadd.f32 0.0, %v400
    %402 = vmatprep.mubr.f32.mxu0 0.0
    %403 = vmatmul.mubr.f32.gmra.mrb[0].mxu0 %v223
    %v404 = vpop.f32.mrb[0].mxu0
    %v405 = vadd.f32 0.0, %v404
    %v406 = vpop.f32.mrb[0].mxu0
    %v407 = vadd.f32 0.0, %v406
    %408 = vmatprep.mubr.f32.mxu0 0.0
    %409 = vmatmul.mubr.f32.gmra.mrb[0].mxu0 %v224
    %v410 = vpop.f32.mrb[0].mxu0
    %v411 = vadd.f32 0.0, %v410
    %v412 = vpop.f32.mrb[0].mxu0
    %v413 = vadd.f32 0.0, %v412
    %414 = vmatprep.mubr.f32.mxu0 0.0
    %415 = vmatmul.mubr.f32.gmra.mrb[0].mxu0 %v225
    %v416 = vpop.f32.mrb[0].mxu0
    %v417 = vadd.f32 0.0, %v416
    %v418 = vpop.f32.mrb[0].mxu0
    %v419 = vadd.f32 0.0, %v418
    %420 = vmatprep.mubr.f32.mxu0 0.0
    %421 = vmatmul.mubr.f32.gmra.mrb[0].mxu0 %v226
    %v422 = vpop.f32.mrb[0].mxu0
    %v423 = vadd.f32 0.0, %v422
    %v424 = vpop.f32.mrb[0].mxu0
    %v425 = vadd.f32 0.0, %v424
    %426 = vmatprep.mubr.f32.mxu0 0.0
    %427 = vmatmul.mubr.f32.gmra.mrb[0].mxu0 %v227
    %v428 = vpop.f32.mrb[0].mxu0
    %v429 = vadd.f32 0.0, %v428
    %v430 = vpop.f32.mrb[0].mxu0
    %v431 = vadd.f32 0.0, %v430
    %432 = vmatprep.mubr.f32.mxu0 0.0
    %433 = vmatmul.mubr.f32.gmra.mrb[0].mxu0 %v228
    %v434 = vpop.f32.mrb[0].mxu0
    %v435 = vadd.f32 0.0, %v434
    %v436 = vpop.f32.mrb[0].mxu0
    %v437 = vadd.f32 0.0, %v436
    %438 = vmatprep.mubr.f32.mxu0 0.0
    %439 = vmatmul.mubr.f32.gmra.mrb[0].mxu0 %v229
    %v440 = vpop.f32.mrb[0].mxu0
    %v441 = vadd.f32 0.0, %v440
    %v442 = vpop.f32.mrb[0].mxu0
    %v443 = vadd.f32 0.0, %v442
    %444 = vmatprep.mubr.f32.mxu0 0.0
    %445 = vmatmul.mubr.f32.gmra.mrb[0].mxu0 %v230
    %v446 = vpop.f32.mrb[0].mxu0
    %v447 = vadd.f32 0.0, %v446
    %v448 = vpop.f32.mrb[0].mxu0
    %v449 = vadd.f32 0.0, %v448
    %450 = vmatprep.mubr.f32.mxu0 0.0
    %451 = vmatmul.mubr.f32.gmra.mrb[0].mxu0 %v231
    %v452 = vpop.f32.mrb[0].mxu0
    %v453 = vadd.f32 0.0, %v452
    %v454 = vpop.f32.mrb[0].mxu0
    %v455 = vadd.f32 0.0, %v454
    %456 = vdwg.mxu0
    %457 = vmatprep.subr.mxu0 %v235
    %458 = vmatpush1.msra.mxu0 %v234
    %459 = vmatprep.subr.mxu0 %v239
    %460 = vmatpush1.msra.mxu0 %v238
    %461 = vmatprep.subr.mxu0 %v243
    %462 = vmatpush1.msra.mxu0 %v242
    %463 = vmatprep.subr.mxu0 %v247
    %464 = vmatpush1.msra.mxu0 %v246
    %465 = vmatprep.subr.mxu0 %v251
    %466 = vmatpush1.msra.mxu0 %v250
    %467 = vmatprep.subr.mxu0 %v255
    %468 = vmatpush1.msra.mxu0 %v254
    %469 = vmatprep.subr.mxu0 %v259
    %470 = vmatpush1.msra.mxu0 %v258
    %471 = vmatprep.subr.mxu0 %v263
    %472 = vmatpush1.msra.mxu0 %v262
    %473 = vmatprep.subr.mxu0 %v267
    %474 = vmatpush1.msra.mxu0 %v266
    %475 = vmatprep.subr.mxu0 %v271
    %476 = vmatpush1.msra.mxu0 %v270
    %477 = vmatprep.subr.mxu0 %v275
    %478 = vmatpush1.msra.mxu0 %v274
    %479 = vmatprep.subr.mxu0 %v279
    %480 = vmatpush1.msra.mxu0 %v278
    %481 = vmatprep.subr.mxu0 %v283
    %482 = vmatpush1.msra.mxu0 %v282
    %483 = vmatprep.subr.mxu0 %v287
    %484 = vmatpush1.msra.mxu0 %v286
    %485 = vmatprep.subr.mxu0 %v291
    %486 = vmatpush1.msra.mxu0 %v290
    %487 = vmatprep.subr.mxu0 %v295
    %488 = vmatpush1.msra.mxu0 %v294
    %489 = vmatprep.subr.mxu0 0.0
    %490 = vmatpush1.msra.mxu0 0.0
    %491 = vmatprep.subr.mxu0 0.0
    %492 = vmatpush1.msra.mxu0 0.0
    %493 = vmatprep.subr.mxu0 0.0
    %494 = vmatpush1.msra.mxu0 0.0
    %495 = vmatprep.subr.mxu0 0.0
    %496 = vmatpush1.msra.mxu0 0.0
    %497 = vmatprep.subr.mxu0 0.0
    %498 = vmatpush1.msra.mxu0 0.0
    %499 = vmatprep.subr.mxu0 0.0
    %500 = vmatpush1.msra.mxu0 0.0
    %501 = vmatprep.subr.mxu0 0.0
    %502 = vmatpush1.msra.mxu0 0.0
    %503 = vmatprep.subr.mxu0 0.0
    %504 = vmatpush1.msra.mxu0 0.0
    %505 = vmatprep.subr.mxu0 0.0
    %506 = vmatpush1.msra.mxu0 0.0
    %507 = vmatprep.subr.mxu0 0.0
    %508 = vmatpush1.msra.mxu0 0.0
    %509 = vmatprep.subr.mxu0 0.0
    %510 = vmatpush1.msra.mxu0 0.0
    %511 = vmatprep.subr.mxu0 0.0
    %512 = vmatpush1.msra.mxu0 0.0
    %513 = vmatprep.subr.mxu0 0.0
    %514 = vmatpush1.msra.mxu0 0.0
    %515 = vmatprep.subr.mxu0 0.0
    %516 = vmatpush1.msra.mxu0 0.0
    %517 = vmatprep.subr.mxu0 0.0
    %518 = vmatpush1.msra.mxu0 0.0
    %519 = vmatprep.subr.mxu0 0.0
    %520 = vmatpush1.msra.mxu0 0.0
    %521 = vmatprep.mubr.f32.mxu0 0.0
    %522 = vmatmul.mubr.f32.gmra.mrb[0].mxu0 %v216
    %v523 = vpop.f32.mrb[0].mxu0
    %v524 = vadd.f32 0.0, %v523
    %v525 = vpop.f32.mrb[0].mxu0
    %v526 = vadd.f32 0.0, %v525
    %527 = vmatprep.mubr.f32.mxu0 0.0
    %528 = vmatmul.mubr.f32.gmra.mrb[0].mxu0 %v217
    %v529 = vpop.f32.mrb[0].mxu0
    %v530 = vadd.f32 0.0, %v529
    %v531 = vpop.f32.mrb[0].mxu0
    %v532 = vadd.f32 0.0, %v531
    %533 = vmatprep.mubr.f32.mxu0 0.0
    %534 = vmatmul.mubr.f32.gmra.mrb[0].mxu0 %v218
    %v535 = vpop.f32.mrb[0].mxu0
    %v536 = vadd.f32 0.0, %v535
    %v537 = vpop.f32.mrb[0].mxu0
    %v538 = vadd.f32 0.0, %v537
    %539 = vmatprep.mubr.f32.mxu0 0.0
    %540 = vmatmul.mubr.f32.gmra.mrb[0].mxu0 %v219
    %v541 = vpop.f32.mrb[0].mxu0
    %v542 = vadd.f32 0.0, %v541
    %v543 = vpop.f32.mrb[0].mxu0
    %v544 = vadd.f32 0.0, %v543
    %545 = vmatprep.mubr.f32.mxu0 0.0
    %546 = vmatmul.mubr.f32.gmra.mrb[0].mxu0 %v220
    %v547 = vpop.f32.mrb[0].mxu0
    %v548 = vadd.f32 0.0, %v547
    %v549 = vpop.f32.mrb[0].mxu0
    %v550 = vadd.f32 0.0, %v549
    %551 = vmatprep.mubr.f32.mxu0 0.0
    %552 = vmatmul.mubr.f32.gmra.mrb[0].mxu0 %v221
    %v553 = vpop.f32.mrb[0].mxu0
    %v554 = vadd.f32 0.0, %v553
    %v555 = vpop.f32.mrb[0].mxu0
    %v556 = vadd.f32 0.0, %v555
    %557 = vmatprep.mubr.f32.mxu0 0.0
    %558 = vmatmul.mubr.f32.gmra.mrb[0].mxu0 %v222
    %v559 = vpop.f32.mrb[0].mxu0
    %v560 = vadd.f32 0.0, %v559
    %v561 = vpop.f32.mrb[0].mxu0
    %v562 = vadd.f32 0.0, %v561
    %563 = vmatprep.mubr.f32.mxu0 0.0
    %564 = vmatmul.mubr.f32.gmra.mrb[0].mxu0 %v223
    %v565 = vpop.f32.mrb[0].mxu0
    %v566 = vadd.f32 0.0, %v565
    %v567 = vpop.f32.mrb[0].mxu0
    %v568 = vadd.f32 0.0, %v567
    %569 = vmatprep.mubr.f32.mxu0 0.0
    %570 = vmatmul.mubr.f32.gmra.mrb[0].mxu0 %v224
    %v571 = vpop.f32.mrb[0].mxu0
    %v572 = vadd.f32 0.0, %v571
    %v573 = vpop.f32.mrb[0].mxu0
    %v574 = vadd.f32 0.0, %v573
    %575 = vmatprep.mubr.f32.mxu0 0.0
    %576 = vmatmul.mubr.f32.gmra.mrb[0].mxu0 %v225
    %v577 = vpop.f32.mrb[0].mxu0
    %v578 = vadd.f32 0.0, %v577
    %v579 = vpop.f32.mrb[0].mxu0
    %v580 = vadd.f32 0.0, %v579
    %581 = vmatprep.mubr.f32.mxu0 0.0
    %582 = vmatmul.mubr.f32.gmra.mrb[0].mxu0 %v226
    %v583 = vpop.f32.mrb[0].mxu0
    %v584 = vadd.f32 0.0, %v583
    %v585 = vpop.f32.mrb[0].mxu0
    %v586 = vadd.f32 0.0, %v585
    %587 = vmatprep.mubr.f32.mxu0 0.0
    %588 = vmatmul.mubr.f32.gmra.mrb[0].mxu0 %v227
    %v589 = vpop.f32.mrb[0].mxu0
    %v590 = vadd.f32 0.0, %v589
    %v591 = vpop.f32.mrb[0].mxu0
    %v592 = vadd.f32 0.0, %v591
    %593 = vmatprep.mubr.f32.mxu0 0.0
    %594 = vmatmul.mubr.f32.gmra.mrb[0].mxu0 %v228
    %v595 = vpop.f32.mrb[0].mxu0
    %v596 = vadd.f32 0.0, %v595
    %v597 = vpop.f32.mrb[0].mxu0
    %v598 = vadd.f32 0.0, %v597
    %599 = vmatprep.mubr.f32.mxu0 0.0
    %600 = vmatmul.mubr.f32.gmra.mrb[0].mxu0 %v229
    %v601 = vpop.f32.mrb[0].mxu0
    %v602 = vadd.f32 0.0, %v601
    %v603 = vpop.f32.mrb[0].mxu0
    %v604 = vadd.f32 0.0, %v603
    %605 = vmatprep.mubr.f32.mxu0 0.0
    %606 = vmatmul.mubr.f32.gmra.mrb[0].mxu0 %v230
    %v607 = vpop.f32.mrb[0].mxu0
    %v608 = vadd.f32 0.0, %v607
    %v609 = vpop.f32.mrb[0].mxu0
    %v610 = vadd.f32 0.0, %v609
    %611 = vmatprep.mubr.f32.mxu0 0.0
    %612 = vmatmul.mubr.f32.gmra.mrb[0].mxu0 %v231
    %v613 = vpop.f32.mrb[0].mxu0
    %v614 = vadd.f32 0.0, %v613
    %v615 = vpop.f32.mrb[0].mxu0
    %v616 = vadd.f32 0.0, %v615
    %617 = vdwg.mxu0
    %618 = vst [vmem:[#allocation2] sm:$0xff] %v363
    %619 = vst [vmem:[#allocation2 + $0x8] sm:$0xff] %v365
    %620 = vst [vmem:[#allocation2 + $0x10] sm:$0xff] %v524
    %621 = vst [vmem:[#allocation2 + $0x18] sm:$0xff] %v526
    %622 = vst [vmem:[#allocation2 + $0x20] sm:$0xff] %v369
    %623 = vst [vmem:[#allocation2 + $0x28] sm:$0xff] %v371
    %624 = vst [vmem:[#allocation2 + $0x30] sm:$0xff] %v530
    %625 = vst [vmem:[#allocation2 + $0x38] sm:$0xff] %v532
    %626 = vst [vmem:[#allocation2 + $0x40] sm:$0xff] %v375
    %627 = vst [vmem:[#allocation2 + $0x48] sm:$0xff] %v377
    %628 = vst [vmem:[#allocation2 + $0x50] sm:$0xff] %v536
    %629 = vst [vmem:[#allocation2 + $0x58] sm:$0xff] %v538
    %630 = vst [vmem:[#allocation2 + $0x60] sm:$0xff] %v381
    %631 = vst [vmem:[#allocation2 + $0x68] sm:$0xff] %v383
    %632 = vst [vmem:[#allocation2 + $0x70] sm:$0xff] %v542
    %633 = vst [vmem:[#allocation2 + $0x78] sm:$0xff] %v544
    %634 = vst [vmem:[#allocation2 + $0x80] sm:$0xff] %v387
    %635 = vst [vmem:[#allocation2 + $0x88] sm:$0xff] %v389
    %636 = vst [vmem:[#allocation2 + $0x90] sm:$0xff] %v548
    %637 = vst [vmem:[#allocation2 + $0x98] sm:$0xff] %v550
    %638 = vst [vmem:[#allocation2 + $0xa0] sm:$0xff] %v393
    %639 = vst [vmem:[#allocation2 + $0xa8] sm:$0xff] %v395
    %640 = vst [vmem:[#allocation2 + $0xb0] sm:$0xff] %v554
    %641 = vst [vmem:[#allocation2 + $0xb8] sm:$0xff] %v556
    %642 = vst [vmem:[#allocation2 + $0xc0] sm:$0xff] %v399
    %643 = vst [vmem:[#allocation2 + $0xc8] sm:$0xff] %v401
    %644 = vst [vmem:[#allocation2 + $0xd0] sm:$0xff] %v560
    %645 = vst [vmem:[#allocation2 + $0xd8] sm:$0xff] %v562
    %646 = vst [vmem:[#allocation2 + $0xe0] sm:$0xff] %v405
    %647 = vst [vmem:[#allocation2 + $0xe8] sm:$0xff] %v407
    %648 = vst [vmem:[#allocation2 + $0xf0] sm:$0xff] %v566
    %649 = vst [vmem:[#allocation2 + $0xf8] sm:$0xff] %v568
    %650 = vst [vmem:[#allocation2 + $0x100] sm:$0xff] %v411
    %651 = vst [vmem:[#allocation2 + $0x108] sm:$0xff] %v413
    %652 = vst [vmem:[#allocation2 + $0x110] sm:$0xff] %v572
    %653 = vst [vmem:[#allocation2 + $0x118] sm:$0xff] %v574
    %654 = vst [vmem:[#allocation2 + $0x120] sm:$0xff] %v417
    %655 = vst [vmem:[#allocation2 + $0x128] sm:$0xff] %v419
    %656 = vst [vmem:[#allocation2 + $0x130] sm:$0xff] %v578
    %657 = vst [vmem:[#allocation2 + $0x138] sm:$0xff] %v580
    %658 = vst [vmem:[#allocation2 + $0x140] sm:$0xff] %v423
    %659 = vst [vmem:[#allocation2 + $0x148] sm:$0xff] %v425
    %660 = vst [vmem:[#allocation2 + $0x150] sm:$0xff] %v584
    %661 = vst [vmem:[#allocation2 + $0x158] sm:$0xff] %v586
    %662 = vst [vmem:[#allocation2 + $0x160] sm:$0xff] %v429
    %663 = vst [vmem:[#allocation2 + $0x168] sm:$0xff] %v431
    %664 = vst [vmem:[#allocation2 + $0x170] sm:$0xff] %v590
    %665 = vst [vmem:[#allocation2 + $0x178] sm:$0xff] %v592
    %666 = vst [vmem:[#allocation2 + $0x180] sm:$0xff] %v435
    %667 = vst [vmem:[#allocation2 + $0x188] sm:$0xff] %v437
    %668 = vst [vmem:[#allocation2 + $0x190] sm:$0xff] %v596
    %669 = vst [vmem:[#allocation2 + $0x198] sm:$0xff] %v598
    %670 = vst [vmem:[#allocation2 + $0x1a0] sm:$0xff] %v441
    %671 = vst [vmem:[#allocation2 + $0x1a8] sm:$0xff] %v443
    %672 = vst [vmem:[#allocation2 + $0x1b0] sm:$0xff] %v602
    %673 = vst [vmem:[#allocation2 + $0x1b8] sm:$0xff] %v604
    %674 = vst [vmem:[#allocation2 + $0x1c0] sm:$0xff] %v447
    %675 = vst [vmem:[#allocation2 + $0x1c8] sm:$0xff] %v449
    %676 = vst [vmem:[#allocation2 + $0x1d0] sm:$0xff] %v608
    %677 = vst [vmem:[#allocation2 + $0x1d8] sm:$0xff] %v610
    %678 = vst [vmem:[#allocation2 + $0x1e0] sm:$0xff] %v453
    %679 = vst [vmem:[#allocation2 + $0x1e8] sm:$0xff] %v455
    %680 = vst [vmem:[#allocation2 + $0x1f0] sm:$0xff] %v614
    %681 = vst [vmem:[#allocation2 + $0x1f8] sm:$0xff] %v616
    %v682 = vld [vmem:[#allocation9] sm:$0xff]
    %v683 = vld [vmem:[#allocation9 + $0x8] sm:$0xff]
    %v684 = vld [vmem:[#allocation9 + $0x10] sm:$0xff]
    %v685 = vld [vmem:[#allocation9 + $0x18] sm:$0xff]
    %v686 = vld [vmem:[#allocation9 + $0x20] sm:$0xff]
    %v687 = vld [vmem:[#allocation9 + $0x28] sm:$0xff]
    %v688 = vld [vmem:[#allocation9 + $0x30] sm:$0xff]
    %v689 = vld [vmem:[#allocation9 + $0x38] sm:$0xff]
    %v690 = vld [vmem:[#allocation9 + $0x40] sm:$0xff]
    %v691 = vld [vmem:[#allocation9 + $0x48] sm:$0xff]
    %v692 = vld [vmem:[#allocation9 + $0x50] sm:$0xff]
    %v693 = vld [vmem:[#allocation9 + $0x58] sm:$0xff]
    %v694 = vld [vmem:[#allocation9 + $0x60] sm:$0xff]
    %v695 = vld [vmem:[#allocation9 + $0x68] sm:$0xff]
    %v696 = vld [vmem:[#allocation9 + $0x70] sm:$0xff]
    %v697 = vld [vmem:[#allocation9 + $0x78] sm:$0xff]
    %v698 = vld [vmem:[#allocation9 + $0x80] sm:$0xff]
    %v699 = vld [vmem:[#allocation9 + $0x88] sm:$0xff]
    %v700 = vld [vmem:[#allocation9 + $0x90] sm:$0xff]
    %v701 = vld [vmem:[#allocation9 + $0x98] sm:$0xff]
    %v702 = vld [vmem:[#allocation9 + $0xa0] sm:$0xff]
    %v703 = vld [vmem:[#allocation9 + $0xa8] sm:$0xff]
    %v704 = vld [vmem:[#allocation9 + $0xb0] sm:$0xff]
    %v705 = vld [vmem:[#allocation9 + $0xb8] sm:$0xff]
    %v706 = vld [vmem:[#allocation9 + $0xc0] sm:$0xff]
    %v707 = vld [vmem:[#allocation9 + $0xc8] sm:$0xff]
    %v708 = vld [vmem:[#allocation9 + $0xd0] sm:$0xff]
    %v709 = vld [vmem:[#allocation9 + $0xd8] sm:$0xff]
    %v710 = vld [vmem:[#allocation9 + $0xe0] sm:$0xff]
    %v711 = vld [vmem:[#allocation9 + $0xe8] sm:$0xff]
    %v712 = vld [vmem:[#allocation9 + $0xf0] sm:$0xff]
    %v713 = vld [vmem:[#allocation9 + $0xf8] sm:$0xff]
    %v714 = vld [vmem:[#allocation9 + $0x100] sm:$0xff]
    %v715 = vld [vmem:[#allocation9 + $0x108] sm:$0xff]
    %v716 = vld [vmem:[#allocation9 + $0x110] sm:$0xff]
    %v717 = vld [vmem:[#allocation9 + $0x118] sm:$0xff]
    %v718 = vld [vmem:[#allocation9 + $0x120] sm:$0xff]
    %v719 = vld [vmem:[#allocation9 + $0x128] sm:$0xff]
    %v720 = vld [vmem:[#allocation9 + $0x130] sm:$0xff]
    %v721 = vld [vmem:[#allocation9 + $0x138] sm:$0xff]
    %v722 = vld [vmem:[#allocation9 + $0x140] sm:$0xff]
    %v723 = vld [vmem:[#allocation9 + $0x148] sm:$0xff]
    %v724 = vld [vmem:[#allocation9 + $0x150] sm:$0xff]
    %v725 = vld [vmem:[#allocation9 + $0x158] sm:$0xff]
    %v726 = vld [vmem:[#allocation9 + $0x160] sm:$0xff]
    %v727 = vld [vmem:[#allocation9 + $0x168] sm:$0xff]
    %v728 = vld [vmem:[#allocation9 + $0x170] sm:$0xff]
    %v729 = vld [vmem:[#allocation9 + $0x178] sm:$0xff]
    %v730 = vld [vmem:[#allocation9 + $0x180] sm:$0xff]
    %v731 = vld [vmem:[#allocation9 + $0x188] sm:$0xff]
    %v732 = vld [vmem:[#allocation9 + $0x190] sm:$0xff]
    %v733 = vld [vmem:[#allocation9 + $0x198] sm:$0xff]
    %v734 = vld [vmem:[#allocation9 + $0x1a0] sm:$0xff]
    %v735 = vld [vmem:[#allocation9 + $0x1a8] sm:$0xff]
    %v736 = vld [vmem:[#allocation9 + $0x1b0] sm:$0xff]
    %v737 = vld [vmem:[#allocation9 + $0x1b8] sm:$0xff]
    %v738 = vld [vmem:[#allocation9 + $0x1c0] sm:$0xff]
    %v739 = vld [vmem:[#allocation9 + $0x1c8] sm:$0xff]
    %v740 = vld [vmem:[#allocation9 + $0x1d0] sm:$0xff]
    %v741 = vld [vmem:[#allocation9 + $0x1d8] sm:$0xff]
    %v742 = vld [vmem:[#allocation9 + $0x1e0] sm:$0xff]
    %v743 = vld [vmem:[#allocation9 + $0x1e8] sm:$0xff]
    %v744 = vld [vmem:[#allocation9 + $0x1f0] sm:$0xff]
    %v745 = vld [vmem:[#allocation9 + $0x1f8] sm:$0xff]
    %v746 = vld [vmem:[#allocation2] sm:$0xff]
    %v747 = vld [vmem:[#allocation2 + $0x8] sm:$0xff]
    %v748 = vld [vmem:[#allocation2 + $0x10] sm:$0xff]
    %v749 = vld [vmem:[#allocation2 + $0x18] sm:$0xff]
    %v750 = vld [vmem:[#allocation2 + $0x20] sm:$0xff]
    %v751 = vld [vmem:[#allocation2 + $0x28] sm:$0xff]
    %v752 = vld [vmem:[#allocation2 + $0x30] sm:$0xff]
    %v753 = vld [vmem:[#allocation2 + $0x38] sm:$0xff]
    %754 = vmatprep.subr.mxu0 %v683
    %755 = vmatpush1.msra.mxu0 %v682
    %756 = vmatprep.subr.mxu0 %v687
    %757 = vmatpush1.msra.mxu0 %v686
    %758 = vmatprep.subr.mxu0 %v691
    %759 = vmatpush1.msra.mxu0 %v690
    %760 = vmatprep.subr.mxu0 %v695
    %761 = vmatpush1.msra.mxu0 %v694
    %762 = vmatprep.subr.mxu0 %v699
    %763 = vmatpush1.msra.mxu0 %v698
    %764 = vmatprep.subr.mxu0 %v703
    %765 = vmatpush1.msra.mxu0 %v702
    %766 = vmatprep.subr.mxu0 %v707
    %767 = vmatpush1.msra.mxu0 %v706
    %768 = vmatprep.subr.mxu0 %v711
    %769 = vmatpush1.msra.mxu0 %v710
    %770 = vmatprep.subr.mxu0 %v715
    %771 = vmatpush1.msra.mxu0 %v714
    %772 = vmatprep.subr.mxu0 %v719
    %773 = vmatpush1.msra.mxu0 %v718
    %774 = vmatprep.subr.mxu0 %v723
    %775 = vmatpush1.msra.mxu0 %v722
    %776 = vmatprep.subr.mxu0 %v727
    %777 = vmatpush1.msra.mxu0 %v726
    %778 = vmatprep.subr.mxu0 %v731
    %779 = vmatpush1.msra.mxu0 %v730
    %780 = vmatprep.subr.mxu0 %v735
    %781 = vmatpush1.msra.mxu0 %v734
    %782 = vmatprep.subr.mxu0 %v739
    %783 = vmatpush1.msra.mxu0 %v738
    %784 = vmatprep.subr.mxu0 %v743
    %785 = vmatpush1.msra.mxu0 %v742
    %786 = vmatprep.subr.mxu0 0.0
    %787 = vmatpush1.msra.mxu0 0.0
    %788 = vmatprep.subr.mxu0 0.0
    %789 = vmatpush1.msra.mxu0 0.0
    %790 = vmatprep.subr.mxu0 0.0
    %791 = vmatpush1.msra.mxu0 0.0
    %792 = vmatprep.subr.mxu0 0.0
    %793 = vmatpush1.msra.mxu0 0.0
    %794 = vmatprep.subr.mxu0 0.0
    %795 = vmatpush1.msra.mxu0 0.0
    %796 = vmatprep.subr.mxu0 0.0
    %797 = vmatpush1.msra.mxu0 0.0
    %798 = vmatprep.subr.mxu0 0.0
    %799 = vmatpush1.msra.mxu0 0.0
    %800 = vmatprep.subr.mxu0 0.0
    %801 = vmatpush1.msra.mxu0 0.0
    %802 = vmatprep.subr.mxu0 0.0
    %803 = vmatpush1.msra.mxu0 0.0
    %804 = vmatprep.subr.mxu0 0.0
    %805 = vmatpush1.msra.mxu0 0.0
    %806 = vmatprep.subr.mxu0 0.0
    %807 = vmatpush1.msra.mxu0 0.0
    %808 = vmatprep.subr.mxu0 0.0
    %809 = vmatpush1.msra.mxu0 0.0
    %810 = vmatprep.subr.mxu0 0.0
    %811 = vmatpush1.msra.mxu0 0.0
    %812 = vmatprep.subr.mxu0 0.0
    %813 = vmatpush1.msra.mxu0 0.0
    %814 = vmatprep.subr.mxu0 0.0
    %815 = vmatpush1.msra.mxu0 0.0
    %816 = vmatprep.subr.mxu0 0.0
    %817 = vmatpush1.msra.mxu0 0.0
    %818 = vmatprep.mubr.f32.mxu0 0.0
    %819 = vmatmul.mubr.f32.gmra.mrb[0].mxu0 0.0
    %v820 = vpop.f32.mrb[0].mxu0
    %v821 = vadd.f32 0.0, %v820
    %v822 = vpop.f32.mrb[0].mxu0
    %v823 = vadd.f32 0.0, %v822
    %824 = vdwg.mxu0
    %825 = vmatprep.subr.mxu0 %v685
    %826 = vmatpush1.msra.mxu0 %v684
    %827 = vmatprep.subr.mxu0 %v689
    %828 = vmatpush1.msra.mxu0 %v688
    %829 = vmatprep.subr.mxu0 %v693
    %830 = vmatpush1.msra.mxu0 %v692
    %831 = vmatprep.subr.mxu0 %v697
    %832 = vmatpush1.msra.mxu0 %v696
    %833 = vmatprep.subr.mxu0 %v701
    %834 = vmatpush1.msra.mxu0 %v700
    %835 = vmatprep.subr.mxu0 %v705
    %836 = vmatpush1.msra.mxu0 %v704
    %837 = vmatprep.subr.mxu0 %v709
    %838 = vmatpush1.msra.mxu0 %v708
    %839 = vmatprep.subr.mxu0 %v713
    %840 = vmatpush1.msra.mxu0 %v712
    %841 = vmatprep.subr.mxu0 %v717
    %842 = vmatpush1.msra.mxu0 %v716
    %843 = vmatprep.subr.mxu0 %v721
    %844 = vmatpush1.msra.mxu0 %v720
    %845 = vmatprep.subr.mxu0 %v725
    %846 = vmatpush1.msra.mxu0 %v724
    %847 = vmatprep.subr.mxu0 %v729
    %848 = vmatpush1.msra.mxu0 %v728
    %849 = vmatprep.subr.mxu0 %v733
    %850 = vmatpush1.msra.mxu0 %v732
    %851 = vmatprep.subr.mxu0 %v737
    %852 = vmatpush1.msra.mxu0 %v736
    %853 = vmatprep.subr.mxu0 %v741
    %854 = vmatpush1.msra.mxu0 %v740
    %855 = vmatprep.subr.mxu0 %v745
    %856 = vmatpush1.msra.mxu0 %v744
    %857 = vmatprep.subr.mxu0 0.0
    %858 = vmatpush1.msra.mxu0 0.0
    %859 = vmatprep.subr.mxu0 0.0
    %860 = vmatpush1.msra.mxu0 0.0
    %861 = vmatprep.subr.mxu0 0.0
    %862 = vmatpush1.msra.mxu0 0.0
    %863 = vmatprep.subr.mxu0 0.0
    %864 = vmatpush1.msra.mxu0 0.0
    %865 = vmatprep.subr.mxu0 0.0
    %866 = vmatpush1.msra.mxu0 0.0
    %867 = vmatprep.subr.mxu0 0.0
    %868 = vmatpush1.msra.mxu0 0.0
    %869 = vmatprep.subr.mxu0 0.0
    %870 = vmatpush1.msra.mxu0 0.0
    %871 = vmatprep.subr.mxu0 0.0
    %872 = vmatpush1.msra.mxu0 0.0
    %873 = vmatprep.subr.mxu0 0.0
    %874 = vmatpush1.msra.mxu0 0.0
    %875 = vmatprep.subr.mxu0 0.0
    %876 = vmatpush1.msra.mxu0 0.0
    %877 = vmatprep.subr.mxu0 0.0
    %878 = vmatpush1.msra.mxu0 0.0
    %879 = vmatprep.subr.mxu0 0.0
    %880 = vmatpush1.msra.mxu0 0.0
    %881 = vmatprep.subr.mxu0 0.0
    %882 = vmatpush1.msra.mxu0 0.0
    %883 = vmatprep.subr.mxu0 0.0
    %884 = vmatpush1.msra.mxu0 0.0
    %885 = vmatprep.subr.mxu0 0.0
    %886 = vmatpush1.msra.mxu0 0.0
    %887 = vmatprep.subr.mxu0 0.0
    %888 = vmatpush1.msra.mxu0 0.0
    %889 = vmatprep.mubr.f32.mxu0 0.0
    %890 = vmatmul.mubr.f32.gmra.mrb[0].mxu0 0.0
    %v891 = vpop.f32.mrb[0].mxu0
    %v892 = vadd.f32 0.0, %v891
    %v893 = vpop.f32.mrb[0].mxu0
    %v894 = vadd.f32 0.0, %v893
    %895 = vdwg.mxu0
    %v896 = vadd.f32 %v746, %v821
    %v897 = vadd.f32 %v747, %v823
    %v898 = vadd.f32 %v748, %v892
    %v899 = vadd.f32 %v749, %v894
    %v900 = vadd.f32 %v750, %v821
    %v901 = vadd.f32 %v751, %v823
    %v902 = vadd.f32 %v752, %v892
    %v903 = vadd.f32 %v753, %v894
    %v904 = vmul.f32 %v896, 0.5
    %v905 = vtanh.pop %v904
    %v906 = vmul.f32 %v905, 0.5
    %v907 = vadd.f32 %v906, 0.5
    %v908 = vmul.f32 %v897, 0.5
    %v909 = vtanh.pop %v908
    %v910 = vmul.f32 %v909, 0.5
    %v911 = vadd.f32 %v910, 0.5
    %v912 = vtanh.pop %v898
    %v913 = vmul.f32 %v899, 0.5
    %v914 = vtanh.pop %v913
    %v915 = vmul.f32 %v914, 0.5
    %v916 = vadd.f32 %v915, 0.5
    %v917 = vmul.f32 %v911, 0.0
    %v918 = vmul.f32 %v907, %v912
    %v919 = vadd.f32 %v917, %v918
    %v920 = vtanh.pop %v919
    %v921 = vmul.f32 %v916, %v920
    %v922 = vmul.f32 %v900, 0.5
    %v923 = vtanh.pop %v922
    %v924 = vmul.f32 %v923, 0.5
    %v925 = vadd.f32 %v924, 0.5
    %v926 = vmul.f32 %v901, 0.5
    %v927 = vtanh.pop %v926
    %v928 = vmul.f32 %v927, 0.5
    %v929 = vadd.f32 %v928, 0.5
    %v930 = vtanh.pop %v902
    %v931 = vmul.f32 %v903, 0.5
    %v932 = vtanh.pop %v931
    %v933 = vmul.f32 %v932, 0.5
    %v934 = vadd.f32 %v933, 0.5
    %v935 = vmul.f32 %v929, 0.0
    %v936 = vmul.f32 %v925, %v930
    %v937 = vadd.f32 %v935, %v936
    %v938 = vtanh.pop %v937
    %v939 = vmul.f32 %v934, %v938
    %v940 = vmax.f32 %v921, 0.0
    %v941 = vmax.f32 %v939, 0.0
    %942 = vst [vmem:[#allocation3] sm:$0xff] %v940
    %943 = vst [vmem:[#allocation3 + $0x8] sm:$0xff] %v941
    %s944 = scalar_lea.vmem [#allocation2], 64
    %v945 = vld [vmem:[%s944] sm:$0xff]
    %v946 = vld [vmem:[%s944 + $0x8] sm:$0xff]
    %v947 = vld [vmem:[%s944 + $0x10] sm:$0xff]
    %v948 = vld [vmem:[%s944 + $0x18] sm:$0xff]
    %v949 = vld [vmem:[%s944 + $0x20] sm:$0xff]
    %v950 = vld [vmem:[%s944 + $0x28] sm:$0xff]
    %v951 = vld [vmem:[%s944 + $0x30] sm:$0xff]
    %v952 = vld [vmem:[%s944 + $0x38] sm:$0xff]
    %953 = vmatprep.subr.mxu0 %v683
    %954 = vmatpush1.msra.mxu0 %v682
    %955 = vmatprep.subr.mxu0 %v687
    %956 = vmatpush1.msra.mxu0 %v686
    %957 = vmatprep.subr.mxu0 %v691
    %958 = vmatpush1.msra.mxu0 %v690
    %959 = vmatprep.subr.mxu0 %v695
    %960 = vmatpush1.msra.mxu0 %v694
    %961 = vmatprep.subr.mxu0 %v699
    %962 = vmatpush1.msra.mxu0 %v698
    %963 = vmatprep.subr.mxu0 %v703
    %964 = vmatpush1.msra.mxu0 %v702
    %965 = vmatprep.subr.mxu0 %v707
    %966 = vmatpush1.msra.mxu0 %v706
    %967 = vmatprep.subr.mxu0 %v711
    %968 = vmatpush1.msra.mxu0 %v710
    %969 = vmatprep.subr.mxu0 %v715
    %970 = vmatpush1.msra.mxu0 %v714
    %971 = vmatprep.subr.mxu0 %v719
    %972 = vmatpush1.msra.mxu0 %v718
    %973 = vmatprep.subr.mxu0 %v723
    %974 = vmatpush1.msra.mxu0 %v722
    %975 = vmatprep.subr.mxu0 %v727
    %976 = vmatpush1.msra.mxu0 %v726
    %977 = vmatprep.subr.mxu0 %v731
    %978 = vmatpush1.msra.mxu0 %v730
    %979 = vmatprep.subr.mxu0 %v735
    %980 = vmatpush1.msra.mxu0 %v734
    %981 = vmatprep.subr.mxu0 %v739
    %982 = vmatpush1.msra.mxu0 %v738
    %983 = vmatprep.subr.mxu0 %v743
    %984 = vmatpush1.msra.mxu0 %v742
    %985 = vmatprep.subr.mxu0 0.0
    %986 = vmatpush1.msra.mxu0 0.0
    %987 = vmatprep.subr.mxu0 0.0
    %988 = vmatpush1.msra.mxu0 0.0
    %989 = vmatprep.subr.mxu0 0.0
    %990 = vmatpush1.msra.mxu0 0.0
    %991 = vmatprep.subr.mxu0 0.0
    %992 = vmatpush1.msra.mxu0 0.0
    %993 = vmatprep.subr.mxu0 0.0
    %994 = vmatpush1.msra.mxu0 0.0
    %995 = vmatprep.subr.mxu0 0.0
    %996 = vmatpush1.msra.mxu0 0.0
    %997 = vmatprep.subr.mxu0 0.0
    %998 = vmatpush1.msra.mxu0 0.0
    %999 = vmatprep.subr.mxu0 0.0
    %1000 = vmatpush1.msra.mxu0 0.0
    %1001 = vmatprep.subr.mxu0 0.0
    %1002 = vmatpush1.msra.mxu0 0.0
    %1003 = vmatprep.subr.mxu0 0.0
    %1004 = vmatpush1.msra.mxu0 0.0
    %1005 = vmatprep.subr.mxu0 0.0
    %1006 = vmatpush1.msra.mxu0 0.0
    %1007 = vmatprep.subr.mxu0 0.0
    %1008 = vmatpush1.msra.mxu0 0.0
    %1009 = vmatprep.subr.mxu0 0.0
    %1010 = vmatpush1.msra.mxu0 0.0
    %1011 = vmatprep.subr.mxu0 0.0
    %1012 = vmatpush1.msra.mxu0 0.0
    %1013 = vmatprep.subr.mxu0 0.0
    %1014 = vmatpush1.msra.mxu0 0.0
    %1015 = vmatprep.subr.mxu0 0.0
    %1016 = vmatpush1.msra.mxu0 0.0
    %1017 = vmatprep.mubr.f32.mxu0 0.0
    %1018 = vmatmul.mubr.f32.gmra.mrb[0].mxu0 %v921
    %v1019 = vpop.f32.mrb[0].mxu0
    %v1020 = vadd.f32 0.0, %v1019
    %v1021 = vpop.f32.mrb[0].mxu0
    %v1022 = vadd.f32 0.0, %v1021
    %1023 = vdwg.mxu0
    %1024 = vmatprep.subr.mxu0 %v685
    %1025 = vmatpush1.msra.mxu0 %v684
    %1026 = vmatprep.subr.mxu0 %v689
    %1027 = vmatpush1.msra.mxu0 %v688
    %1028 = vmatprep.subr.mxu0 %v693
    %1029 = vmatpush1.msra.mxu0 %v692
    %1030 = vmatprep.subr.mxu0 %v697
    %1031 = vmatpush1.msra.mxu0 %v696
    %1032 = vmatprep.subr.mxu0 %v701
    %1033 = vmatpush1.msra.mxu0 %v700
    %1034 = vmatprep.subr.mxu0 %v705
    %1035 = vmatpush1.msra.mxu0 %v704
    %1036 = vmatprep.subr.mxu0 %v709
    %1037 = vmatpush1.msra.mxu0 %v708
    %1038 = vmatprep.subr.mxu0 %v713
    %1039 = vmatpush1.msra.mxu0 %v712
    %1040 = vmatprep.subr.mxu0 %v717
    %1041 = vmatpush1.msra.mxu0 %v716
    %1042 = vmatprep.subr.mxu0 %v721
    %1043 = vmatpush1.msra.mxu0 %v720
    %1044 = vmatprep.subr.mxu0 %v725
    %1045 = vmatpush1.msra.mxu0 %v724
    %1046 = vmatprep.subr.mxu0 %v729
    %1047 = vmatpush1.msra.mxu0 %v728
    %1048 = vmatprep.subr.mxu0 %v733
    %1049 = vmatpush1.msra.mxu0 %v732
    %1050 = vmatprep.subr.mxu0 %v737
    %1051 = vmatpush1.msra.mxu0 %v736
    %1052 = vmatprep.subr.mxu0 %v741
    %1053 = vmatpush1.msra.mxu0 %v740
    %1054 = vmatprep.subr.mxu0 %v745
    %1055 = vmatpush1.msra.mxu0 %v744
    %1056 = vmatprep.subr.mxu0 0.0
    %1057 = vmatpush1.msra.mxu0 0.0
    %1058 = vmatprep.subr.mxu0 0.0
    %1059 = vmatpush1.msra.mxu0 0.0
    %1060 = vmatprep.subr.mxu0 0.0
    %1061 = vmatpush1.msra.mxu0 0.0
    %1062 = vmatprep.subr.mxu0 0.0
    %1063 = vmatpush1.msra.mxu0 0.0
    %1064 = vmatprep.subr.mxu0 0.0
    %1065 = vmatpush1.msra.mxu0 0.0
    %1066 = vmatprep.subr.mxu0 0.0
    %1067 = vmatpush1.msra.mxu0 0.0
    %1068 = vmatprep.subr.mxu0 0.0
    %1069 = vmatpush1.msra.mxu0 0.0
    %1070 = vmatprep.subr.mxu0 0.0
    %1071 = vmatpush1.msra.mxu0 0.0
    %1072 = vmatprep.subr.mxu0 0.0
    %1073 = vmatpush1.msra.mxu0 0.0
    %1074 = vmatprep.subr.mxu0 0.0
    %1075 = vmatpush1.msra.mxu0 0.0
    %1076 = vmatprep.subr.mxu0 0.0
    %1077 = vmatpush1.msra.mxu0 0.0
    %1078 = vmatprep.subr.mxu0 0.0
    %1079 = vmatpush1.msra.mxu0 0.0
    %1080 = vmatprep.subr.mxu0 0.0
    %1081 = vmatpush1.msra.mxu0 0.0
    %1082 = vmatprep.subr.mxu0 0.0
    %1083 = vmatpush1.msra.mxu0 0.0
    %1084 = vmatprep.subr.mxu0 0.0
    %1085 = vmatpush1.msra.mxu0 0.0
    %1086 = vmatprep.subr.mxu0 0.0
    %1087 = vmatpush1.msra.mxu0 0.0
    %1088 = vmatprep.mubr.f32.mxu0 0.0
    %1089 = vmatmul.mubr.f32.gmra.mrb[0].mxu0 %v921
    %v1090 = vpop.f32.mrb[0].mxu0
    %v1091 = vadd.f32 0.0, %v1090
    %v1092 = vpop.f32.mrb[0].mxu0
    %v1093 = vadd.f32 0.0, %v1092
    %1094 = vdwg.mxu0
    %v1095 = vadd.f32 %v945, %v1020
    %v1096 = vadd.f32 %v946, %v1022
    %v1097 = vadd.f32 %v947, %v1091
    %v1098 = vadd.f32 %v948, %v1093
    %1099 = vmatprep.subr.mxu0 %v683
    %1100 = vmatpush1.msra.mxu0 %v682
    %1101 = vmatprep.subr.mxu0 %v687
    %1102 = vmatpush1.msra.mxu0 %v686
    %1103 = vmatprep.subr.mxu0 %v691
    %1104 = vmatpush1.msra.mxu0 %v690
    %1105 = vmatprep.subr.mxu0 %v695
    %1106 = vmatpush1.msra.mxu0 %v694
    %1107 = vmatprep.subr.mxu0 %v699
    %1108 = vmatpush1.msra.mxu0 %v698
    %1109 = vmatprep.subr.mxu0 %v703
    %1110 = vmatpush1.msra.mxu0 %v702
    %1111 = vmatprep.subr.mxu0 %v707
    %1112 = vmatpush1.msra.mxu0 %v706
    %1113 = vmatprep.subr.mxu0 %v711
    %1114 = vmatpush1.msra.mxu0 %v710
    %1115 = vmatprep.subr.mxu0 %v715
    %1116 = vmatpush1.msra.mxu0 %v714
    %1117 = vmatprep.subr.mxu0 %v719
    %1118 = vmatpush1.msra.mxu0 %v718
    %1119 = vmatprep.subr.mxu0 %v723
    %1120 = vmatpush1.msra.mxu0 %v722
    %1121 = vmatprep.subr.mxu0 %v727
    %1122 = vmatpush1.msra.mxu0 %v726
    %1123 = vmatprep.subr.mxu0 %v731
    %1124 = vmatpush1.msra.mxu0 %v730
    %1125 = vmatprep.subr.mxu0 %v735
    %1126 = vmatpush1.msra.mxu0 %v734
    %1127 = vmatprep.subr.mxu0 %v739
    %1128 = vmatpush1.msra.mxu0 %v738
    %1129 = vmatprep.subr.mxu0 %v743
    %1130 = vmatpush1.msra.mxu0 %v742
    %1131 = vmatprep.subr.mxu0 0.0
    %1132 = vmatpush1.msra.mxu0 0.0
    %1133 = vmatprep.subr.mxu0 0.0
    %1134 = vmatpush1.msra.mxu0 0.0
    %1135 = vmatprep.subr.mxu0 0.0
    %1136 = vmatpush1.msra.mxu0 0.0
    %1137 = vmatprep.subr.mxu0 0.0
    %1138 = vmatpush1.msra.mxu0 0.0
    %1139 = vmatprep.subr.mxu0 0.0
    %1140 = vmatpush1.msra.mxu0 0.0
    %1141 = vmatprep.subr.mxu0 0.0
    %1142 = vmatpush1.msra.mxu0 0.0
    %1143 = vmatprep.subr.mxu0 0.0
    %1144 = vmatpush1.msra.mxu0 0.0
    %1145 = vmatprep.subr.mxu0 0.0
    %1146 = vmatpush1.msra.mxu0 0.0
    %1147 = vmatprep.subr.mxu0 0.0
    %1148 = vmatpush1.msra.mxu0 0.0
    %1149 = vmatprep.subr.mxu0 0.0
    %1150 = vmatpush1.msra.mxu0 0.0
    %1151 = vmatprep.subr.mxu0 0.0
    %1152 = vmatpush1.msra.mxu0 0.0
    %1153 = vmatprep.subr.mxu0 0.0
    %1154 = vmatpush1.msra.mxu0 0.0
    %1155 = vmatprep.subr.mxu0 0.0
    %1156 = vmatpush1.msra.mxu0 0.0
    %1157 = vmatprep.subr.mxu0 0.0
    %1158 = vmatpush1.msra.mxu0 0.0
    %1159 = vmatprep.subr.mxu0 0.0
    %1160 = vmatpush1.msra.mxu0 0.0
    %1161 = vmatprep.subr.mxu0 0.0
    %1162 = vmatpush1.msra.mxu0 0.0
    %1163 = vmatprep.mubr.f32.mxu0 0.0
    %1164 = vmatmul.mubr.f32.gmra.mrb[0].mxu0 %v939
    %v1165 = vpop.f32.mrb[0].mxu0
    %v1166 = vadd.f32 0.0, %v1165
    %v1167 = vpop.f32.mrb[0].mxu0
    %v1168 = vadd.f32 0.0, %v1167
    %1169 = vdwg.mxu0
    %1170 = vmatprep.subr.mxu0 %v685
    %1171 = vmatpush1.msra.mxu0 %v684
    %1172 = vmatprep.subr.mxu0 %v689
    %1173 = vmatpush1.msra.mxu0 %v688
    %1174 = vmatprep.subr.mxu0 %v693
    %1175 = vmatpush1.msra.mxu0 %v692
    %1176 = vmatprep.subr.mxu0 %v697
    %1177 = vmatpush1.msra.mxu0 %v696
    %1178 = vmatprep.subr.mxu0 %v701
    %1179 = vmatpush1.msra.mxu0 %v700
    %1180 = vmatprep.subr.mxu0 %v705
    %1181 = vmatpush1.msra.mxu0 %v704
    %1182 = vmatprep.subr.mxu0 %v709
    %1183 = vmatpush1.msra.mxu0 %v708
    %1184 = vmatprep.subr.mxu0 %v713
    %1185 = vmatpush1.msra.mxu0 %v712
    %1186 = vmatprep.subr.mxu0 %v717
    %1187 = vmatpush1.msra.mxu0 %v716
    %1188 = vmatprep.subr.mxu0 %v721
    %1189 = vmatpush1.msra.mxu0 %v720
    %1190 = vmatprep.subr.mxu0 %v725
    %1191 = vmatpush1.msra.mxu0 %v724
    %1192 = vmatprep.subr.mxu0 %v729
    %1193 = vmatpush1.msra.mxu0 %v728
    %1194 = vmatprep.subr.mxu0 %v733
    %1195 = vmatpush1.msra.mxu0 %v732
    %1196 = vmatprep.subr.mxu0 %v737
    %1197 = vmatpush1.msra.mxu0 %v736
    %1198 = vmatprep.subr.mxu0 %v741
    %1199 = vmatpush1.msra.mxu0 %v740
    %1200 = vmatprep.subr.mxu0 %v745
    %1201 = vmatpush1.msra.mxu0 %v744
    %1202 = vmatprep.subr.mxu0 0.0
    %1203 = vmatpush1.msra.mxu0 0.0
    %1204 = vmatprep.subr.mxu0 0.0
    %1205 = vmatpush1.msra.mxu0 0.0
    %1206 = vmatprep.subr.mxu0 0.0
    %1207 = vmatpush1.msra.mxu0 0.0
    %1208 = vmatprep.subr.mxu0 0.0
    %1209 = vmatpush1.msra.mxu0 0.0
    %1210 = vmatprep.subr.mxu0 0.0
    %1211 = vmatpush1.msra.mxu0 0.0
    %1212 = vmatprep.subr.mxu0 0.0
    %1213 = vmatpush1.msra.mxu0 0.0
    %1214 = vmatprep.subr.mxu0 0.0
    %1215 = vmatpush1.msra.mxu0 0.0
    %1216 = vmatprep.subr.mxu0 0.0
    %1217 = vmatpush1.msra.mxu0 0.0
    %1218 = vmatprep.subr.mxu0 0.0
    %1219 = vmatpush1.msra.mxu0 0.0
    %1220 = vmatprep.subr.mxu0 0.0
    %1221 = vmatpush1.msra.mxu0 0.0
    %1222 = vmatprep.subr.mxu0 0.0
    %1223 = vmatpush1.msra.mxu0 0.0
    %1224 = vmatprep.subr.mxu0 0.0
    %1225 = vmatpush1.msra.mxu0 0.0
    %1226 = vmatprep.subr.mxu0 0.0
    %1227 = vmatpush1.msra.mxu0 0.0
    %1228 = vmatprep.subr.mxu0 0.0
    %1229 = vmatpush1.msra.mxu0 0.0
    %1230 = vmatprep.subr.mxu0 0.0
    %1231 = vmatpush1.msra.mxu0 0.0
    %1232 = vmatprep.subr.mxu0 0.0
    %1233 = vmatpush1.msra.mxu0 0.0
    %1234 = vmatprep.mubr.f32.mxu0 0.0
    %1235 = vmatmul.mubr.f32.gmra.mrb[0].mxu0 %v939
    %v1236 = vpop.f32.mrb[0].mxu0
    %v1237 = vadd.f32 0.0, %v1236
    %v1238 = vpop.f32.mrb[0].mxu0
    %v1239 = vadd.f32 0.0, %v1238
    %1240 = vdwg.mxu0
    %v1241 = vadd.f32 %v949, %v1166
    %v1242 = vadd.f32 %v950, %v1168
    %v1243 = vadd.f32 %v951, %v1237
    %v1244 = vadd.f32 %v952, %v1239
    %v1245 = vmul.f32 %v1095, 0.5
    %v1246 = vtanh.pop %v1245
    %v1247 = vmul.f32 %v1246, 0.5
    %v1248 = vadd.f32 %v1247, 0.5
    %v1249 = vmul.f32 %v1096, 0.5
    %v1250 = vtanh.pop %v1249
    %v1251 = vmul.f32 %v1250, 0.5
    %v1252 = vadd.f32 %v1251, 0.5
    %v1253 = vtanh.pop %v1097
    %v1254 = vmul.f32 %v1098, 0.5
    %v1255 = vtanh.pop %v1254
    %v1256 = vmul.f32 %v1255, 0.5
    %v1257 = vadd.f32 %v1256, 0.5
    %v1258 = vmul.f32 %v1252, %v919
    %v1259 = vmul.f32 %v1248, %v1253
    %v1260 = vadd.f32 %v1258, %v1259
    %v1261 = vtanh.pop %v1260
    %v1262 = vmul.f32 %v1257, %v1261
    %v1263 = vmul.f32 %v1241, 0.5
    %v1264 = vtanh.pop %v1263
    %v1265 = vmul.f32 %v1264, 0.5
    %v1266 = vadd.f32 %v1265, 0.5
    %v1267 = vmul.f32 %v1242, 0.5
    %v1268 = vtanh.pop %v1267
    %v1269 = vmul.f32 %v1268, 0.5
    %v1270 = vadd.f32 %v1269, 0.5
    %v1271 = vtanh.pop %v1243
    %v1272 = vmul.f32 %v1244, 0.5
    %v1273 = vtanh.pop %v1272
    %v1274 = vmul.f32 %v1273, 0.5
    %v1275 = vadd.f32 %v1274, 0.5
    %v1276 = vmul.f32 %v1270, %v937
    %v1277 = vmul.f32 %v1266, %v1271
    %v1278 = vadd.f32 %v1276, %v1277
    %v1279 = vtanh.pop %v1278
    %v1280 = vmul.f32 %v1275, %v1279
    %v1281 = vmax.f32 %v1262, 0.0
    %v1282 = vmax.f32 %v1280, 0.0
    %s1283 = scalar_lea.vmem [#allocation3], 16
    %1284 = vst [vmem:[%s1283] sm:$0xff] %v1281
    %1285 = vst [vmem:[%s1283 + $0x8] sm:$0xff] %v1282
    %s1286 = scalar_lea.vmem [#allocation2], 128
    %v1287 = vld [vmem:[%s1286] sm:$0xff]
    %v1288 = vld [vmem:[%s1286 + $0x8] sm:$0xff]
    %v1289 = vld [vmem:[%s1286 + $0x10] sm:$0xff]
    %v1290 = vld [vmem:[%s1286 + $0x18] sm:$0xff]
    %v1291 = vld [vmem:[%s1286 + $0x20] sm:$0xff]
    %v1292 = vld [vmem:[%s1286 + $0x28] sm:$0xff]
    %v1293 = vld [vmem:[%s1286 + $0x30] sm:$0xff]
    %v1294 = vld [vmem:[%s1286 + $0x38] sm:$0xff]
    %1295 = vmatprep.subr.mxu0 %v683
    %1296 = vmatpush1.msra.mxu0 %v682
    %1297 = vmatprep.subr.mxu0 %v687
    %1298 = vmatpush1.msra.mxu0 %v686
    %1299 = vmatprep.subr.mxu0 %v691
    %1300 = vmatpush1.msra.mxu0 %v690
    %1301 = vmatprep.subr.mxu0 %v695
    %1302 = vmatpush1.msra.mxu0 %v694
    %1303 = vmatprep.subr.mxu0 %v699
    %1304 = vmatpush1.msra.mxu0 %v698
    %1305 = vmatprep.subr.mxu0 %v703
    %1306 = vmatpush1.msra.mxu0 %v702
    %1307 = vmatprep.subr.mxu0 %v707
    %1308 = vmatpush1.msra.mxu0 %v706
    %1309 = vmatprep.subr.mxu0 %v711
    %1310 = vmatpush1.msra.mxu0 %v710
    %1311 = vmatprep.subr.mxu0 %v715
    %1312 = vmatpush1.msra.mxu0 %v714
    %1313 = vmatprep.subr.mxu0 %v719
    %1314 = vmatpush1.msra.mxu0 %v718
    %1315 = vmatprep.subr.mxu0 %v723
    %1316 = vmatpush1.msra.mxu0 %v722
    %1317 = vmatprep.subr.mxu0 %v727
    %1318 = vmatpush1.msra.mxu0 %v726
    %1319 = vmatprep.subr.mxu0 %v731
    %1320 = vmatpush1.msra.mxu0 %v730
    %1321 = vmatprep.subr.mxu0 %v735
    %1322 = vmatpush1.msra.mxu0 %v734
    %1323 = vmatprep.subr.mxu0 %v739
    %1324 = vmatpush1.msra.mxu0 %v738
    %1325 = vmatprep.subr.mxu0 %v743
    %1326 = vmatpush1.msra.mxu0 %v742
    %1327 = vmatprep.subr.mxu0 0.0
    %1328 = vmatpush1.msra.mxu0 0.0
    %1329 = vmatprep.subr.mxu0 0.0
    %1330 = vmatpush1.msra.mxu0 0.0
    %1331 = vmatprep.subr.mxu0 0.0
    %1332 = vmatpush1.msra.mxu0 0.0
    %1333 = vmatprep.subr.mxu0 0.0
    %1334 = vmatpush1.msra.mxu0 0.0
    %1335 = vmatprep.subr.mxu0 0.0
    %1336 = vmatpush1.msra.mxu0 0.0
    %1337 = vmatprep.subr.mxu0 0.0
    %1338 = vmatpush1.msra.mxu0 0.0
    %1339 = vmatprep.subr.mxu0 0.0
    %1340 = vmatpush1.msra.mxu0 0.0
    %1341 = vmatprep.subr.mxu0 0.0
    %1342 = vmatpush1.msra.mxu0 0.0
    %1343 = vmatprep.subr.mxu0 0.0
    %1344 = vmatpush1.msra.mxu0 0.0
    %1345 = vmatprep.subr.mxu0 0.0
    %1346 = vmatpush1.msra.mxu0 0.0
    %1347 = vmatprep.subr.mxu0 0.0
    %1348 = vmatpush1.msra.mxu0 0.0
    %1349 = vmatprep.subr.mxu0 0.0
    %1350 = vmatpush1.msra.mxu0 0.0
    %1351 = vmatprep.subr.mxu0 0.0
    %1352 = vmatpush1.msra.mxu0 0.0
    %1353 = vmatprep.subr.mxu0 0.0
    %1354 = vmatpush1.msra.mxu0 0.0
    %1355 = vmatprep.subr.mxu0 0.0
    %1356 = vmatpush1.msra.mxu0 0.0
    %1357 = vmatprep.subr.mxu0 0.0
    %1358 = vmatpush1.msra.mxu0 0.0
    %1359 = vmatprep.mubr.f32.mxu0 0.0
    %1360 = vmatmul.mubr.f32.gmra.mrb[0].mxu0 %v1262
    %v1361 = vpop.f32.mrb[0].mxu0
    %v1362 = vadd.f32 0.0, %v1361
    %v1363 = vpop.f32.mrb[0].mxu0
    %v1364 = vadd.f32 0.0, %v1363
    %1365 = vdwg.mxu0
    %1366 = vmatprep.subr.mxu0 %v685
    %1367 = vmatpush1.msra.mxu0 %v684
    %1368 = vmatprep.subr.mxu0 %v689
    %1369 = vmatpush1.msra.mxu0 %v688
    %1370 = vmatprep.subr.mxu0 %v693
    %1371 = vmatpush1.msra.mxu0 %v692
    %1372 = vmatprep.subr.mxu0 %v697
    %1373 = vmatpush1.msra.mxu0 %v696
    %1374 = vmatprep.subr.mxu0 %v701
    %1375 = vmatpush1.msra.mxu0 %v700
    %1376 = vmatprep.subr.mxu0 %v705
    %1377 = vmatpush1.msra.mxu0 %v704
    %1378 = vmatprep.subr.mxu0 %v709
    %1379 = vmatpush1.msra.mxu0 %v708
    %1380 = vmatprep.subr.mxu0 %v713
    %1381 = vmatpush1.msra.mxu0 %v712
    %1382 = vmatprep.subr.mxu0 %v717
    %1383 = vmatpush1.msra.mxu0 %v716
    %1384 = vmatprep.subr.mxu0 %v721
    %1385 = vmatpush1.msra.mxu0 %v720
    %1386 = vmatprep.subr.mxu0 %v725
    %1387 = vmatpush1.msra.mxu0 %v724
    %1388 = vmatprep.subr.mxu0 %v729
    %1389 = vmatpush1.msra.mxu0 %v728
    %1390 = vmatprep.subr.mxu0 %v733
    %1391 = vmatpush1.msra.mxu0 %v732
    %1392 = vmatprep.subr.mxu0 %v737
    %1393 = vmatpush1.msra.mxu0 %v736
    %1394 = vmatprep.subr.mxu0 %v741
    %1395 = vmatpush1.msra.mxu0 %v740
    %1396 = vmatprep.subr.mxu0 %v745
    %1397 = vmatpush1.msra.mxu0 %v744
    %1398 = vmatprep.subr.mxu0 0.0
    %1399 = vmatpush1.msra.mxu0 0.0
    %1400 = vmatprep.subr.mxu0 0.0
    %1401 = vmatpush1.msra.mxu0 0.0
    %1402 = vmatprep.subr.mxu0 0.0
    %1403 = vmatpush1.msra.mxu0 0.0
    %1404 = vmatprep.subr.mxu0 0.0
    %1405 = vmatpush1.msra.mxu0 0.0
    %1406 = vmatprep.subr.mxu0 0.0
    %1407 = vmatpush1.msra.mxu0 0.0
    %1408 = vmatprep.subr.mxu0 0.0
    %1409 = vmatpush1.msra.mxu0 0.0
    %1410 = vmatprep.subr.mxu0 0.0
    %1411 = vmatpush1.msra.mxu0 0.0
    %1412 = vmatprep.subr.mxu0 0.0
    %1413 = vmatpush1.msra.mxu0 0.0
    %1414 = vmatprep.subr.mxu0 0.0
    %1415 = vmatpush1.msra.mxu0 0.0
    %1416 = vmatprep.subr.mxu0 0.0
    %1417 = vmatpush1.msra.mxu0 0.0
    %1418 = vmatprep.subr.mxu0 0.0
    %1419 = vmatpush1.msra.mxu0 0.0
    %1420 = vmatprep.subr.mxu0 0.0
    %1421 = vmatpush1.msra.mxu0 0.0
    %1422 = vmatprep.subr.mxu0 0.0
    %1423 = vmatpush1.msra.mxu0 0.0
    %1424 = vmatprep.subr.mxu0 0.0
    %1425 = vmatpush1.msra.mxu0 0.0
    %1426 = vmatprep.subr.mxu0 0.0
    %1427 = vmatpush1.msra.mxu0 0.0
    %1428 = vmatprep.subr.mxu0 0.0
    %1429 = vmatpush1.msra.mxu0 0.0
    %1430 = vmatprep.mubr.f32.mxu0 0.0
    %1431 = vmatmul.mubr.f32.gmra.mrb[0].mxu0 %v1262
    %v1432 = vpop.f32.mrb[0].mxu0
    %v1433 = vadd.f32 0.0, %v1432
    %v1434 = vpop.f32.mrb[0].mxu0
    %v1435 = vadd.f32 0.0, %v1434
    %1436 = vdwg.mxu0
    %v1437 = vadd.f32 %v1287, %v1362
    %v1438 = vadd.f32 %v1288, %v1364
    %v1439 = vadd.f32 %v1289, %v1433
    %v1440 = vadd.f32 %v1290, %v1435
    %1441 = vmatprep.subr.mxu0 %v683
    %1442 = vmatpush1.msra.mxu0 %v682
    %1443 = vmatprep.subr.mxu0 %v687
    %1444 = vmatpush1.msra.mxu0 %v686
    %1445 = vmatprep.subr.mxu0 %v691
    %1446 = vmatpush1.msra.mxu0 %v690
    %1447 = vmatprep.subr.mxu0 %v695
    %1448 = vmatpush1.msra.mxu0 %v694
    %1449 = vmatprep.subr.mxu0 %v699
    %1450 = vmatpush1.msra.mxu0 %v698
    %1451 = vmatprep.subr.mxu0 %v703
    %1452 = vmatpush1.msra.mxu0 %v702
    %1453 = vmatprep.subr.mxu0 %v707
    %1454 = vmatpush1.msra.mxu0 %v706
    %1455 = vmatprep.subr.mxu0 %v711
    %1456 = vmatpush1.msra.mxu0 %v710
    %1457 = vmatprep.subr.mxu0 %v715
    %1458 = vmatpush1.msra.mxu0 %v714
    %1459 = vmatprep.subr.mxu0 %v719
    %1460 = vmatpush1.msra.mxu0 %v718
    %1461 = vmatprep.subr.mxu0 %v723
    %1462 = vmatpush1.msra.mxu0 %v722
    %1463 = vmatprep.subr.mxu0 %v727
    %1464 = vmatpush1.msra.mxu0 %v726
    %1465 = vmatprep.subr.mxu0 %v731
    %1466 = vmatpush1.msra.mxu0 %v730
    %1467 = vmatprep.subr.mxu0 %v735
    %1468 = vmatpush1.msra.mxu0 %v734
    %1469 = vmatprep.subr.mxu0 %v739
    %1470 = vmatpush1.msra.mxu0 %v738
    %1471 = vmatprep.subr.mxu0 %v743
    %1472 = vmatpush1.msra.mxu0 %v742
    %1473 = vmatprep.subr.mxu0 0.0
    %1474 = vmatpush1.msra.mxu0 0.0
    %1475 = vmatprep.subr.mxu0 0.0
    %1476 = vmatpush1.msra.mxu0 0.0
    %1477 = vmatprep.subr.mxu0 0.0
    %1478 = vmatpush1.msra.mxu0 0.0
    %1479 = vmatprep.subr.mxu0 0.0
    %1480 = vmatpush1.msra.mxu0 0.0
    %1481 = vmatprep.subr.mxu0 0.0
    %1482 = vmatpush1.msra.mxu0 0.0
    %1483 = vmatprep.subr.mxu0 0.0
    %1484 = vmatpush1.msra.mxu0 0.0
    %1485 = vmatprep.subr.mxu0 0.0
    %1486 = vmatpush1.msra.mxu0 0.0
    %1487 = vmatprep.subr.mxu0 0.0
    %1488 = vmatpush1.msra.mxu0 0.0
    %1489 = vmatprep.subr.mxu0 0.0
    %1490 = vmatpush1.msra.mxu0 0.0
    %1491 = vmatprep.subr.mxu0 0.0
    %1492 = vmatpush1.msra.mxu0 0.0
    %1493 = vmatprep.subr.mxu0 0.0
    %1494 = vmatpush1.msra.mxu0 0.0
    %1495 = vmatprep.subr.mxu0 0.0
    %1496 = vmatpush1.msra.mxu0 0.0
    %1497 = vmatprep.subr.mxu0 0.0
    %1498 = vmatpush1.msra.mxu0 0.0
    %1499 = vmatprep.subr.mxu0 0.0
    %1500 = vmatpush1.msra.mxu0 0.0
    %1501 = vmatprep.subr.mxu0 0.0
    %1502 = vmatpush1.msra.mxu0 0.0
    %1503 = vmatprep.subr.mxu0 0.0
    %1504 = vmatpush1.msra.mxu0 0.0
    %1505 = vmatprep.mubr.f32.mxu0 0.0
    %1506 = vmatmul.mubr.f32.gmra.mrb[0].mxu0 %v1280
    %v1507 = vpop.f32.mrb[0].mxu0
    %v1508 = vadd.f32 0.0, %v1507
    %v1509 = vpop.f32.mrb[0].mxu0
    %v1510 = vadd.f32 0.0, %v1509
    %1511 = vdwg.mxu0
    %1512 = vmatprep.subr.mxu0 %v685
    %1513 = vmatpush1.msra.mxu0 %v684
    %1514 = vmatprep.subr.mxu0 %v689
    %1515 = vmatpush1.msra.mxu0 %v688
    %1516 = vmatprep.subr.mxu0 %v693
    %1517 = vmatpush1.msra.mxu0 %v692
    %1518 = vmatprep.subr.mxu0 %v697
    %1519 = vmatpush1.msra.mxu0 %v696
    %1520 = vmatprep.subr.mxu0 %v701
    %1521 = vmatpush1.msra.mxu0 %v700
    %1522 = vmatprep.subr.mxu0 %v705
    %1523 = vmatpush1.msra.mxu0 %v704
    %1524 = vmatprep.subr.mxu0 %v709
    %1525 = vmatpush1.msra.mxu0 %v708
    %1526 = vmatprep.subr.mxu0 %v713
    %1527 = vmatpush1.msra.mxu0 %v712
    %1528 = vmatprep.subr.mxu0 %v717
    %1529 = vmatpush1.msra.mxu0 %v716
    %1530 = vmatprep.subr.mxu0 %v721
    %1531 = vmatpush1.msra.mxu0 %v720
    %1532 = vmatprep.subr.mxu0 %v725
    %1533 = vmatpush1.msra.mxu0 %v724
    %1534 = vmatprep.subr.mxu0 %v729
    %1535 = vmatpush1.msra.mxu0 %v728
    %1536 = vmatprep.subr.mxu0 %v733
    %1537 = vmatpush1.msra.mxu0 %v732
    %1538 = vmatprep.subr.mxu0 %v737
    %1539 = vmatpush1.msra.mxu0 %v736
    %1540 = vmatprep.subr.mxu0 %v741
    %1541 = vmatpush1.msra.mxu0 %v740
    %1542 = vmatprep.subr.mxu0 %v745
    %1543 = vmatpush1.msra.mxu0 %v744
    %1544 = vmatprep.subr.mxu0 0.0
    %1545 = vmatpush1.msra.mxu0 0.0
    %1546 = vmatprep.subr.mxu0 0.0
    %1547 = vmatpush1.msra.mxu0 0.0
    %1548 = vmatprep.subr.mxu0 0.0
    %1549 = vmatpush1.msra.mxu0 0.0
    %1550 = vmatprep.subr.mxu0 0.0
    %1551 = vmatpush1.msra.mxu0 0.0
    %1552 = vmatprep.subr.mxu0 0.0
    %1553 = vmatpush1.msra.mxu0 0.0
    %1554 = vmatprep.subr.mxu0 0.0
    %1555 = vmatpush1.msra.mxu0 0.0
    %1556 = vmatprep.subr.mxu0 0.0
    %1557 = vmatpush1.msra.mxu0 0.0
    %1558 = vmatprep.subr.mxu0 0.0
    %1559 = vmatpush1.msra.mxu0 0.0
    %1560 = vmatprep.subr.mxu0 0.0
    %1561 = vmatpush1.msra.mxu0 0.0
    %1562 = vmatprep.subr.mxu0 0.0
    %1563 = vmatpush1.msra.mxu0 0.0
    %1564 = vmatprep.subr.mxu0 0.0
    %1565 = vmatpush1.msra.mxu0 0.0
    %1566 = vmatprep.subr.mxu0 0.0
    %1567 = vmatpush1.msra.mxu0 0.0
    %1568 = vmatprep.subr.mxu0 0.0
    %1569 = vmatpush1.msra.mxu0 0.0
    %1570 = vmatprep.subr.mxu0 0.0
    %1571 = vmatpush1.msra.mxu0 0.0
    %1572 = vmatprep.subr.mxu0 0.0
    %1573 = vmatpush1.msra.mxu0 0.0
    %1574 = vmatprep.subr.mxu0 0.0
    %1575 = vmatpush1.msra.mxu0 0.0
    %1576 = vmatprep.mubr.f32.mxu0 0.0
    %1577 = vmatmul.mubr.f32.gmra.mrb[0].mxu0 %v1280
    %v1578 = vpop.f32.mrb[0].mxu0
    %v1579 = vadd.f32 0.0, %v1578
    %v1580 = vpop.f32.mrb[0].mxu0
    %v1581 = vadd.f32 0.0, %v1580
    %1582 = vdwg.mxu0
    %v1583 = vadd.f32 %v1291, %v1508
    %v1584 = vadd.f32 %v1292, %v1510
    %v1585 = vadd.f32 %v1293, %v1579
    %v1586 = vadd.f32 %v1294, %v1581
    %v1587 = vmul.f32 %v1437, 0.5
    %v1588 = vtanh.pop %v1587
    %v1589 = vmul.f32 %v1588, 0.5
    %v1590 = vadd.f32 %v1589, 0.5
    %v1591 = vmul.f32 %v1438, 0.5
    %v1592 = vtanh.pop %v1591
    %v1593 = vmul.f32 %v1592, 0.5
    %v1594 = vadd.f32 %v1593, 0.5
    %v1595 = vtanh.pop %v1439
    %v1596 = vmul.f32 %v1440, 0.5
    %v1597 = vtanh.pop %v1596
    %v1598 = vmul.f32 %v1597, 0.5
    %v1599 = vadd.f32 %v1598, 0.5
    %v1600 = vmul.f32 %v1594, %v1260
    %v1601 = vmul.f32 %v1590, %v1595
    %v1602 = vadd.f32 %v1600, %v1601
    %v1603 = vtanh.pop %v1602
    %v1604 = vmul.f32 %v1599, %v1603
    %v1605 = vmul.f32 %v1583, 0.5
    %v1606 = vtanh.pop %v1605
    %v1607 = vmul.f32 %v1606, 0.5
    %v1608 = vadd.f32 %v1607, 0.5
    %v1609 = vmul.f32 %v1584, 0.5
    %v1610 = vtanh.pop %v1609
    %v1611 = vmul.f32 %v1610, 0.5
    %v1612 = vadd.f32 %v1611, 0.5
    %v1613 = vtanh.pop %v1585
    %v1614 = vmul.f32 %v1586, 0.5
    %v1615 = vtanh.pop %v1614
    %v1616 = vmul.f32 %v1615, 0.5
    %v1617 = vadd.f32 %v1616, 0.5
    %v1618 = vmul.f32 %v1612, %v1278
    %v1619 = vmul.f32 %v1608, %v1613
    %v1620 = vadd.f32 %v1618, %v1619
    %v1621 = vtanh.pop %v1620
    %v1622 = vmul.f32 %v1617, %v1621
    %v1623 = vmax.f32 %v1604, 0.0
    %v1624 = vmax.f32 %v1622, 0.0
    %s1625 = scalar_lea.vmem [#allocation3], 32
    %1626 = vst [vmem:[%s1625] sm:$0xff] %v1623
    %1627 = vst [vmem:[%s1625 + $0x8] sm:$0xff] %v1624
    %s1628 = scalar_lea.vmem [#allocation2], 192
    %v1629 = vld [vmem:[%s1628] sm:$0xff]
    %v1630 = vld [vmem:[%s1628 + $0x8] sm:$0xff]
    %v1631 = vld [vmem:[%s1628 + $0x10] sm:$0xff]
    %v1632 = vld [vmem:[%s1628 + $0x18] sm:$0xff]
    %v1633 = vld [vmem:[%s1628 + $0x20] sm:$0xff]
    %v1634 = vld [vmem:[%s1628 + $0x28] sm:$0xff]
    %v1635 = vld [vmem:[%s1628 + $0x30] sm:$0xff]
    %v1636 = vld [vmem:[%s1628 + $0x38] sm:$0xff]
    %1637 = vmatprep.subr.mxu0 %v683
    %1638 = vmatpush1.msra.mxu0 %v682
    %1639 = vmatprep.subr.mxu0 %v687
    %1640 = vmatpush1.msra.mxu0 %v686
    %1641 = vmatprep.subr.mxu0 %v691
    %1642 = vmatpush1.msra.mxu0 %v690
    %1643 = vmatprep.subr.mxu0 %v695
    %1644 = vmatpush1.msra.mxu0 %v694
    %1645 = vmatprep.subr.mxu0 %v699
    %1646 = vmatpush1.msra.mxu0 %v698
    %1647 = vmatprep.subr.mxu0 %v703
    %1648 = vmatpush1.msra.mxu0 %v702
    %1649 = vmatprep.subr.mxu0 %v707
    %1650 = vmatpush1.msra.mxu0 %v706
    %1651 = vmatprep.subr.mxu0 %v711
    %1652 = vmatpush1.msra.mxu0 %v710
    %1653 = vmatprep.subr.mxu0 %v715
    %1654 = vmatpush1.msra.mxu0 %v714
    %1655 = vmatprep.subr.mxu0 %v719
    %1656 = vmatpush1.msra.mxu0 %v718
    %1657 = vmatprep.subr.mxu0 %v723
    %1658 = vmatpush1.msra.mxu0 %v722
    %1659 = vmatprep.subr.mxu0 %v727
    %1660 = vmatpush1.msra.mxu0 %v726
    %1661 = vmatprep.subr.mxu0 %v731
    %1662 = vmatpush1.msra.mxu0 %v730
    %1663 = vmatprep.subr.mxu0 %v735
    %1664 = vmatpush1.msra.mxu0 %v734
    %1665 = vmatprep.subr.mxu0 %v739
    %1666 = vmatpush1.msra.mxu0 %v738
    %1667 = vmatprep.subr.mxu0 %v743
    %1668 = vmatpush1.msra.mxu0 %v742
    %1669 = vmatprep.subr.mxu0 0.0
    %1670 = vmatpush1.msra.mxu0 0.0
    %1671 = vmatprep.subr.mxu0 0.0
    %1672 = vmatpush1.msra.mxu0 0.0
    %1673 = vmatprep.subr.mxu0 0.0
    %1674 = vmatpush1.msra.mxu0 0.0
    %1675 = vmatprep.subr.mxu0 0.0
    %1676 = vmatpush1.msra.mxu0 0.0
    %1677 = vmatprep.subr.mxu0 0.0
    %1678 = vmatpush1.msra.mxu0 0.0
    %1679 = vmatprep.subr.mxu0 0.0
    %1680 = vmatpush1.msra.mxu0 0.0
    %1681 = vmatprep.subr.mxu0 0.0
    %1682 = vmatpush1.msra.mxu0 0.0
    %1683 = vmatprep.subr.mxu0 0.0
    %1684 = vmatpush1.msra.mxu0 0.0
    %1685 = vmatprep.subr.mxu0 0.0
    %1686 = vmatpush1.msra.mxu0 0.0
    %1687 = vmatprep.subr.mxu0 0.0
    %1688 = vmatpush1.msra.mxu0 0.0
    %1689 = vmatprep.subr.mxu0 0.0
    %1690 = vmatpush1.msra.mxu0 0.0
    %1691 = vmatprep.subr.mxu0 0.0
    %1692 = vmatpush1.msra.mxu0 0.0
    %1693 = vmatprep.subr.mxu0 0.0
    %1694 = vmatpush1.msra.mxu0 0.0
    %1695 = vmatprep.subr.mxu0 0.0
    %1696 = vmatpush1.msra.mxu0 0.0
    %1697 = vmatprep.subr.mxu0 0.0
    %1698 = vmatpush1.msra.mxu0 0.0
    %1699 = vmatprep.subr.mxu0 0.0
    %1700 = vmatpush1.msra.mxu0 0.0
    %1701 = vmatprep.mubr.f32.mxu0 0.0
    %1702 = vmatmul.mubr.f32.gmra.mrb[0].mxu0 %v1604
    %v1703 = vpop.f32.mrb[0].mxu0
    %v1704 = vadd.f32 0.0, %v1703
    %v1705 = vpop.f32.mrb[0].mxu0
    %v1706 = vadd.f32 0.0, %v1705
    %1707 = vdwg.mxu0
    %1708 = vmatprep.subr.mxu0 %v685
    %1709 = vmatpush1.msra.mxu0 %v684
    %1710 = vmatprep.subr.mxu0 %v689
    %1711 = vmatpush1.msra.mxu0 %v688
    %1712 = vmatprep.subr.mxu0 %v693
    %1713 = vmatpush1.msra.mxu0 %v692
    %1714 = vmatprep.subr.mxu0 %v697
    %1715 = vmatpush1.msra.mxu0 %v696
    %1716 = vmatprep.subr.mxu0 %v701
    %1717 = vmatpush1.msra.mxu0 %v700
    %1718 = vmatprep.subr.mxu0 %v705
    %1719 = vmatpush1.msra.mxu0 %v704
    %1720 = vmatprep.subr.mxu0 %v709
    %1721 = vmatpush1.msra.mxu0 %v708
    %1722 = vmatprep.subr.mxu0 %v713
    %1723 = vmatpush1.msra.mxu0 %v712
    %1724 = vmatprep.subr.mxu0 %v717
    %1725 = vmatpush1.msra.mxu0 %v716
    %1726 = vmatprep.subr.mxu0 %v721
    %1727 = vmatpush1.msra.mxu0 %v720
    %1728 = vmatprep.subr.mxu0 %v725
    %1729 = vmatpush1.msra.mxu0 %v724
    %1730 = vmatprep.subr.mxu0 %v729
    %1731 = vmatpush1.msra.mxu0 %v728
    %1732 = vmatprep.subr.mxu0 %v733
    %1733 = vmatpush1.msra.mxu0 %v732
    %1734 = vmatprep.subr.mxu0 %v737
    %1735 = vmatpush1.msra.mxu0 %v736
    %1736 = vmatprep.subr.mxu0 %v741
    %1737 = vmatpush1.msra.mxu0 %v740
    %1738 = vmatprep.subr.mxu0 %v745
    %1739 = vmatpush1.msra.mxu0 %v744
    %1740 = vmatprep.subr.mxu0 0.0
    %1741 = vmatpush1.msra.mxu0 0.0
    %1742 = vmatprep.subr.mxu0 0.0
    %1743 = vmatpush1.msra.mxu0 0.0
    %1744 = vmatprep.subr.mxu0 0.0
    %1745 = vmatpush1.msra.mxu0 0.0
    %1746 = vmatprep.subr.mxu0 0.0
    %1747 = vmatpush1.msra.mxu0 0.0
    %1748 = vmatprep.subr.mxu0 0.0
    %1749 = vmatpush1.msra.mxu0 0.0
    %1750 = vmatprep.subr.mxu0 0.0
    %1751 = vmatpush1.msra.mxu0 0.0
    %1752 = vmatprep.subr.mxu0 0.0
    %1753 = vmatpush1.msra.mxu0 0.0
    %1754 = vmatprep.subr.mxu0 0.0
    %1755 = vmatpush1.msra.mxu0 0.0
    %1756 = vmatprep.subr.mxu0 0.0
    %1757 = vmatpush1.msra.mxu0 0.0
    %1758 = vmatprep.subr.mxu0 0.0
    %1759 = vmatpush1.msra.mxu0 0.0
    %1760 = vmatprep.subr.mxu0 0.0
    %1761 = vmatpush1.msra.mxu0 0.0
    %1762 = vmatprep.subr.mxu0 0.0
    %1763 = vmatpush1.msra.mxu0 0.0
    %1764 = vmatprep.subr.mxu0 0.0
    %1765 = vmatpush1.msra.mxu0 0.0
    %1766 = vmatprep.subr.mxu0 0.0
    %1767 = vmatpush1.msra.mxu0 0.0
    %1768 = vmatprep.subr.mxu0 0.0
    %1769 = vmatpush1.msra.mxu0 0.0
    %1770 = vmatprep.subr.mxu0 0.0
    %1771 = vmatpush1.msra.mxu0 0.0
    %1772 = vmatprep.mubr.f32.mxu0 0.0
    %1773 = vmatmul.mubr.f32.gmra.mrb[0].mxu0 %v1604
    %v1774 = vpop.f32.mrb[0].mxu0
    %v1775 = vadd.f32 0.0, %v1774
    %v1776 = vpop.f32.mrb[0].mxu0
    %v1777 = vadd.f32 0.0, %v1776
    %1778 = vdwg.mxu0
    %v1779 = vadd.f32 %v1629, %v1704
    %v1780 = vadd.f32 %v1630, %v1706
    %v1781 = vadd.f32 %v1631, %v1775
    %v1782 = vadd.f32 %v1632, %v1777
    %1783 = vmatprep.subr.mxu0 %v683
    %1784 = vmatpush1.msra.mxu0 %v682
    %1785 = vmatprep.subr.mxu0 %v687
    %1786 = vmatpush1.msra.mxu0 %v686
    %1787 = vmatprep.subr.mxu0 %v691
    %1788 = vmatpush1.msra.mxu0 %v690
    %1789 = vmatprep.subr.mxu0 %v695
    %1790 = vmatpush1.msra.mxu0 %v694
    %1791 = vmatprep.subr.mxu0 %v699
    %1792 = vmatpush1.msra.mxu0 %v698
    %1793 = vmatprep.subr.mxu0 %v703
    %1794 = vmatpush1.msra.mxu0 %v702
    %1795 = vmatprep.subr.mxu0 %v707
    %1796 = vmatpush1.msra.mxu0 %v706
    %1797 = vmatprep.subr.mxu0 %v711
    %1798 = vmatpush1.msra.mxu0 %v710
    %1799 = vmatprep.subr.mxu0 %v715
    %1800 = vmatpush1.msra.mxu0 %v714
    %1801 = vmatprep.subr.mxu0 %v719
    %1802 = vmatpush1.msra.mxu0 %v718
    %1803 = vmatprep.subr.mxu0 %v723
    %1804 = vmatpush1.msra.mxu0 %v722
    %1805 = vmatprep.subr.mxu0 %v727
    %1806 = vmatpush1.msra.mxu0 %v726
    %1807 = vmatprep.subr.mxu0 %v731
    %1808 = vmatpush1.msra.mxu0 %v730
    %1809 = vmatprep.subr.mxu0 %v735
    %1810 = vmatpush1.msra.mxu0 %v734
    %1811 = vmatprep.subr.mxu0 %v739
    %1812 = vmatpush1.msra.mxu0 %v738
    %1813 = vmatprep.subr.mxu0 %v743
    %1814 = vmatpush1.msra.mxu0 %v742
    %1815 = vmatprep.subr.mxu0 0.0
    %1816 = vmatpush1.msra.mxu0 0.0
    %1817 = vmatprep.subr.mxu0 0.0
    %1818 = vmatpush1.msra.mxu0 0.0
    %1819 = vmatprep.subr.mxu0 0.0
    %1820 = vmatpush1.msra.mxu0 0.0
    %1821 = vmatprep.subr.mxu0 0.0
    %1822 = vmatpush1.msra.mxu0 0.0
    %1823 = vmatprep.subr.mxu0 0.0
    %1824 = vmatpush1.msra.mxu0 0.0
    %1825 = vmatprep.subr.mxu0 0.0
    %1826 = vmatpush1.msra.mxu0 0.0
    %1827 = vmatprep.subr.mxu0 0.0
    %1828 = vmatpush1.msra.mxu0 0.0
    %1829 = vmatprep.subr.mxu0 0.0
    %1830 = vmatpush1.msra.mxu0 0.0
    %1831 = vmatprep.subr.mxu0 0.0
    %1832 = vmatpush1.msra.mxu0 0.0
    %1833 = vmatprep.subr.mxu0 0.0
    %1834 = vmatpush1.msra.mxu0 0.0
    %1835 = vmatprep.subr.mxu0 0.0
    %1836 = vmatpush1.msra.mxu0 0.0
    %1837 = vmatprep.subr.mxu0 0.0
    %1838 = vmatpush1.msra.mxu0 0.0
    %1839 = vmatprep.subr.mxu0 0.0
    %1840 = vmatpush1.msra.mxu0 0.0
    %1841 = vmatprep.subr.mxu0 0.0
    %1842 = vmatpush1.msra.mxu0 0.0
    %1843 = vmatprep.subr.mxu0 0.0
    %1844 = vmatpush1.msra.mxu0 0.0
    %1845 = vmatprep.subr.mxu0 0.0
    %1846 = vmatpush1.msra.mxu0 0.0
    %1847 = vmatprep.mubr.f32.mxu0 0.0
    %1848 = vmatmul.mubr.f32.gmra.mrb[0].mxu0 %v1622
    %v1849 = vpop.f32.mrb[0].mxu0
    %v1850 = vadd.f32 0.0, %v1849
    %v1851 = vpop.f32.mrb[0].mxu0
    %v1852 = vadd.f32 0.0, %v1851
    %1853 = vdwg.mxu0
    %1854 = vmatprep.subr.mxu0 %v685
    %1855 = vmatpush1.msra.mxu0 %v684
    %1856 = vmatprep.subr.mxu0 %v689
    %1857 = vmatpush1.msra.mxu0 %v688
    %1858 = vmatprep.subr.mxu0 %v693
    %1859 = vmatpush1.msra.mxu0 %v692
    %1860 = vmatprep.subr.mxu0 %v697
    %1861 = vmatpush1.msra.mxu0 %v696
    %1862 = vmatprep.subr.mxu0 %v701
    %1863 = vmatpush1.msra.mxu0 %v700
    %1864 = vmatprep.subr.mxu0 %v705
    %1865 = vmatpush1.msra.mxu0 %v704
    %1866 = vmatprep.subr.mxu0 %v709
    %1867 = vmatpush1.msra.mxu0 %v708
    %1868 = vmatprep.subr.mxu0 %v713
    %1869 = vmatpush1.msra.mxu0 %v712
    %1870 = vmatprep.subr.mxu0 %v717
    %1871 = vmatpush1.msra.mxu0 %v716
    %1872 = vmatprep.subr.mxu0 %v721
    %1873 = vmatpush1.msra.mxu0 %v720
    %1874 = vmatprep.subr.mxu0 %v725
    %1875 = vmatpush1.msra.mxu0 %v724
    %1876 = vmatprep.subr.mxu0 %v729
    %1877 = vmatpush1.msra.mxu0 %v728
    %1878 = vmatprep.subr.mxu0 %v733
    %1879 = vmatpush1.msra.mxu0 %v732
    %1880 = vmatprep.subr.mxu0 %v737
    %1881 = vmatpush1.msra.mxu0 %v736
    %1882 = vmatprep.subr.mxu0 %v741
    %1883 = vmatpush1.msra.mxu0 %v740
    %1884 = vmatprep.subr.mxu0 %v745
    %1885 = vmatpush1.msra.mxu0 %v744
    %1886 = vmatprep.subr.mxu0 0.0
    %1887 = vmatpush1.msra.mxu0 0.0
    %1888 = vmatprep.subr.mxu0 0.0
    %1889 = vmatpush1.msra.mxu0 0.0
    %1890 = vmatprep.subr.mxu0 0.0
    %1891 = vmatpush1.msra.mxu0 0.0
    %1892 = vmatprep.subr.mxu0 0.0
    %1893 = vmatpush1.msra.mxu0 0.0
    %1894 = vmatprep.subr.mxu0 0.0
    %1895 = vmatpush1.msra.mxu0 0.0
    %1896 = vmatprep.subr.mxu0 0.0
    %1897 = vmatpush1.msra.mxu0 0.0
    %1898 = vmatprep.subr.mxu0 0.0
    %1899 = vmatpush1.msra.mxu0 0.0
    %1900 = vmatprep.subr.mxu0 0.0
    %1901 = vmatpush1.msra.mxu0 0.0
    %1902 = vmatprep.subr.mxu0 0.0
    %1903 = vmatpush1.msra.mxu0 0.0
    %1904 = vmatprep.subr.mxu0 0.0
    %1905 = vmatpush1.msra.mxu0 0.0
    %1906 = vmatprep.subr.mxu0 0.0
    %1907 = vmatpush1.msra.mxu0 0.0
    %1908 = vmatprep.subr.mxu0 0.0
    %1909 = vmatpush1.msra.mxu0 0.0
    %1910 = vmatprep.subr.mxu0 0.0
    %1911 = vmatpush1.msra.mxu0 0.0
    %1912 = vmatprep.subr.mxu0 0.0
    %1913 = vmatpush1.msra.mxu0 0.0
    %1914 = vmatprep.subr.mxu0 0.0
    %1915 = vmatpush1.msra.mxu0 0.0
    %1916 = vmatprep.subr.mxu0 0.0
    %1917 = vmatpush1.msra.mxu0 0.0
    %1918 = vmatprep.mubr.f32.mxu0 0.0
    %1919 = vmatmul.mubr.f32.gmra.mrb[0].mxu0 %v1622
    %v1920 = vpop.f32.mrb[0].mxu0
    %v1921 = vadd.f32 0.0, %v1920
    %v1922 = vpop.f32.mrb[0].mxu0
    %v1923 = vadd.f32 0.0, %v1922
    %1924 = vdwg.mxu0
    %v1925 = vadd.f32 %v1633, %v1850
    %v1926 = vadd.f32 %v1634, %v1852
    %v1927 = vadd.f32 %v1635, %v1921
    %v1928 = vadd.f32 %v1636, %v1923
    %v1929 = vmul.f32 %v1779, 0.5
    %v1930 = vtanh.pop %v1929
    %v1931 = vmul.f32 %v1930, 0.5
    %v1932 = vadd.f32 %v1931, 0.5
    %v1933 = vmul.f32 %v1780, 0.5
    %v1934 = vtanh.pop %v1933
    %v1935 = vmul.f32 %v1934, 0.5
    %v1936 = vadd.f32 %v1935, 0.5
    %v1937 = vtanh.pop %v1781
    %v1938 = vmul.f32 %v1782, 0.5
    %v1939 = vtanh.pop %v1938
    %v1940 = vmul.f32 %v1939, 0.5
    %v1941 = vadd.f32 %v1940, 0.5
    %v1942 = vmul.f32 %v1936, %v1602
    %v1943 = vmul.f32 %v1932, %v1937
    %v1944 = vadd.f32 %v1942, %v1943
    %v1945 = vtanh.pop %v1944
    %v1946 = vmul.f32 %v1941, %v1945
    %v1947 = vmul.f32 %v1925, 0.5
    %v1948 = vtanh.pop %v1947
    %v1949 = vmul.f32 %v1948, 0.5
    %v1950 = vadd.f32 %v1949, 0.5
    %v1951 = vmul.f32 %v1926, 0.5
    %v1952 = vtanh.pop %v1951
    %v1953 = vmul.f32 %v1952, 0.5
    %v1954 = vadd.f32 %v1953, 0.5
    %v1955 = vtanh.pop %v1927
    %v1956 = vmul.f32 %v1928, 0.5
    %v1957 = vtanh.pop %v1956
    %v1958 = vmul.f32 %v1957, 0.5
    %v1959 = vadd.f32 %v1958, 0.5
    %v1960 = vmul.f32 %v1954, %v1620
    %v1961 = vmul.f32 %v1950, %v1955
    %v1962 = vadd.f32 %v1960, %v1961
    %v1963 = vtanh.pop %v1962
    %v1964 = vmul.f32 %v1959, %v1963
    %v1965 = vmax.f32 %v1946, 0.0
    %v1966 = vmax.f32 %v1964, 0.0
    %s1967 = scalar_lea.vmem [#allocation3], 48
    %1968 = vst [vmem:[%s1967] sm:$0xff] %v1965
    %1969 = vst [vmem:[%s1967 + $0x8] sm:$0xff] %v1966
    %s1970 = scalar_lea.vmem [#allocation2], 256
    %v1971 = vld [vmem:[%s1970] sm:$0xff]
    %v1972 = vld [vmem:[%s1970 + $0x8] sm:$0xff]
    %v1973 = vld [vmem:[%s1970 + $0x10] sm:$0xff]
    %v1974 = vld [vmem:[%s1970 + $0x18] sm:$0xff]
    %v1975 = vld [vmem:[%s1970 + $0x20] sm:$0xff]
    %v1976 = vld [vmem:[%s1970 + $0x28] sm:$0xff]
    %v1977 = vld [vmem:[%s1970 + $0x30] sm:$0xff]
    %v1978 = vld [vmem:[%s1970 + $0x38] sm:$0xff]
    %1979 = vmatprep.subr.mxu0 %v683
    %1980 = vmatpush1.msra.mxu0 %v682
    %1981 = vmatprep.subr.mxu0 %v687
    %1982 = vmatpush1.msra.mxu0 %v686
    %1983 = vmatprep.subr.mxu0 %v691
    %1984 = vmatpush1.msra.mxu0 %v690
    %1985 = vmatprep.subr.mxu0 %v695
    %1986 = vmatpush1.msra.mxu0 %v694
    %1987 = vmatprep.subr.mxu0 %v699
    %1988 = vmatpush1.msra.mxu0 %v698
    %1989 = vmatprep.subr.mxu0 %v703
    %1990 = vmatpush1.msra.mxu0 %v702
    %1991 = vmatprep.subr.mxu0 %v707
    %1992 = vmatpush1.msra.mxu0 %v706
    %1993 = vmatprep.subr.mxu0 %v711
    %1994 = vmatpush1.msra.mxu0 %v710
    %1995 = vmatprep.subr.mxu0 %v715
    %1996 = vmatpush1.msra.mxu0 %v714
    %1997 = vmatprep.subr.mxu0 %v719
    %1998 = vmatpush1.msra.mxu0 %v718
    %1999 = vmatprep.subr.mxu0 %v723
    %2000 = vmatpush1.msra.mxu0 %v722
    %2001 = vmatprep.subr.mxu0 %v727
    %2002 = vmatpush1.msra.mxu0 %v726
    %2003 = vmatprep.subr.mxu0 %v731
    %2004 = vmatpush1.msra.mxu0 %v730
    %2005 = vmatprep.subr.mxu0 %v735
    %2006 = vmatpush1.msra.mxu0 %v734
    %2007 = vmatprep.subr.mxu0 %v739
    %2008 = vmatpush1.msra.mxu0 %v738
    %2009 = vmatprep.subr.mxu0 %v743
    %2010 = vmatpush1.msra.mxu0 %v742
    %2011 = vmatprep.subr.mxu0 0.0
    %2012 = vmatpush1.msra.mxu0 0.0
    %2013 = vmatprep.subr.mxu0 0.0
    %2014 = vmatpush1.msra.mxu0 0.0
    %2015 = vmatprep.subr.mxu0 0.0
    %2016 = vmatpush1.msra.mxu0 0.0
    %2017 = vmatprep.subr.mxu0 0.0
    %2018 = vmatpush1.msra.mxu0 0.0
    %2019 = vmatprep.subr.mxu0 0.0
    %2020 = vmatpush1.msra.mxu0 0.0
    %2021 = vmatprep.subr.mxu0 0.0
    %2022 = vmatpush1.msra.mxu0 0.0
    %2023 = vmatprep.subr.mxu0 0.0
    %2024 = vmatpush1.msra.mxu0 0.0
    %2025 = vmatprep.subr.mxu0 0.0
    %2026 = vmatpush1.msra.mxu0 0.0
    %2027 = vmatprep.subr.mxu0 0.0
    %2028 = vmatpush1.msra.mxu0 0.0
    %2029 = vmatprep.subr.mxu0 0.0
    %2030 = vmatpush1.msra.mxu0 0.0
    %2031 = vmatprep.subr.mxu0 0.0
    %2032 = vmatpush1.msra.mxu0 0.0
    %2033 = vmatprep.subr.mxu0 0.0
    %2034 = vmatpush1.msra.mxu0 0.0
    %2035 = vmatprep.subr.mxu0 0.0
    %2036 = vmatpush1.msra.mxu0 0.0
    %2037 = vmatprep.subr.mxu0 0.0
    %2038 = vmatpush1.msra.mxu0 0.0
    %2039 = vmatprep.subr.mxu0 0.0
    %2040 = vmatpush1.msra.mxu0 0.0
    %2041 = vmatprep.subr.mxu0 0.0
    %2042 = vmatpush1.msra.mxu0 0.0
    %2043 = vmatprep.mubr.f32.mxu0 0.0
    %2044 = vmatmul.mubr.f32.gmra.mrb[0].mxu0 %v1946
    %v2045 = vpop.f32.mrb[0].mxu0
    %v2046 = vadd.f32 0.0, %v2045
    %v2047 = vpop.f32.mrb[0].mxu0
    %v2048 = vadd.f32 0.0, %v2047
    %2049 = vdwg.mxu0
    %2050 = vmatprep.subr.mxu0 %v685
    %2051 = vmatpush1.msra.mxu0 %v684
    %2052 = vmatprep.subr.mxu0 %v689
    %2053 = vmatpush1.msra.mxu0 %v688
    %2054 = vmatprep.subr.mxu0 %v693
    %2055 = vmatpush1.msra.mxu0 %v692
    %2056 = vmatprep.subr.mxu0 %v697
    %2057 = vmatpush1.msra.mxu0 %v696
    %2058 = vmatprep.subr.mxu0 %v701
    %2059 = vmatpush1.msra.mxu0 %v700
    %2060 = vmatprep.subr.mxu0 %v705
    %2061 = vmatpush1.msra.mxu0 %v704
    %2062 = vmatprep.subr.mxu0 %v709
    %2063 = vmatpush1.msra.mxu0 %v708
    %2064 = vmatprep.subr.mxu0 %v713
    %2065 = vmatpush1.msra.mxu0 %v712
    %2066 = vmatprep.subr.mxu0 %v717
    %2067 = vmatpush1.msra.mxu0 %v716
    %2068 = vmatprep.subr.mxu0 %v721
    %2069 = vmatpush1.msra.mxu0 %v720
    %2070 = vmatprep.subr.mxu0 %v725
    %2071 = vmatpush1.msra.mxu0 %v724
    %2072 = vmatprep.subr.mxu0 %v729
    %2073 = vmatpush1.msra.mxu0 %v728
    %2074 = vmatprep.subr.mxu0 %v733
    %2075 = vmatpush1.msra.mxu0 %v732
    %2076 = vmatprep.subr.mxu0 %v737
    %2077 = vmatpush1.msra.mxu0 %v736
    %2078 = vmatprep.subr.mxu0 %v741
    %2079 = vmatpush1.msra.mxu0 %v740
    %2080 = vmatprep.subr.mxu0 %v745
    %2081 = vmatpush1.msra.mxu0 %v744
    %2082 = vmatprep.subr.mxu0 0.0
    %2083 = vmatpush1.msra.mxu0 0.0
    %2084 = vmatprep.subr.mxu0 0.0
    %2085 = vmatpush1.msra.mxu0 0.0
    %2086 = vmatprep.subr.mxu0 0.0
    %2087 = vmatpush1.msra.mxu0 0.0
    %2088 = vmatprep.subr.mxu0 0.0
    %2089 = vmatpush1.msra.mxu0 0.0
    %2090 = vmatprep.subr.mxu0 0.0
    %2091 = vmatpush1.msra.mxu0 0.0
    %2092 = vmatprep.subr.mxu0 0.0
    %2093 = vmatpush1.msra.mxu0 0.0
    %2094 = vmatprep.subr.mxu0 0.0
    %2095 = vmatpush1.msra.mxu0 0.0
    %2096 = vmatprep.subr.mxu0 0.0
    %2097 = vmatpush1.msra.mxu0 0.0
    %2098 = vmatprep.subr.mxu0 0.0
    %2099 = vmatpush1.msra.mxu0 0.0
    %2100 = vmatprep.subr.mxu0 0.0
    %2101 = vmatpush1.msra.mxu0 0.0
    %2102 = vmatprep.subr.mxu0 0.0
    %2103 = vmatpush1.msra.mxu0 0.0
    %2104 = vmatprep.subr.mxu0 0.0
    %2105 = vmatpush1.msra.mxu0 0.0
    %2106 = vmatprep.subr.mxu0 0.0
    %2107 = vmatpush1.msra.mxu0 0.0
    %2108 = vmatprep.subr.mxu0 0.0
    %2109 = vmatpush1.msra.mxu0 0.0
    %2110 = vmatprep.subr.mxu0 0.0
    %2111 = vmatpush1.msra.mxu0 0.0
    %2112 = vmatprep.subr.mxu0 0.0
    %2113 = vmatpush1.msra.mxu0 0.0
    %2114 = vmatprep.mubr.f32.mxu0 0.0
    %2115 = vmatmul.mubr.f32.gmra.mrb[0].mxu0 %v1946
    %v2116 = vpop.f32.mrb[0].mxu0
    %v2117 = vadd.f32 0.0, %v2116
    %v2118 = vpop.f32.mrb[0].mxu0
    %v2119 = vadd.f32 0.0, %v2118
    %2120 = vdwg.mxu0
    %v2121 = vadd.f32 %v1971, %v2046
    %v2122 = vadd.f32 %v1972, %v2048
    %v2123 = vadd.f32 %v1973, %v2117
    %v2124 = vadd.f32 %v1974, %v2119
    %2125 = vmatprep.subr.mxu0 %v683
    %2126 = vmatpush1.msra.mxu0 %v682
    %2127 = vmatprep.subr.mxu0 %v687
    %2128 = vmatpush1.msra.mxu0 %v686
    %2129 = vmatprep.subr.mxu0 %v691
    %2130 = vmatpush1.msra.mxu0 %v690
    %2131 = vmatprep.subr.mxu0 %v695
    %2132 = vmatpush1.msra.mxu0 %v694
    %2133 = vmatprep.subr.mxu0 %v699
    %2134 = vmatpush1.msra.mxu0 %v698
    %2135 = vmatprep.subr.mxu0 %v703
    %2136 = vmatpush1.msra.mxu0 %v702
    %2137 = vmatprep.subr.mxu0 %v707
    %2138 = vmatpush1.msra.mxu0 %v706
    %2139 = vmatprep.subr.mxu0 %v711
    %2140 = vmatpush1.msra.mxu0 %v710
    %2141 = vmatprep.subr.mxu0 %v715
    %2142 = vmatpush1.msra.mxu0 %v714
    %2143 = vmatprep.subr.mxu0 %v719
    %2144 = vmatpush1.msra.mxu0 %v718
    %2145 = vmatprep.subr.mxu0 %v723
    %2146 = vmatpush1.msra.mxu0 %v722
    %2147 = vmatprep.subr.mxu0 %v727
    %2148 = vmatpush1.msra.mxu0 %v726
    %2149 = vmatprep.subr.mxu0 %v731
    %2150 = vmatpush1.msra.mxu0 %v730
    %2151 = vmatprep.subr.mxu0 %v735
    %2152 = vmatpush1.msra.mxu0 %v734
    %2153 = vmatprep.subr.mxu0 %v739
    %2154 = vmatpush1.msra.mxu0 %v738
    %2155 = vmatprep.subr.mxu0 %v743
    %2156 = vmatpush1.msra.mxu0 %v742
    %2157 = vmatprep.subr.mxu0 0.0
    %2158 = vmatpush1.msra.mxu0 0.0
    %2159 = vmatprep.subr.mxu0 0.0
    %2160 = vmatpush1.msra.mxu0 0.0
    %2161 = vmatprep.subr.mxu0 0.0
    %2162 = vmatpush1.msra.mxu0 0.0
    %2163 = vmatprep.subr.mxu0 0.0
    %2164 = vmatpush1.msra.mxu0 0.0
    %2165 = vmatprep.subr.mxu0 0.0
    %2166 = vmatpush1.msra.mxu0 0.0
    %2167 = vmatprep.subr.mxu0 0.0
    %2168 = vmatpush1.msra.mxu0 0.0
    %2169 = vmatprep.subr.mxu0 0.0
    %2170 = vmatpush1.msra.mxu0 0.0
    %2171 = vmatprep.subr.mxu0 0.0
    %2172 = vmatpush1.msra.mxu0 0.0
    %2173 = vmatprep.subr.mxu0 0.0
    %2174 = vmatpush1.msra.mxu0 0.0
    %2175 = vmatprep.subr.mxu0 0.0
    %2176 = vmatpush1.msra.mxu0 0.0
    %2177 = vmatprep.subr.mxu0 0.0
    %2178 = vmatpush1.msra.mxu0 0.0
    %2179 = vmatprep.subr.mxu0 0.0
    %2180 = vmatpush1.msra.mxu0 0.0
    %2181 = vmatprep.subr.mxu0 0.0
    %2182 = vmatpush1.msra.mxu0 0.0
    %2183 = vmatprep.subr.mxu0 0.0
    %2184 = vmatpush1.msra.mxu0 0.0
    %2185 = vmatprep.subr.mxu0 0.0
    %2186 = vmatpush1.msra.mxu0 0.0
    %2187 = vmatprep.subr.mxu0 0.0
    %2188 = vmatpush1.msra.mxu0 0.0
    %2189 = vmatprep.mubr.f32.mxu0 0.0
    %2190 = vmatmul.mubr.f32.gmra.mrb[0].mxu0 %v1964
    %v2191 = vpop.f32.mrb[0].mxu0
    %v2192 = vadd.f32 0.0, %v2191
    %v2193 = vpop.f32.mrb[0].mxu0
    %v2194 = vadd.f32 0.0, %v2193
    %2195 = vdwg.mxu0
    %2196 = vmatprep.subr.mxu0 %v685
    %2197 = vmatpush1.msra.mxu0 %v684
    %2198 = vmatprep.subr.mxu0 %v689
    %2199 = vmatpush1.msra.mxu0 %v688
    %2200 = vmatprep.subr.mxu0 %v693
    %2201 = vmatpush1.msra.mxu0 %v692
    %2202 = vmatprep.subr.mxu0 %v697
    %2203 = vmatpush1.msra.mxu0 %v696
    %2204 = vmatprep.subr.mxu0 %v701
    %2205 = vmatpush1.msra.mxu0 %v700
    %2206 = vmatprep.subr.mxu0 %v705
    %2207 = vmatpush1.msra.mxu0 %v704
    %2208 = vmatprep.subr.mxu0 %v709
    %2209 = vmatpush1.msra.mxu0 %v708
    %2210 = vmatprep.subr.mxu0 %v713
    %2211 = vmatpush1.msra.mxu0 %v712
    %2212 = vmatprep.subr.mxu0 %v717
    %2213 = vmatpush1.msra.mxu0 %v716
    %2214 = vmatprep.subr.mxu0 %v721
    %2215 = vmatpush1.msra.mxu0 %v720
    %2216 = vmatprep.subr.mxu0 %v725
    %2217 = vmatpush1.msra.mxu0 %v724
    %2218 = vmatprep.subr.mxu0 %v729
    %2219 = vmatpush1.msra.mxu0 %v728
    %2220 = vmatprep.subr.mxu0 %v733
    %2221 = vmatpush1.msra.mxu0 %v732
    %2222 = vmatprep.subr.mxu0 %v737
    %2223 = vmatpush1.msra.mxu0 %v736
    %2224 = vmatprep.subr.mxu0 %v741
    %2225 = vmatpush1.msra.mxu0 %v740
    %2226 = vmatprep.subr.mxu0 %v745
    %2227 = vmatpush1.msra.mxu0 %v744
    %2228 = vmatprep.subr.mxu0 0.0
    %2229 = vmatpush1.msra.mxu0 0.0
    %2230 = vmatprep.subr.mxu0 0.0
    %2231 = vmatpush1.msra.mxu0 0.0
    %2232 = vmatprep.subr.mxu0 0.0
    %2233 = vmatpush1.msra.mxu0 0.0
    %2234 = vmatprep.subr.mxu0 0.0
    %2235 = vmatpush1.msra.mxu0 0.0
    %2236 = vmatprep.subr.mxu0 0.0
    %2237 = vmatpush1.msra.mxu0 0.0
    %2238 = vmatprep.subr.mxu0 0.0
    %2239 = vmatpush1.msra.mxu0 0.0
    %2240 = vmatprep.subr.mxu0 0.0
    %2241 = vmatpush1.msra.mxu0 0.0
    %2242 = vmatprep.subr.mxu0 0.0
    %2243 = vmatpush1.msra.mxu0 0.0
    %2244 = vmatprep.subr.mxu0 0.0
    %2245 = vmatpush1.msra.mxu0 0.0
    %2246 = vmatprep.subr.mxu0 0.0
    %2247 = vmatpush1.msra.mxu0 0.0
    %2248 = vmatprep.subr.mxu0 0.0
    %2249 = vmatpush1.msra.mxu0 0.0
    %2250 = vmatprep.subr.mxu0 0.0
    %2251 = vmatpush1.msra.mxu0 0.0
    %2252 = vmatprep.subr.mxu0 0.0
    %2253 = vmatpush1.msra.mxu0 0.0
    %2254 = vmatprep.subr.mxu0 0.0
    %2255 = vmatpush1.msra.mxu0 0.0
    %2256 = vmatprep.subr.mxu0 0.0
    %2257 = vmatpush1.msra.mxu0 0.0
    %2258 = vmatprep.subr.mxu0 0.0
    %2259 = vmatpush1.msra.mxu0 0.0
    %2260 = vmatprep.mubr.f32.mxu0 0.0
    %2261 = vmatmul.mubr.f32.gmra.mrb[0].mxu0 %v1964
    %v2262 = vpop.f32.mrb[0].mxu0
    %v2263 = vadd.f32 0.0, %v2262
    %v2264 = vpop.f32.mrb[0].mxu0
    %v2265 = vadd.f32 0.0, %v2264
    %2266 = vdwg.mxu0
    %v2267 = vadd.f32 %v1975, %v2192
    %v2268 = vadd.f32 %v1976, %v2194
    %v2269 = vadd.f32 %v1977, %v2263
    %v2270 = vadd.f32 %v1978, %v2265
    %v2271 = vmul.f32 %v2121, 0.5
    %v2272 = vtanh.pop %v2271
    %v2273 = vmul.f32 %v2272, 0.5
    %v2274 = vadd.f32 %v2273, 0.5
    %v2275 = vmul.f32 %v2122, 0.5
    %v2276 = vtanh.pop %v2275
    %v2277 = vmul.f32 %v2276, 0.5
    %v2278 = vadd.f32 %v2277, 0.5
    %v2279 = vtanh.pop %v2123
    %v2280 = vmul.f32 %v2124, 0.5
    %v2281 = vtanh.pop %v2280
    %v2282 = vmul.f32 %v2281, 0.5
    %v2283 = vadd.f32 %v2282, 0.5
    %v2284 = vmul.f32 %v2278, %v1944
    %v2285 = vmul.f32 %v2274, %v2279
    %v2286 = vadd.f32 %v2284, %v2285
    %v2287 = vtanh.pop %v2286
    %v2288 = vmul.f32 %v2283, %v2287
    %v2289 = vmul.f32 %v2267, 0.5
    %v2290 = vtanh.pop %v2289
    %v2291 = vmul.f32 %v2290, 0.5
    %v2292 = vadd.f32 %v2291, 0.5
    %v2293 = vmul.f32 %v2268, 0.5
    %v2294 = vtanh.pop %v2293
    %v2295 = vmul.f32 %v2294, 0.5
    %v2296 = vadd.f32 %v2295, 0.5
    %v2297 = vtanh.pop %v2269
    %v2298 = vmul.f32 %v2270, 0.5
    %v2299 = vtanh.pop %v2298
    %v2300 = vmul.f32 %v2299, 0.5
    %v2301 = vadd.f32 %v2300, 0.5
    %v2302 = vmul.f32 %v2296, %v1962
    %v2303 = vmul.f32 %v2292, %v2297
    %v2304 = vadd.f32 %v2302, %v2303
    %v2305 = vtanh.pop %v2304
    %v2306 = vmul.f32 %v2301, %v2305
    %v2307 = vmax.f32 %v2288, 0.0
    %v2308 = vmax.f32 %v2306, 0.0
    %s2309 = scalar_lea.vmem [#allocation3], 64
    %2310 = vst [vmem:[%s2309] sm:$0xff] %v2307
    %2311 = vst [vmem:[%s2309 + $0x8] sm:$0xff] %v2308
    %s2312 = scalar_lea.vmem [#allocation2], 320
    %v2313 = vld [vmem:[%s2312] sm:$0xff]
    %v2314 = vld [vmem:[%s2312 + $0x8] sm:$0xff]
    %v2315 = vld [vmem:[%s2312 + $0x10] sm:$0xff]
    %v2316 = vld [vmem:[%s2312 + $0x18] sm:$0xff]
    %v2317 = vld [vmem:[%s2312 + $0x20] sm:$0xff]
    %v2318 = vld [vmem:[%s2312 + $0x28] sm:$0xff]
    %v2319 = vld [vmem:[%s2312 + $0x30] sm:$0xff]
    %v2320 = vld [vmem:[%s2312 + $0x38] sm:$0xff]
    %2321 = vmatprep.subr.mxu0 %v683
    %2322 = vmatpush1.msra.mxu0 %v682
    %2323 = vmatprep.subr.mxu0 %v687
    %2324 = vmatpush1.msra.mxu0 %v686
    %2325 = vmatprep.subr.mxu0 %v691
    %2326 = vmatpush1.msra.mxu0 %v690
    %2327 = vmatprep.subr.mxu0 %v695
    %2328 = vmatpush1.msra.mxu0 %v694
    %2329 = vmatprep.subr.mxu0 %v699
    %2330 = vmatpush1.msra.mxu0 %v698
    %2331 = vmatprep.subr.mxu0 %v703
    %2332 = vmatpush1.msra.mxu0 %v702
    %2333 = vmatprep.subr.mxu0 %v707
    %2334 = vmatpush1.msra.mxu0 %v706
    %2335 = vmatprep.subr.mxu0 %v711
    %2336 = vmatpush1.msra.mxu0 %v710
    %2337 = vmatprep.subr.mxu0 %v715
    %2338 = vmatpush1.msra.mxu0 %v714
    %2339 = vmatprep.subr.mxu0 %v719
    %2340 = vmatpush1.msra.mxu0 %v718
    %2341 = vmatprep.subr.mxu0 %v723
    %2342 = vmatpush1.msra.mxu0 %v722
    %2343 = vmatprep.subr.mxu0 %v727
    %2344 = vmatpush1.msra.mxu0 %v726
    %2345 = vmatprep.subr.mxu0 %v731
    %2346 = vmatpush1.msra.mxu0 %v730
    %2347 = vmatprep.subr.mxu0 %v735
    %2348 = vmatpush1.msra.mxu0 %v734
    %2349 = vmatprep.subr.mxu0 %v739
    %2350 = vmatpush1.msra.mxu0 %v738
    %2351 = vmatprep.subr.mxu0 %v743
    %2352 = vmatpush1.msra.mxu0 %v742
    %2353 = vmatprep.subr.mxu0 0.0
    %2354 = vmatpush1.msra.mxu0 0.0
    %2355 = vmatprep.subr.mxu0 0.0
    %2356 = vmatpush1.msra.mxu0 0.0
    %2357 = vmatprep.subr.mxu0 0.0
    %2358 = vmatpush1.msra.mxu0 0.0
    %2359 = vmatprep.subr.mxu0 0.0
    %2360 = vmatpush1.msra.mxu0 0.0
    %2361 = vmatprep.subr.mxu0 0.0
    %2362 = vmatpush1.msra.mxu0 0.0
    %2363 = vmatprep.subr.mxu0 0.0
    %2364 = vmatpush1.msra.mxu0 0.0
    %2365 = vmatprep.subr.mxu0 0.0
    %2366 = vmatpush1.msra.mxu0 0.0
    %2367 = vmatprep.subr.mxu0 0.0
    %2368 = vmatpush1.msra.mxu0 0.0
    %2369 = vmatprep.subr.mxu0 0.0
    %2370 = vmatpush1.msra.mxu0 0.0
    %2371 = vmatprep.subr.mxu0 0.0
    %2372 = vmatpush1.msra.mxu0 0.0
    %2373 = vmatprep.subr.mxu0 0.0
    %2374 = vmatpush1.msra.mxu0 0.0
    %2375 = vmatprep.subr.mxu0 0.0
    %2376 = vmatpush1.msra.mxu0 0.0
    %2377 = vmatprep.subr.mxu0 0.0
    %2378 = vmatpush1.msra.mxu0 0.0
    %2379 = vmatprep.subr.mxu0 0.0
    %2380 = vmatpush1.msra.mxu0 0.0
    %2381 = vmatprep.subr.mxu0 0.0
    %2382 = vmatpush1.msra.mxu0 0.0
    %2383 = vmatprep.subr.mxu0 0.0
    %2384 = vmatpush1.msra.mxu0 0.0
    %2385 = vmatprep.mubr.f32.mxu0 0.0
    %2386 = vmatmul.mubr.f32.gmra.mrb[0].mxu0 %v2288
    %v2387 = vpop.f32.mrb[0].mxu0
    %v2388 = vadd.f32 0.0, %v2387
    %v2389 = vpop.f32.mrb[0].mxu0
    %v2390 = vadd.f32 0.0, %v2389
    %2391 = vdwg.mxu0
    %2392 = vmatprep.subr.mxu0 %v685
    %2393 = vmatpush1.msra.mxu0 %v684
    %2394 = vmatprep.subr.mxu0 %v689
    %2395 = vmatpush1.msra.mxu0 %v688
    %2396 = vmatprep.subr.mxu0 %v693
    %2397 = vmatpush1.msra.mxu0 %v692
    %2398 = vmatprep.subr.mxu0 %v697
    %2399 = vmatpush1.msra.mxu0 %v696
    %2400 = vmatprep.subr.mxu0 %v701
    %2401 = vmatpush1.msra.mxu0 %v700
    %2402 = vmatprep.subr.mxu0 %v705
    %2403 = vmatpush1.msra.mxu0 %v704
    %2404 = vmatprep.subr.mxu0 %v709
    %2405 = vmatpush1.msra.mxu0 %v708
    %2406 = vmatprep.subr.mxu0 %v713
    %2407 = vmatpush1.msra.mxu0 %v712
    %2408 = vmatprep.subr.mxu0 %v717
    %2409 = vmatpush1.msra.mxu0 %v716
    %2410 = vmatprep.subr.mxu0 %v721
    %2411 = vmatpush1.msra.mxu0 %v720
    %2412 = vmatprep.subr.mxu0 %v725
    %2413 = vmatpush1.msra.mxu0 %v724
    %2414 = vmatprep.subr.mxu0 %v729
    %2415 = vmatpush1.msra.mxu0 %v728
    %2416 = vmatprep.subr.mxu0 %v733
    %2417 = vmatpush1.msra.mxu0 %v732
    %2418 = vmatprep.subr.mxu0 %v737
    %2419 = vmatpush1.msra.mxu0 %v736
    %2420 = vmatprep.subr.mxu0 %v741
    %2421 = vmatpush1.msra.mxu0 %v740
    %2422 = vmatprep.subr.mxu0 %v745
    %2423 = vmatpush1.msra.mxu0 %v744
    %2424 = vmatprep.subr.mxu0 0.0
    %2425 = vmatpush1.msra.mxu0 0.0
    %2426 = vmatprep.subr.mxu0 0.0
    %2427 = vmatpush1.msra.mxu0 0.0
    %2428 = vmatprep.subr.mxu0 0.0
    %2429 = vmatpush1.msra.mxu0 0.0
    %2430 = vmatprep.subr.mxu0 0.0
    %2431 = vmatpush1.msra.mxu0 0.0
    %2432 = vmatprep.subr.mxu0 0.0
    %2433 = vmatpush1.msra.mxu0 0.0
    %2434 = vmatprep.subr.mxu0 0.0
    %2435 = vmatpush1.msra.mxu0 0.0
    %2436 = vmatprep.subr.mxu0 0.0
    %2437 = vmatpush1.msra.mxu0 0.0
    %2438 = vmatprep.subr.mxu0 0.0
    %2439 = vmatpush1.msra.mxu0 0.0
    %2440 = vmatprep.subr.mxu0 0.0
    %2441 = vmatpush1.msra.mxu0 0.0
    %2442 = vmatprep.subr.mxu0 0.0
    %2443 = vmatpush1.msra.mxu0 0.0
    %2444 = vmatprep.subr.mxu0 0.0
    %2445 = vmatpush1.msra.mxu0 0.0
    %2446 = vmatprep.subr.mxu0 0.0
    %2447 = vmatpush1.msra.mxu0 0.0
    %2448 = vmatprep.subr.mxu0 0.0
    %2449 = vmatpush1.msra.mxu0 0.0
    %2450 = vmatprep.subr.mxu0 0.0
    %2451 = vmatpush1.msra.mxu0 0.0
    %2452 = vmatprep.subr.mxu0 0.0
    %2453 = vmatpush1.msra.mxu0 0.0
    %2454 = vmatprep.subr.mxu0 0.0
    %2455 = vmatpush1.msra.mxu0 0.0
    %2456 = vmatprep.mubr.f32.mxu0 0.0
    %2457 = vmatmul.mubr.f32.gmra.mrb[0].mxu0 %v2288
    %v2458 = vpop.f32.mrb[0].mxu0
    %v2459 = vadd.f32 0.0, %v2458
    %v2460 = vpop.f32.mrb[0].mxu0
    %v2461 = vadd.f32 0.0, %v2460
    %2462 = vdwg.mxu0
    %v2463 = vadd.f32 %v2313, %v2388
    %v2464 = vadd.f32 %v2314, %v2390
    %v2465 = vadd.f32 %v2315, %v2459
    %v2466 = vadd.f32 %v2316, %v2461
    %2467 = vmatprep.subr.mxu0 %v683
    %2468 = vmatpush1.msra.mxu0 %v682
    %2469 = vmatprep.subr.mxu0 %v687
    %2470 = vmatpush1.msra.mxu0 %v686
    %2471 = vmatprep.subr.mxu0 %v691
    %2472 = vmatpush1.msra.mxu0 %v690
    %2473 = vmatprep.subr.mxu0 %v695
    %2474 = vmatpush1.msra.mxu0 %v694
    %2475 = vmatprep.subr.mxu0 %v699
    %2476 = vmatpush1.msra.mxu0 %v698
    %2477 = vmatprep.subr.mxu0 %v703
    %2478 = vmatpush1.msra.mxu0 %v702
    %2479 = vmatprep.subr.mxu0 %v707
    %2480 = vmatpush1.msra.mxu0 %v706
    %2481 = vmatprep.subr.mxu0 %v711
    %2482 = vmatpush1.msra.mxu0 %v710
    %2483 = vmatprep.subr.mxu0 %v715
    %2484 = vmatpush1.msra.mxu0 %v714
    %2485 = vmatprep.subr.mxu0 %v719
    %2486 = vmatpush1.msra.mxu0 %v718
    %2487 = vmatprep.subr.mxu0 %v723
    %2488 = vmatpush1.msra.mxu0 %v722
    %2489 = vmatprep.subr.mxu0 %v727
    %2490 = vmatpush1.msra.mxu0 %v726
    %2491 = vmatprep.subr.mxu0 %v731
    %2492 = vmatpush1.msra.mxu0 %v730
    %2493 = vmatprep.subr.mxu0 %v735
    %2494 = vmatpush1.msra.mxu0 %v734
    %2495 = vmatprep.subr.mxu0 %v739
    %2496 = vmatpush1.msra.mxu0 %v738
    %2497 = vmatprep.subr.mxu0 %v743
    %2498 = vmatpush1.msra.mxu0 %v742
    %2499 = vmatprep.subr.mxu0 0.0
    %2500 = vmatpush1.msra.mxu0 0.0
    %2501 = vmatprep.subr.mxu0 0.0
    %2502 = vmatpush1.msra.mxu0 0.0
    %2503 = vmatprep.subr.mxu0 0.0
    %2504 = vmatpush1.msra.mxu0 0.0
    %2505 = vmatprep.subr.mxu0 0.0
    %2506 = vmatpush1.msra.mxu0 0.0
    %2507 = vmatprep.subr.mxu0 0.0
    %2508 = vmatpush1.msra.mxu0 0.0
    %2509 = vmatprep.subr.mxu0 0.0
    %2510 = vmatpush1.msra.mxu0 0.0
    %2511 = vmatprep.subr.mxu0 0.0
    %2512 = vmatpush1.msra.mxu0 0.0
    %2513 = vmatprep.subr.mxu0 0.0
    %2514 = vmatpush1.msra.mxu0 0.0
    %2515 = vmatprep.subr.mxu0 0.0
    %2516 = vmatpush1.msra.mxu0 0.0
    %2517 = vmatprep.subr.mxu0 0.0
    %2518 = vmatpush1.msra.mxu0 0.0
    %2519 = vmatprep.subr.mxu0 0.0
    %2520 = vmatpush1.msra.mxu0 0.0
    %2521 = vmatprep.subr.mxu0 0.0
    %2522 = vmatpush1.msra.mxu0 0.0
    %2523 = vmatprep.subr.mxu0 0.0
    %2524 = vmatpush1.msra.mxu0 0.0
    %2525 = vmatprep.subr.mxu0 0.0
    %2526 = vmatpush1.msra.mxu0 0.0
    %2527 = vmatprep.subr.mxu0 0.0
    %2528 = vmatpush1.msra.mxu0 0.0
    %2529 = vmatprep.subr.mxu0 0.0
    %2530 = vmatpush1.msra.mxu0 0.0
    %2531 = vmatprep.mubr.f32.mxu0 0.0
    %2532 = vmatmul.mubr.f32.gmra.mrb[0].mxu0 %v2306
    %v2533 = vpop.f32.mrb[0].mxu0
    %v2534 = vadd.f32 0.0, %v2533
    %v2535 = vpop.f32.mrb[0].mxu0
    %v2536 = vadd.f32 0.0, %v2535
    %2537 = vdwg.mxu0
    %2538 = vmatprep.subr.mxu0 %v685
    %2539 = vmatpush1.msra.mxu0 %v684
    %2540 = vmatprep.subr.mxu0 %v689
    %2541 = vmatpush1.msra.mxu0 %v688
    %2542 = vmatprep.subr.mxu0 %v693
    %2543 = vmatpush1.msra.mxu0 %v692
    %2544 = vmatprep.subr.mxu0 %v697
    %2545 = vmatpush1.msra.mxu0 %v696
    %2546 = vmatprep.subr.mxu0 %v701
    %2547 = vmatpush1.msra.mxu0 %v700
    %2548 = vmatprep.subr.mxu0 %v705
    %2549 = vmatpush1.msra.mxu0 %v704
    %2550 = vmatprep.subr.mxu0 %v709
    %2551 = vmatpush1.msra.mxu0 %v708
    %2552 = vmatprep.subr.mxu0 %v713
    %2553 = vmatpush1.msra.mxu0 %v712
    %2554 = vmatprep.subr.mxu0 %v717
    %2555 = vmatpush1.msra.mxu0 %v716
    %2556 = vmatprep.subr.mxu0 %v721
    %2557 = vmatpush1.msra.mxu0 %v720
    %2558 = vmatprep.subr.mxu0 %v725
    %2559 = vmatpush1.msra.mxu0 %v724
    %2560 = vmatprep.subr.mxu0 %v729
    %2561 = vmatpush1.msra.mxu0 %v728
    %2562 = vmatprep.subr.mxu0 %v733
    %2563 = vmatpush1.msra.mxu0 %v732
    %2564 = vmatprep.subr.mxu0 %v737
    %2565 = vmatpush1.msra.mxu0 %v736
    %2566 = vmatprep.subr.mxu0 %v741
    %2567 = vmatpush1.msra.mxu0 %v740
    %2568 = vmatprep.subr.mxu0 %v745
    %2569 = vmatpush1.msra.mxu0 %v744
    %2570 = vmatprep.subr.mxu0 0.0
    %2571 = vmatpush1.msra.mxu0 0.0
    %2572 = vmatprep.subr.mxu0 0.0
    %2573 = vmatpush1.msra.mxu0 0.0
    %2574 = vmatprep.subr.mxu0 0.0
    %2575 = vmatpush1.msra.mxu0 0.0
    %2576 = vmatprep.subr.mxu0 0.0
    %2577 = vmatpush1.msra.mxu0 0.0
    %2578 = vmatprep.subr.mxu0 0.0
    %2579 = vmatpush1.msra.mxu0 0.0
    %2580 = vmatprep.subr.mxu0 0.0
    %2581 = vmatpush1.msra.mxu0 0.0
    %2582 = vmatprep.subr.mxu0 0.0
    %2583 = vmatpush1.msra.mxu0 0.0
    %2584 = vmatprep.subr.mxu0 0.0
    %2585 = vmatpush1.msra.mxu0 0.0
    %2586 = vmatprep.subr.mxu0 0.0
    %2587 = vmatpush1.msra.mxu0 0.0
    %2588 = vmatprep.subr.mxu0 0.0
    %2589 = vmatpush1.msra.mxu0 0.0
    %2590 = vmatprep.subr.mxu0 0.0
    %2591 = vmatpush1.msra.mxu0 0.0
    %2592 = vmatprep.subr.mxu0 0.0
    %2593 = vmatpush1.msra.mxu0 0.0
    %2594 = vmatprep.subr.mxu0 0.0
    %2595 = vmatpush1.msra.mxu0 0.0
    %2596 = vmatprep.subr.mxu0 0.0
    %2597 = vmatpush1.msra.mxu0 0.0
    %2598 = vmatprep.subr.mxu0 0.0
    %2599 = vmatpush1.msra.mxu0 0.0
    %2600 = vmatprep.subr.mxu0 0.0
    %2601 = vmatpush1.msra.mxu0 0.0
    %2602 = vmatprep.mubr.f32.mxu0 0.0
    %2603 = vmatmul.mubr.f32.gmra.mrb[0].mxu0 %v2306
    %v2604 = vpop.f32.mrb[0].mxu0
    %v2605 = vadd.f32 0.0, %v2604
    %v2606 = vpop.f32.mrb[0].mxu0
    %v2607 = vadd.f32 0.0, %v2606
    %2608 = vdwg.mxu0
    %v2609 = vadd.f32 %v2317, %v2534
    %v2610 = vadd.f32 %v2318, %v2536
    %v2611 = vadd.f32 %v2319, %v2605
    %v2612 = vadd.f32 %v2320, %v2607
    %v2613 = vmul.f32 %v2463, 0.5
    %v2614 = vtanh.pop %v2613
    %v2615 = vmul.f32 %v2614, 0.5
    %v2616 = vadd.f32 %v2615, 0.5
    %v2617 = vmul.f32 %v2464, 0.5
    %v2618 = vtanh.pop %v2617
    %v2619 = vmul.f32 %v2618, 0.5
    %v2620 = vadd.f32 %v2619, 0.5
    %v2621 = vtanh.pop %v2465
    %v2622 = vmul.f32 %v2466, 0.5
    %v2623 = vtanh.pop %v2622
    %v2624 = vmul.f32 %v2623, 0.5
    %v2625 = vadd.f32 %v2624, 0.5
    %v2626 = vmul.f32 %v2620, %v2286
    %v2627 = vmul.f32 %v2616, %v2621
    %v2628 = vadd.f32 %v2626, %v2627
    %v2629 = vtanh.pop %v2628
    %v2630 = vmul.f32 %v2625, %v2629
    %v2631 = vmul.f32 %v2609, 0.5
    %v2632 = vtanh.pop %v2631
    %v2633 = vmul.f32 %v2632, 0.5
    %v2634 = vadd.f32 %v2633, 0.5
    %v2635 = vmul.f32 %v2610, 0.5
    %v2636 = vtanh.pop %v2635
    %v2637 = vmul.f32 %v2636, 0.5
    %v2638 = vadd.f32 %v2637, 0.5
    %v2639 = vtanh.pop %v2611
    %v2640 = vmul.f32 %v2612, 0.5
    %v2641 = vtanh.pop %v2640
    %v2642 = vmul.f32 %v2641, 0.5
    %v2643 = vadd.f32 %v2642, 0.5
    %v2644 = vmul.f32 %v2638, %v2304
    %v2645 = vmul.f32 %v2634, %v2639
    %v2646 = vadd.f32 %v2644, %v2645
    %v2647 = vtanh.pop %v2646
    %v2648 = vmul.f32 %v2643, %v2647
    %v2649 = vmax.f32 %v2630, 0.0
    %v2650 = vmax.f32 %v2648, 0.0
    %s2651 = scalar_lea.vmem [#allocation3], 80
    %2652 = vst [vmem:[%s2651] sm:$0xff] %v2649
    %2653 = vst [vmem:[%s2651 + $0x8] sm:$0xff] %v2650
    %s2654 = scalar_lea.vmem [#allocation2], 384
    %v2655 = vld [vmem:[%s2654] sm:$0xff]
    %v2656 = vld [vmem:[%s2654 + $0x8] sm:$0xff]
    %v2657 = vld [vmem:[%s2654 + $0x10] sm:$0xff]
    %v2658 = vld [vmem:[%s2654 + $0x18] sm:$0xff]
    %v2659 = vld [vmem:[%s2654 + $0x20] sm:$0xff]
    %v2660 = vld [vmem:[%s2654 + $0x28] sm:$0xff]
    %v2661 = vld [vmem:[%s2654 + $0x30] sm:$0xff]
    %v2662 = vld [vmem:[%s2654 + $0x38] sm:$0xff]
    %2663 = vmatprep.subr.mxu0 %v683
    %2664 = vmatpush1.msra.mxu0 %v682
    %2665 = vmatprep.subr.mxu0 %v687
    %2666 = vmatpush1.msra.mxu0 %v686
    %2667 = vmatprep.subr.mxu0 %v691
    %2668 = vmatpush1.msra.mxu0 %v690
    %2669 = vmatprep.subr.mxu0 %v695
    %2670 = vmatpush1.msra.mxu0 %v694
    %2671 = vmatprep.subr.mxu0 %v699
    %2672 = vmatpush1.msra.mxu0 %v698
    %2673 = vmatprep.subr.mxu0 %v703
    %2674 = vmatpush1.msra.mxu0 %v702
    %2675 = vmatprep.subr.mxu0 %v707
    %2676 = vmatpush1.msra.mxu0 %v706
    %2677 = vmatprep.subr.mxu0 %v711
    %2678 = vmatpush1.msra.mxu0 %v710
    %2679 = vmatprep.subr.mxu0 %v715
    %2680 = vmatpush1.msra.mxu0 %v714
    %2681 = vmatprep.subr.mxu0 %v719
    %2682 = vmatpush1.msra.mxu0 %v718
    %2683 = vmatprep.subr.mxu0 %v723
    %2684 = vmatpush1.msra.mxu0 %v722
    %2685 = vmatprep.subr.mxu0 %v727
    %2686 = vmatpush1.msra.mxu0 %v726
    %2687 = vmatprep.subr.mxu0 %v731
    %2688 = vmatpush1.msra.mxu0 %v730
    %2689 = vmatprep.subr.mxu0 %v735
    %2690 = vmatpush1.msra.mxu0 %v734
    %2691 = vmatprep.subr.mxu0 %v739
    %2692 = vmatpush1.msra.mxu0 %v738
    %2693 = vmatprep.subr.mxu0 %v743
    %2694 = vmatpush1.msra.mxu0 %v742
    %2695 = vmatprep.subr.mxu0 0.0
    %2696 = vmatpush1.msra.mxu0 0.0
    %2697 = vmatprep.subr.mxu0 0.0
    %2698 = vmatpush1.msra.mxu0 0.0
    %2699 = vmatprep.subr.mxu0 0.0
    %2700 = vmatpush1.msra.mxu0 0.0
    %2701 = vmatprep.subr.mxu0 0.0
    %2702 = vmatpush1.msra.mxu0 0.0
    %2703 = vmatprep.subr.mxu0 0.0
    %2704 = vmatpush1.msra.mxu0 0.0
    %2705 = vmatprep.subr.mxu0 0.0
    %2706 = vmatpush1.msra.mxu0 0.0
    %2707 = vmatprep.subr.mxu0 0.0
    %2708 = vmatpush1.msra.mxu0 0.0
    %2709 = vmatprep.subr.mxu0 0.0
    %2710 = vmatpush1.msra.mxu0 0.0
    %2711 = vmatprep.subr.mxu0 0.0
    %2712 = vmatpush1.msra.mxu0 0.0
    %2713 = vmatprep.subr.mxu0 0.0
    %2714 = vmatpush1.msra.mxu0 0.0
    %2715 = vmatprep.subr.mxu0 0.0
    %2716 = vmatpush1.msra.mxu0 0.0
    %2717 = vmatprep.subr.mxu0 0.0
    %2718 = vmatpush1.msra.mxu0 0.0
    %2719 = vmatprep.subr.mxu0 0.0
    %2720 = vmatpush1.msra.mxu0 0.0
    %2721 = vmatprep.subr.mxu0 0.0
    %2722 = vmatpush1.msra.mxu0 0.0
    %2723 = vmatprep.subr.mxu0 0.0
    %2724 = vmatpush1.msra.mxu0 0.0
    %2725 = vmatprep.subr.mxu0 0.0
    %2726 = vmatpush1.msra.mxu0 0.0
    %2727 = vmatprep.mubr.f32.mxu0 0.0
    %2728 = vmatmul.mubr.f32.gmra.mrb[0].mxu0 %v2630
    %v2729 = vpop.f32.mrb[0].mxu0
    %v2730 = vadd.f32 0.0, %v2729
    %v2731 = vpop.f32.mrb[0].mxu0
    %v2732 = vadd.f32 0.0, %v2731
    %2733 = vdwg.mxu0
    %2734 = vmatprep.subr.mxu0 %v685
    %2735 = vmatpush1.msra.mxu0 %v684
    %2736 = vmatprep.subr.mxu0 %v689
    %2737 = vmatpush1.msra.mxu0 %v688
    %2738 = vmatprep.subr.mxu0 %v693
    %2739 = vmatpush1.msra.mxu0 %v692
    %2740 = vmatprep.subr.mxu0 %v697
    %2741 = vmatpush1.msra.mxu0 %v696
    %2742 = vmatprep.subr.mxu0 %v701
    %2743 = vmatpush1.msra.mxu0 %v700
    %2744 = vmatprep.subr.mxu0 %v705
    %2745 = vmatpush1.msra.mxu0 %v704
    %2746 = vmatprep.subr.mxu0 %v709
    %2747 = vmatpush1.msra.mxu0 %v708
    %2748 = vmatprep.subr.mxu0 %v713
    %2749 = vmatpush1.msra.mxu0 %v712
    %2750 = vmatprep.subr.mxu0 %v717
    %2751 = vmatpush1.msra.mxu0 %v716
    %2752 = vmatprep.subr.mxu0 %v721
    %2753 = vmatpush1.msra.mxu0 %v720
    %2754 = vmatprep.subr.mxu0 %v725
    %2755 = vmatpush1.msra.mxu0 %v724
    %2756 = vmatprep.subr.mxu0 %v729
    %2757 = vmatpush1.msra.mxu0 %v728
    %2758 = vmatprep.subr.mxu0 %v733
    %2759 = vmatpush1.msra.mxu0 %v732
    %2760 = vmatprep.subr.mxu0 %v737
    %2761 = vmatpush1.msra.mxu0 %v736
    %2762 = vmatprep.subr.mxu0 %v741
    %2763 = vmatpush1.msra.mxu0 %v740
    %2764 = vmatprep.subr.mxu0 %v745
    %2765 = vmatpush1.msra.mxu0 %v744
    %2766 = vmatprep.subr.mxu0 0.0
    %2767 = vmatpush1.msra.mxu0 0.0
    %2768 = vmatprep.subr.mxu0 0.0
    %2769 = vmatpush1.msra.mxu0 0.0
    %2770 = vmatprep.subr.mxu0 0.0
    %2771 = vmatpush1.msra.mxu0 0.0
    %2772 = vmatprep.subr.mxu0 0.0
    %2773 = vmatpush1.msra.mxu0 0.0
    %2774 = vmatprep.subr.mxu0 0.0
    %2775 = vmatpush1.msra.mxu0 0.0
    %2776 = vmatprep.subr.mxu0 0.0
    %2777 = vmatpush1.msra.mxu0 0.0
    %2778 = vmatprep.subr.mxu0 0.0
    %2779 = vmatpush1.msra.mxu0 0.0
    %2780 = vmatprep.subr.mxu0 0.0
    %2781 = vmatpush1.msra.mxu0 0.0
    %2782 = vmatprep.subr.mxu0 0.0
    %2783 = vmatpush1.msra.mxu0 0.0
    %2784 = vmatprep.subr.mxu0 0.0
    %2785 = vmatpush1.msra.mxu0 0.0
    %2786 = vmatprep.subr.mxu0 0.0
    %2787 = vmatpush1.msra.mxu0 0.0
    %2788 = vmatprep.subr.mxu0 0.0
    %2789 = vmatpush1.msra.mxu0 0.0
    %2790 = vmatprep.subr.mxu0 0.0
    %2791 = vmatpush1.msra.mxu0 0.0
    %2792 = vmatprep.subr.mxu0 0.0
    %2793 = vmatpush1.msra.mxu0 0.0
    %2794 = vmatprep.subr.mxu0 0.0
    %2795 = vmatpush1.msra.mxu0 0.0
    %2796 = vmatprep.subr.mxu0 0.0
    %2797 = vmatpush1.msra.mxu0 0.0
    %2798 = vmatprep.mubr.f32.mxu0 0.0
    %2799 = vmatmul.mubr.f32.gmra.mrb[0].mxu0 %v2630
    %v2800 = vpop.f32.mrb[0].mxu0
    %v2801 = vadd.f32 0.0, %v2800
    %v2802 = vpop.f32.mrb[0].mxu0
    %v2803 = vadd.f32 0.0, %v2802
    %2804 = vdwg.mxu0
    %v2805 = vadd.f32 %v2655, %v2730
    %v2806 = vadd.f32 %v2656, %v2732
    %v2807 = vadd.f32 %v2657, %v2801
    %v2808 = vadd.f32 %v2658, %v2803
    %2809 = vmatprep.subr.mxu0 %v683
    %2810 = vmatpush1.msra.mxu0 %v682
    %2811 = vmatprep.subr.mxu0 %v687
    %2812 = vmatpush1.msra.mxu0 %v686
    %2813 = vmatprep.subr.mxu0 %v691
    %2814 = vmatpush1.msra.mxu0 %v690
    %2815 = vmatprep.subr.mxu0 %v695
    %2816 = vmatpush1.msra.mxu0 %v694
    %2817 = vmatprep.subr.mxu0 %v699
    %2818 = vmatpush1.msra.mxu0 %v698
    %2819 = vmatprep.subr.mxu0 %v703
    %2820 = vmatpush1.msra.mxu0 %v702
    %2821 = vmatprep.subr.mxu0 %v707
    %2822 = vmatpush1.msra.mxu0 %v706
    %2823 = vmatprep.subr.mxu0 %v711
    %2824 = vmatpush1.msra.mxu0 %v710
    %2825 = vmatprep.subr.mxu0 %v715
    %2826 = vmatpush1.msra.mxu0 %v714
    %2827 = vmatprep.subr.mxu0 %v719
    %2828 = vmatpush1.msra.mxu0 %v718
    %2829 = vmatprep.subr.mxu0 %v723
    %2830 = vmatpush1.msra.mxu0 %v722
    %2831 = vmatprep.subr.mxu0 %v727
    %2832 = vmatpush1.msra.mxu0 %v726
    %2833 = vmatprep.subr.mxu0 %v731
    %2834 = vmatpush1.msra.mxu0 %v730
    %2835 = vmatprep.subr.mxu0 %v735
    %2836 = vmatpush1.msra.mxu0 %v734
    %2837 = vmatprep.subr.mxu0 %v739
    %2838 = vmatpush1.msra.mxu0 %v738
    %2839 = vmatprep.subr.mxu0 %v743
    %2840 = vmatpush1.msra.mxu0 %v742
    %2841 = vmatprep.subr.mxu0 0.0
    %2842 = vmatpush1.msra.mxu0 0.0
    %2843 = vmatprep.subr.mxu0 0.0
    %2844 = vmatpush1.msra.mxu0 0.0
    %2845 = vmatprep.subr.mxu0 0.0
    %2846 = vmatpush1.msra.mxu0 0.0
    %2847 = vmatprep.subr.mxu0 0.0
    %2848 = vmatpush1.msra.mxu0 0.0
    %2849 = vmatprep.subr.mxu0 0.0
    %2850 = vmatpush1.msra.mxu0 0.0
    %2851 = vmatprep.subr.mxu0 0.0
    %2852 = vmatpush1.msra.mxu0 0.0
    %2853 = vmatprep.subr.mxu0 0.0
    %2854 = vmatpush1.msra.mxu0 0.0
    %2855 = vmatprep.subr.mxu0 0.0
    %2856 = vmatpush1.msra.mxu0 0.0
    %2857 = vmatprep.subr.mxu0 0.0
    %2858 = vmatpush1.msra.mxu0 0.0
    %2859 = vmatprep.subr.mxu0 0.0
    %2860 = vmatpush1.msra.mxu0 0.0
    %2861 = vmatprep.subr.mxu0 0.0
    %2862 = vmatpush1.msra.mxu0 0.0
    %2863 = vmatprep.subr.mxu0 0.0
    %2864 = vmatpush1.msra.mxu0 0.0
    %2865 = vmatprep.subr.mxu0 0.0
    %2866 = vmatpush1.msra.mxu0 0.0
    %2867 = vmatprep.subr.mxu0 0.0
    %2868 = vmatpush1.msra.mxu0 0.0
    %2869 = vmatprep.subr.mxu0 0.0
    %2870 = vmatpush1.msra.mxu0 0.0
    %2871 = vmatprep.subr.mxu0 0.0
    %2872 = vmatpush1.msra.mxu0 0.0
    %2873 = vmatprep.mubr.f32.mxu0 0.0
    %2874 = vmatmul.mubr.f32.gmra.mrb[0].mxu0 %v2648
    %v2875 = vpop.f32.mrb[0].mxu0
    %v2876 = vadd.f32 0.0, %v2875
    %v2877 = vpop.f32.mrb[0].mxu0
    %v2878 = vadd.f32 0.0, %v2877
    %2879 = vdwg.mxu0
    %2880 = vmatprep.subr.mxu0 %v685
    %2881 = vmatpush1.msra.mxu0 %v684
    %2882 = vmatprep.subr.mxu0 %v689
    %2883 = vmatpush1.msra.mxu0 %v688
    %2884 = vmatprep.subr.mxu0 %v693
    %2885 = vmatpush1.msra.mxu0 %v692
    %2886 = vmatprep.subr.mxu0 %v697
    %2887 = vmatpush1.msra.mxu0 %v696
    %2888 = vmatprep.subr.mxu0 %v701
    %2889 = vmatpush1.msra.mxu0 %v700
    %2890 = vmatprep.subr.mxu0 %v705
    %2891 = vmatpush1.msra.mxu0 %v704
    %2892 = vmatprep.subr.mxu0 %v709
    %2893 = vmatpush1.msra.mxu0 %v708
    %2894 = vmatprep.subr.mxu0 %v713
    %2895 = vmatpush1.msra.mxu0 %v712
    %2896 = vmatprep.subr.mxu0 %v717
    %2897 = vmatpush1.msra.mxu0 %v716
    %2898 = vmatprep.subr.mxu0 %v721
    %2899 = vmatpush1.msra.mxu0 %v720
    %2900 = vmatprep.subr.mxu0 %v725
    %2901 = vmatpush1.msra.mxu0 %v724
    %2902 = vmatprep.subr.mxu0 %v729
    %2903 = vmatpush1.msra.mxu0 %v728
    %2904 = vmatprep.subr.mxu0 %v733
    %2905 = vmatpush1.msra.mxu0 %v732
    %2906 = vmatprep.subr.mxu0 %v737
    %2907 = vmatpush1.msra.mxu0 %v736
    %2908 = vmatprep.subr.mxu0 %v741
    %2909 = vmatpush1.msra.mxu0 %v740
    %2910 = vmatprep.subr.mxu0 %v745
    %2911 = vmatpush1.msra.mxu0 %v744
    %2912 = vmatprep.subr.mxu0 0.0
    %2913 = vmatpush1.msra.mxu0 0.0
    %2914 = vmatprep.subr.mxu0 0.0
    %2915 = vmatpush1.msra.mxu0 0.0
    %2916 = vmatprep.subr.mxu0 0.0
    %2917 = vmatpush1.msra.mxu0 0.0
    %2918 = vmatprep.subr.mxu0 0.0
    %2919 = vmatpush1.msra.mxu0 0.0
    %2920 = vmatprep.subr.mxu0 0.0
    %2921 = vmatpush1.msra.mxu0 0.0
    %2922 = vmatprep.subr.mxu0 0.0
    %2923 = vmatpush1.msra.mxu0 0.0
    %2924 = vmatprep.subr.mxu0 0.0
    %2925 = vmatpush1.msra.mxu0 0.0
    %2926 = vmatprep.subr.mxu0 0.0
    %2927 = vmatpush1.msra.mxu0 0.0
    %2928 = vmatprep.subr.mxu0 0.0
    %2929 = vmatpush1.msra.mxu0 0.0
    %2930 = vmatprep.subr.mxu0 0.0
    %2931 = vmatpush1.msra.mxu0 0.0
    %2932 = vmatprep.subr.mxu0 0.0
    %2933 = vmatpush1.msra.mxu0 0.0
    %2934 = vmatprep.subr.mxu0 0.0
    %2935 = vmatpush1.msra.mxu0 0.0
    %2936 = vmatprep.subr.mxu0 0.0
    %2937 = vmatpush1.msra.mxu0 0.0
    %2938 = vmatprep.subr.mxu0 0.0
    %2939 = vmatpush1.msra.mxu0 0.0
    %2940 = vmatprep.subr.mxu0 0.0
    %2941 = vmatpush1.msra.mxu0 0.0
    %2942 = vmatprep.subr.mxu0 0.0
    %2943 = vmatpush1.msra.mxu0 0.0
    %2944 = vmatprep.mubr.f32.mxu0 0.0
    %2945 = vmatmul.mubr.f32.gmra.mrb[0].mxu0 %v2648
    %v2946 = vpop.f32.mrb[0].mxu0
    %v2947 = vadd.f32 0.0, %v2946
    %v2948 = vpop.f32.mrb[0].mxu0
    %v2949 = vadd.f32 0.0, %v2948
    %2950 = vdwg.mxu0
    %v2951 = vadd.f32 %v2659, %v2876
    %v2952 = vadd.f32 %v2660, %v2878
    %v2953 = vadd.f32 %v2661, %v2947
    %v2954 = vadd.f32 %v2662, %v2949
    %v2955 = vmul.f32 %v2805, 0.5
    %v2956 = vtanh.pop %v2955
    %v2957 = vmul.f32 %v2956, 0.5
    %v2958 = vadd.f32 %v2957, 0.5
    %v2959 = vmul.f32 %v2806, 0.5
    %v2960 = vtanh.pop %v2959
    %v2961 = vmul.f32 %v2960, 0.5
    %v2962 = vadd.f32 %v2961, 0.5
    %v2963 = vtanh.pop %v2807
    %v2964 = vmul.f32 %v2808, 0.5
    %v2965 = vtanh.pop %v2964
    %v2966 = vmul.f32 %v2965, 0.5
    %v2967 = vadd.f32 %v2966, 0.5
    %v2968 = vmul.f32 %v2962, %v2628
    %v2969 = vmul.f32 %v2958, %v2963
    %v2970 = vadd.f32 %v2968, %v2969
    %v2971 = vtanh.pop %v2970
    %v2972 = vmul.f32 %v2967, %v2971
    %v2973 = vmul.f32 %v2951, 0.5
    %v2974 = vtanh.pop %v2973
    %v2975 = vmul.f32 %v2974, 0.5
    %v2976 = vadd.f32 %v2975, 0.5
    %v2977 = vmul.f32 %v2952, 0.5
    %v2978 = vtanh.pop %v2977
    %v2979 = vmul.f32 %v2978, 0.5
    %v2980 = vadd.f32 %v2979, 0.5
    %v2981 = vtanh.pop %v2953
    %v2982 = vmul.f32 %v2954, 0.5
    %v2983 = vtanh.pop %v2982
    %v2984 = vmul.f32 %v2983, 0.5
    %v2985 = vadd.f32 %v2984, 0.5
    %v2986 = vmul.f32 %v2980, %v2646
    %v2987 = vmul.f32 %v2976, %v2981
    %v2988 = vadd.f32 %v2986, %v2987
    %v2989 = vtanh.pop %v2988
    %v2990 = vmul.f32 %v2985, %v2989
    %v2991 = vmax.f32 %v2972, 0.0
    %v2992 = vmax.f32 %v2990, 0.0
    %s2993 = scalar_lea.vmem [#allocation3], 96
    %2994 = vst [vmem:[%s2993] sm:$0xff] %v2991
    %2995 = vst [vmem:[%s2993 + $0x8] sm:$0xff] %v2992
    %s2996 = scalar_lea.vmem [#allocation2], 448
    %v2997 = vld [vmem:[%s2996] sm:$0xff]
    %v2998 = vld [vmem:[%s2996 + $0x8] sm:$0xff]
    %v2999 = vld [vmem:[%s2996 + $0x10] sm:$0xff]
    %v3000 = vld [vmem:[%s2996 + $0x18] sm:$0xff]
    %v3001 = vld [vmem:[%s2996 + $0x20] sm:$0xff]
    %v3002 = vld [vmem:[%s2996 + $0x28] sm:$0xff]
    %v3003 = vld [vmem:[%s2996 + $0x30] sm:$0xff]
    %v3004 = vld [vmem:[%s2996 + $0x38] sm:$0xff]
    %3005 = vmatprep.subr.mxu0 %v683
    %3006 = vmatpush1.msra.mxu0 %v682
    %3007 = vmatprep.subr.mxu0 %v687
    %3008 = vmatpush1.msra.mxu0 %v686
    %3009 = vmatprep.subr.mxu0 %v691
    %3010 = vmatpush1.msra.mxu0 %v690
    %3011 = vmatprep.subr.mxu0 %v695
    %3012 = vmatpush1.msra.mxu0 %v694
    %3013 = vmatprep.subr.mxu0 %v699
    %3014 = vmatpush1.msra.mxu0 %v698
    %3015 = vmatprep.subr.mxu0 %v703
    %3016 = vmatpush1.msra.mxu0 %v702
    %3017 = vmatprep.subr.mxu0 %v707
    %3018 = vmatpush1.msra.mxu0 %v706
    %3019 = vmatprep.subr.mxu0 %v711
    %3020 = vmatpush1.msra.mxu0 %v710
    %3021 = vmatprep.subr.mxu0 %v715
    %3022 = vmatpush1.msra.mxu0 %v714
    %3023 = vmatprep.subr.mxu0 %v719
    %3024 = vmatpush1.msra.mxu0 %v718
    %3025 = vmatprep.subr.mxu0 %v723
    %3026 = vmatpush1.msra.mxu0 %v722
    %3027 = vmatprep.subr.mxu0 %v727
    %3028 = vmatpush1.msra.mxu0 %v726
    %3029 = vmatprep.subr.mxu0 %v731
    %3030 = vmatpush1.msra.mxu0 %v730
    %3031 = vmatprep.subr.mxu0 %v735
    %3032 = vmatpush1.msra.mxu0 %v734
    %3033 = vmatprep.subr.mxu0 %v739
    %3034 = vmatpush1.msra.mxu0 %v738
    %3035 = vmatprep.subr.mxu0 %v743
    %3036 = vmatpush1.msra.mxu0 %v742
    %3037 = vmatprep.subr.mxu0 0.0
    %3038 = vmatpush1.msra.mxu0 0.0
    %3039 = vmatprep.subr.mxu0 0.0
    %3040 = vmatpush1.msra.mxu0 0.0
    %3041 = vmatprep.subr.mxu0 0.0
    %3042 = vmatpush1.msra.mxu0 0.0
    %3043 = vmatprep.subr.mxu0 0.0
    %3044 = vmatpush1.msra.mxu0 0.0
    %3045 = vmatprep.subr.mxu0 0.0
    %3046 = vmatpush1.msra.mxu0 0.0
    %3047 = vmatprep.subr.mxu0 0.0
    %3048 = vmatpush1.msra.mxu0 0.0
    %3049 = vmatprep.subr.mxu0 0.0
    %3050 = vmatpush1.msra.mxu0 0.0
    %3051 = vmatprep.subr.mxu0 0.0
    %3052 = vmatpush1.msra.mxu0 0.0
    %3053 = vmatprep.subr.mxu0 0.0
    %3054 = vmatpush1.msra.mxu0 0.0
    %3055 = vmatprep.subr.mxu0 0.0
    %3056 = vmatpush1.msra.mxu0 0.0
    %3057 = vmatprep.subr.mxu0 0.0
    %3058 = vmatpush1.msra.mxu0 0.0
    %3059 = vmatprep.subr.mxu0 0.0
    %3060 = vmatpush1.msra.mxu0 0.0
    %3061 = vmatprep.subr.mxu0 0.0
    %3062 = vmatpush1.msra.mxu0 0.0
    %3063 = vmatprep.subr.mxu0 0.0
    %3064 = vmatpush1.msra.mxu0 0.0
    %3065 = vmatprep.subr.mxu0 0.0
    %3066 = vmatpush1.msra.mxu0 0.0
    %3067 = vmatprep.subr.mxu0 0.0
    %3068 = vmatpush1.msra.mxu0 0.0
    %3069 = vmatprep.mubr.f32.mxu0 0.0
    %3070 = vmatmul.mubr.f32.gmra.mrb[0].mxu0 %v2972
    %v3071 = vpop.f32.mrb[0].mxu0
    %v3072 = vadd.f32 0.0, %v3071
    %v3073 = vpop.f32.mrb[0].mxu0
    %v3074 = vadd.f32 0.0, %v3073
    %3075 = vdwg.mxu0
    %3076 = vmatprep.subr.mxu0 %v685
    %3077 = vmatpush1.msra.mxu0 %v684
    %3078 = vmatprep.subr.mxu0 %v689
    %3079 = vmatpush1.msra.mxu0 %v688
    %3080 = vmatprep.subr.mxu0 %v693
    %3081 = vmatpush1.msra.mxu0 %v692
    %3082 = vmatprep.subr.mxu0 %v697
    %3083 = vmatpush1.msra.mxu0 %v696
    %3084 = vmatprep.subr.mxu0 %v701
    %3085 = vmatpush1.msra.mxu0 %v700
    %3086 = vmatprep.subr.mxu0 %v705
    %3087 = vmatpush1.msra.mxu0 %v704
    %3088 = vmatprep.subr.mxu0 %v709
    %3089 = vmatpush1.msra.mxu0 %v708
    %3090 = vmatprep.subr.mxu0 %v713
    %3091 = vmatpush1.msra.mxu0 %v712
    %3092 = vmatprep.subr.mxu0 %v717
    %3093 = vmatpush1.msra.mxu0 %v716
    %3094 = vmatprep.subr.mxu0 %v721
    %3095 = vmatpush1.msra.mxu0 %v720
    %3096 = vmatprep.subr.mxu0 %v725
    %3097 = vmatpush1.msra.mxu0 %v724
    %3098 = vmatprep.subr.mxu0 %v729
    %3099 = vmatpush1.msra.mxu0 %v728
    %3100 = vmatprep.subr.mxu0 %v733
    %3101 = vmatpush1.msra.mxu0 %v732
    %3102 = vmatprep.subr.mxu0 %v737
    %3103 = vmatpush1.msra.mxu0 %v736
    %3104 = vmatprep.subr.mxu0 %v741
    %3105 = vmatpush1.msra.mxu0 %v740
    %3106 = vmatprep.subr.mxu0 %v745
    %3107 = vmatpush1.msra.mxu0 %v744
    %3108 = vmatprep.subr.mxu0 0.0
    %3109 = vmatpush1.msra.mxu0 0.0
    %3110 = vmatprep.subr.mxu0 0.0
    %3111 = vmatpush1.msra.mxu0 0.0
    %3112 = vmatprep.subr.mxu0 0.0
    %3113 = vmatpush1.msra.mxu0 0.0
    %3114 = vmatprep.subr.mxu0 0.0
    %3115 = vmatpush1.msra.mxu0 0.0
    %3116 = vmatprep.subr.mxu0 0.0
    %3117 = vmatpush1.msra.mxu0 0.0
    %3118 = vmatprep.subr.mxu0 0.0
    %3119 = vmatpush1.msra.mxu0 0.0
    %3120 = vmatprep.subr.mxu0 0.0
    %3121 = vmatpush1.msra.mxu0 0.0
    %3122 = vmatprep.subr.mxu0 0.0
    %3123 = vmatpush1.msra.mxu0 0.0
    %3124 = vmatprep.subr.mxu0 0.0
    %3125 = vmatpush1.msra.mxu0 0.0
    %3126 = vmatprep.subr.mxu0 0.0
    %3127 = vmatpush1.msra.mxu0 0.0
    %3128 = vmatprep.subr.mxu0 0.0
    %3129 = vmatpush1.msra.mxu0 0.0
    %3130 = vmatprep.subr.mxu0 0.0
    %3131 = vmatpush1.msra.mxu0 0.0
    %3132 = vmatprep.subr.mxu0 0.0
    %3133 = vmatpush1.msra.mxu0 0.0
    %3134 = vmatprep.subr.mxu0 0.0
    %3135 = vmatpush1.msra.mxu0 0.0
    %3136 = vmatprep.subr.mxu0 0.0
    %3137 = vmatpush1.msra.mxu0 0.0
    %3138 = vmatprep.subr.mxu0 0.0
    %3139 = vmatpush1.msra.mxu0 0.0
    %3140 = vmatprep.mubr.f32.mxu0 0.0
    %3141 = vmatmul.mubr.f32.gmra.mrb[0].mxu0 %v2972
    %v3142 = vpop.f32.mrb[0].mxu0
    %v3143 = vadd.f32 0.0, %v3142
    %v3144 = vpop.f32.mrb[0].mxu0
    %v3145 = vadd.f32 0.0, %v3144
    %3146 = vdwg.mxu0
    %v3147 = vadd.f32 %v2997, %v3072
    %v3148 = vadd.f32 %v2998, %v3074
    %v3149 = vadd.f32 %v2999, %v3143
    %v3150 = vadd.f32 %v3000, %v3145
    %3151 = vmatprep.subr.mxu0 %v683
    %3152 = vmatpush1.msra.mxu0 %v682
    %3153 = vmatprep.subr.mxu0 %v687
    %3154 = vmatpush1.msra.mxu0 %v686
    %3155 = vmatprep.subr.mxu0 %v691
    %3156 = vmatpush1.msra.mxu0 %v690
    %3157 = vmatprep.subr.mxu0 %v695
    %3158 = vmatpush1.msra.mxu0 %v694
    %3159 = vmatprep.subr.mxu0 %v699
    %3160 = vmatpush1.msra.mxu0 %v698
    %3161 = vmatprep.subr.mxu0 %v703
    %3162 = vmatpush1.msra.mxu0 %v702
    %3163 = vmatprep.subr.mxu0 %v707
    %3164 = vmatpush1.msra.mxu0 %v706
    %3165 = vmatprep.subr.mxu0 %v711
    %3166 = vmatpush1.msra.mxu0 %v710
    %3167 = vmatprep.subr.mxu0 %v715
    %3168 = vmatpush1.msra.mxu0 %v714
    %3169 = vmatprep.subr.mxu0 %v719
    %3170 = vmatpush1.msra.mxu0 %v718
    %3171 = vmatprep.subr.mxu0 %v723
    %3172 = vmatpush1.msra.mxu0 %v722
    %3173 = vmatprep.subr.mxu0 %v727
    %3174 = vmatpush1.msra.mxu0 %v726
    %3175 = vmatprep.subr.mxu0 %v731
    %3176 = vmatpush1.msra.mxu0 %v730
    %3177 = vmatprep.subr.mxu0 %v735
    %3178 = vmatpush1.msra.mxu0 %v734
    %3179 = vmatprep.subr.mxu0 %v739
    %3180 = vmatpush1.msra.mxu0 %v738
    %3181 = vmatprep.subr.mxu0 %v743
    %3182 = vmatpush1.msra.mxu0 %v742
    %3183 = vmatprep.subr.mxu0 0.0
    %3184 = vmatpush1.msra.mxu0 0.0
    %3185 = vmatprep.subr.mxu0 0.0
    %3186 = vmatpush1.msra.mxu0 0.0
    %3187 = vmatprep.subr.mxu0 0.0
    %3188 = vmatpush1.msra.mxu0 0.0
    %3189 = vmatprep.subr.mxu0 0.0
    %3190 = vmatpush1.msra.mxu0 0.0
    %3191 = vmatprep.subr.mxu0 0.0
    %3192 = vmatpush1.msra.mxu0 0.0
    %3193 = vmatprep.subr.mxu0 0.0
    %3194 = vmatpush1.msra.mxu0 0.0
    %3195 = vmatprep.subr.mxu0 0.0
    %3196 = vmatpush1.msra.mxu0 0.0
    %3197 = vmatprep.subr.mxu0 0.0
    %3198 = vmatpush1.msra.mxu0 0.0
    %3199 = vmatprep.subr.mxu0 0.0
    %3200 = vmatpush1.msra.mxu0 0.0
    %3201 = vmatprep.subr.mxu0 0.0
    %3202 = vmatpush1.msra.mxu0 0.0
    %3203 = vmatprep.subr.mxu0 0.0
    %3204 = vmatpush1.msra.mxu0 0.0
    %3205 = vmatprep.subr.mxu0 0.0
    %3206 = vmatpush1.msra.mxu0 0.0
    %3207 = vmatprep.subr.mxu0 0.0
    %3208 = vmatpush1.msra.mxu0 0.0
    %3209 = vmatprep.subr.mxu0 0.0
    %3210 = vmatpush1.msra.mxu0 0.0
    %3211 = vmatprep.subr.mxu0 0.0
    %3212 = vmatpush1.msra.mxu0 0.0
    %3213 = vmatprep.subr.mxu0 0.0
    %3214 = vmatpush1.msra.mxu0 0.0
    %3215 = vmatprep.mubr.f32.mxu0 0.0
    %3216 = vmatmul.mubr.f32.gmra.mrb[0].mxu0 %v2990
    %v3217 = vpop.f32.mrb[0].mxu0
    %v3218 = vadd.f32 0.0, %v3217
    %v3219 = vpop.f32.mrb[0].mxu0
    %v3220 = vadd.f32 0.0, %v3219
    %3221 = vdwg.mxu0
    %3222 = vmatprep.subr.mxu0 %v685
    %3223 = vmatpush1.msra.mxu0 %v684
    %3224 = vmatprep.subr.mxu0 %v689
    %3225 = vmatpush1.msra.mxu0 %v688
    %3226 = vmatprep.subr.mxu0 %v693
    %3227 = vmatpush1.msra.mxu0 %v692
    %3228 = vmatprep.subr.mxu0 %v697
    %3229 = vmatpush1.msra.mxu0 %v696
    %3230 = vmatprep.subr.mxu0 %v701
    %3231 = vmatpush1.msra.mxu0 %v700
    %3232 = vmatprep.subr.mxu0 %v705
    %3233 = vmatpush1.msra.mxu0 %v704
    %3234 = vmatprep.subr.mxu0 %v709
    %3235 = vmatpush1.msra.mxu0 %v708
    %3236 = vmatprep.subr.mxu0 %v713
    %3237 = vmatpush1.msra.mxu0 %v712
    %3238 = vmatprep.subr.mxu0 %v717
    %3239 = vmatpush1.msra.mxu0 %v716
    %3240 = vmatprep.subr.mxu0 %v721
    %3241 = vmatpush1.msra.mxu0 %v720
    %3242 = vmatprep.subr.mxu0 %v725
    %3243 = vmatpush1.msra.mxu0 %v724
    %3244 = vmatprep.subr.mxu0 %v729
    %3245 = vmatpush1.msra.mxu0 %v728
    %3246 = vmatprep.subr.mxu0 %v733
    %3247 = vmatpush1.msra.mxu0 %v732
    %3248 = vmatprep.subr.mxu0 %v737
    %3249 = vmatpush1.msra.mxu0 %v736
    %3250 = vmatprep.subr.mxu0 %v741
    %3251 = vmatpush1.msra.mxu0 %v740
    %3252 = vmatprep.subr.mxu0 %v745
    %3253 = vmatpush1.msra.mxu0 %v744
    %3254 = vmatprep.subr.mxu0 0.0
    %3255 = vmatpush1.msra.mxu0 0.0
    %3256 = vmatprep.subr.mxu0 0.0
    %3257 = vmatpush1.msra.mxu0 0.0
    %3258 = vmatprep.subr.mxu0 0.0
    %3259 = vmatpush1.msra.mxu0 0.0
    %3260 = vmatprep.subr.mxu0 0.0
    %3261 = vmatpush1.msra.mxu0 0.0
    %3262 = vmatprep.subr.mxu0 0.0
    %3263 = vmatpush1.msra.mxu0 0.0
    %3264 = vmatprep.subr.mxu0 0.0
    %3265 = vmatpush1.msra.mxu0 0.0
    %3266 = vmatprep.subr.mxu0 0.0
    %3267 = vmatpush1.msra.mxu0 0.0
    %3268 = vmatprep.subr.mxu0 0.0
    %3269 = vmatpush1.msra.mxu0 0.0
    %3270 = vmatprep.subr.mxu0 0.0
    %3271 = vmatpush1.msra.mxu0 0.0
    %3272 = vmatprep.subr.mxu0 0.0
    %3273 = vmatpush1.msra.mxu0 0.0
    %3274 = vmatprep.subr.mxu0 0.0
    %3275 = vmatpush1.msra.mxu0 0.0
    %3276 = vmatprep.subr.mxu0 0.0
    %3277 = vmatpush1.msra.mxu0 0.0
    %3278 = vmatprep.subr.mxu0 0.0
    %3279 = vmatpush1.msra.mxu0 0.0
    %3280 = vmatprep.subr.mxu0 0.0
    %3281 = vmatpush1.msra.mxu0 0.0
    %3282 = vmatprep.subr.mxu0 0.0
    %3283 = vmatpush1.msra.mxu0 0.0
    %3284 = vmatprep.subr.mxu0 0.0
    %3285 = vmatpush1.msra.mxu0 0.0
    %3286 = vmatprep.mubr.f32.mxu0 0.0
    %3287 = vmatmul.mubr.f32.gmra.mrb[0].mxu0 %v2990
    %v3288 = vpop.f32.mrb[0].mxu0
    %v3289 = vadd.f32 0.0, %v3288
    %v3290 = vpop.f32.mrb[0].mxu0
    %v3291 = vadd.f32 0.0, %v3290
    %3292 = vdwg.mxu0
    %v3293 = vadd.f32 %v3001, %v3218
    %v3294 = vadd.f32 %v3002, %v3220
    %v3295 = vadd.f32 %v3003, %v3289
    %v3296 = vadd.f32 %v3004, %v3291
    %v3297 = vmul.f32 %v3147, 0.5
    %v3298 = vtanh.pop %v3297
    %v3299 = vmul.f32 %v3298, 0.5
    %v3300 = vadd.f32 %v3299, 0.5
    %v3301 = vmul.f32 %v3148, 0.5
    %v3302 = vtanh.pop %v3301
    %v3303 = vmul.f32 %v3302, 0.5
    %v3304 = vadd.f32 %v3303, 0.5
    %v3305 = vtanh.pop %v3149
    %v3306 = vmul.f32 %v3150, 0.5
    %v3307 = vtanh.pop %v3306
    %v3308 = vmul.f32 %v3307, 0.5
    %v3309 = vadd.f32 %v3308, 0.5
    %v3310 = vmul.f32 %v3304, %v2970
    %v3311 = vmul.f32 %v3300, %v3305
    %v3312 = vadd.f32 %v3310, %v3311
    %v3313 = vtanh.pop %v3312
    %v3314 = vmul.f32 %v3309, %v3313
    %v3315 = vmul.f32 %v3293, 0.5
    %v3316 = vtanh.pop %v3315
    %v3317 = vmul.f32 %v3316, 0.5
    %v3318 = vadd.f32 %v3317, 0.5
    %v3319 = vmul.f32 %v3294, 0.5
    %v3320 = vtanh.pop %v3319
    %v3321 = vmul.f32 %v3320, 0.5
    %v3322 = vadd.f32 %v3321, 0.5
    %v3323 = vtanh.pop %v3295
    %v3324 = vmul.f32 %v3296, 0.5
    %v3325 = vtanh.pop %v3324
    %v3326 = vmul.f32 %v3325, 0.5
    %v3327 = vadd.f32 %v3326, 0.5
    %v3328 = vmul.f32 %v3322, %v2988
    %v3329 = vmul.f32 %v3318, %v3323
    %v3330 = vadd.f32 %v3328, %v3329
    %v3331 = vtanh.pop %v3330
    %v3332 = vmul.f32 %v3327, %v3331
    %v3333 = vmax.f32 %v3314, 0.0
    %v3334 = vmax.f32 %v3332, 0.0
    %s3335 = scalar_lea.vmem [#allocation3], 112
    %3336 = vst [vmem:[%s3335] sm:$0xff] %v3333
    %3337 = vst [vmem:[%s3335 + $0x8] sm:$0xff] %v3334
    %v3338 = vld [vmem:[#allocation3] sm:$0xff]
    %v3339 = vld [vmem:[#allocation3 + $0x8] sm:$0xff]
    %v3340 = vld [vmem:[#allocation10] sm:$0xff]
    %v3341 = vld [vmem:[#allocation10 + $0x8] sm:$0xff]
    %v3342 = vld [vmem:[#allocation10 + $0x10] sm:$0xff]
    %v3343 = vld [vmem:[#allocation10 + $0x18] sm:$0xff]
    %v3344 = vld [vmem:[#allocation10 + $0x20] sm:$0xff]
    %v3345 = vld [vmem:[#allocation10 + $0x28] sm:$0xff]
    %v3346 = vld [vmem:[#allocation10 + $0x30] sm:$0xff]
    %v3347 = vld [vmem:[#allocation10 + $0x38] sm:$0xff]
    %v3348 = vld [vmem:[#allocation10 + $0x40] sm:$0xff]
    %v3349 = vld [vmem:[#allocation10 + $0x48] sm:$0xff]
    %v3350 = vld [vmem:[#allocation10 + $0x50] sm:$0xff]
    %v3351 = vld [vmem:[#allocation10 + $0x58] sm:$0xff]
    %v3352 = vld [vmem:[#allocation10 + $0x60] sm:$0xff]
    %v3353 = vld [vmem:[#allocation10 + $0x68] sm:$0xff]
    %v3354 = vld [vmem:[#allocation10 + $0x70] sm:$0xff]
    %v3355 = vld [vmem:[#allocation10 + $0x78] sm:$0xff]
    %v3356 = vld [vmem:[%s1283] sm:$0xff]
    %v3357 = vld [vmem:[%s1283 + $0x8] sm:$0xff]
    %s3358 = scalar_lea.vmem [#allocation10], 128
    %v3359 = vld [vmem:[%s3358] sm:$0xff]
    %v3360 = vld [vmem:[%s3358 + $0x8] sm:$0xff]
    %v3361 = vld [vmem:[%s3358 + $0x10] sm:$0xff]
    %v3362 = vld [vmem:[%s3358 + $0x18] sm:$0xff]
    %v3363 = vld [vmem:[%s3358 + $0x20] sm:$0xff]
    %v3364 = vld [vmem:[%s3358 + $0x28] sm:$0xff]
    %v3365 = vld [vmem:[%s3358 + $0x30] sm:$0xff]
    %v3366 = vld [vmem:[%s3358 + $0x38] sm:$0xff]
    %v3367 = vld [vmem:[%s3358 + $0x40] sm:$0xff]
    %v3368 = vld [vmem:[%s3358 + $0x48] sm:$0xff]
    %v3369 = vld [vmem:[%s3358 + $0x50] sm:$0xff]
    %v3370 = vld [vmem:[%s3358 + $0x58] sm:$0xff]
    %v3371 = vld [vmem:[%s3358 + $0x60] sm:$0xff]
    %v3372 = vld [vmem:[%s3358 + $0x68] sm:$0xff]
    %v3373 = vld [vmem:[%s3358 + $0x70] sm:$0xff]
    %v3374 = vld [vmem:[%s3358 + $0x78] sm:$0xff]
    %3375 = vmatprep.subr.mxu0 0.0
    %3376 = vmatpush1.msra.mxu0 %v3359
    %3377 = vmatprep.subr.mxu0 0.0
    %3378 = vmatpush1.msra.mxu0 %v3360
    %3379 = vmatprep.subr.mxu0 0.0
    %3380 = vmatpush1.msra.mxu0 %v3361
    %3381 = vmatprep.subr.mxu0 0.0
    %3382 = vmatpush1.msra.mxu0 %v3362
    %3383 = vmatprep.subr.mxu0 0.0
    %3384 = vmatpush1.msra.mxu0 %v3363
    %3385 = vmatprep.subr.mxu0 0.0
    %3386 = vmatpush1.msra.mxu0 %v3364
    %3387 = vmatprep.subr.mxu0 0.0
    %3388 = vmatpush1.msra.mxu0 %v3365
    %3389 = vmatprep.subr.mxu0 0.0
    %3390 = vmatpush1.msra.mxu0 %v3366
    %3391 = vmatprep.subr.mxu0 0.0
    %3392 = vmatpush1.msra.mxu0 %v3367
    %3393 = vmatprep.subr.mxu0 0.0
    %3394 = vmatpush1.msra.mxu0 %v3368
    %3395 = vmatprep.subr.mxu0 0.0
    %3396 = vmatpush1.msra.mxu0 %v3369
    %3397 = vmatprep.subr.mxu0 0.0
    %3398 = vmatpush1.msra.mxu0 %v3370
    %3399 = vmatprep.subr.mxu0 0.0
    %3400 = vmatpush1.msra.mxu0 %v3371
    %3401 = vmatprep.subr.mxu0 0.0
    %3402 = vmatpush1.msra.mxu0 %v3372
    %3403 = vmatprep.subr.mxu0 0.0
    %3404 = vmatpush1.msra.mxu0 %v3373
    %3405 = vmatprep.subr.mxu0 0.0
    %3406 = vmatpush1.msra.mxu0 %v3374
    %3407 = vmatprep.subr.mxu0 0.0
    %3408 = vmatpush1.msra.mxu0 0.0
    %3409 = vmatprep.subr.mxu0 0.0
    %3410 = vmatpush1.msra.mxu0 0.0
    %3411 = vmatprep.subr.mxu0 0.0
    %3412 = vmatpush1.msra.mxu0 0.0
    %3413 = vmatprep.subr.mxu0 0.0
    %3414 = vmatpush1.msra.mxu0 0.0
    %3415 = vmatprep.subr.mxu0 0.0
    %3416 = vmatpush1.msra.mxu0 0.0
    %3417 = vmatprep.subr.mxu0 0.0
    %3418 = vmatpush1.msra.mxu0 0.0
    %3419 = vmatprep.subr.mxu0 0.0
    %3420 = vmatpush1.msra.mxu0 0.0
    %3421 = vmatprep.subr.mxu0 0.0
    %3422 = vmatpush1.msra.mxu0 0.0
    %3423 = vmatprep.subr.mxu0 0.0
    %3424 = vmatpush1.msra.mxu0 0.0
    %3425 = vmatprep.subr.mxu0 0.0
    %3426 = vmatpush1.msra.mxu0 0.0
    %3427 = vmatprep.subr.mxu0 0.0
    %3428 = vmatpush1.msra.mxu0 0.0
    %3429 = vmatprep.subr.mxu0 0.0
    %3430 = vmatpush1.msra.mxu0 0.0
    %3431 = vmatprep.subr.mxu0 0.0
    %3432 = vmatpush1.msra.mxu0 0.0
    %3433 = vmatprep.subr.mxu0 0.0
    %3434 = vmatpush1.msra.mxu0 0.0
    %3435 = vmatprep.subr.mxu0 0.0
    %3436 = vmatpush1.msra.mxu0 0.0
    %3437 = vmatprep.subr.mxu0 0.0
    %3438 = vmatpush1.msra.mxu0 0.0
    %3439 = vmatprep.mubr.f32.mxu0 0.0
    %3440 = vmatmul.mubr.f32.gmra.mrb[0].mxu0 %v3356
    %v3441 = vpop.f32.mrb[0].mxu0
    %v3442 = vadd.f32 0.0, %v3441
    %v3443 = vpop.f32.mrb[0].mxu0
    %3444 = vmatprep.mubr.f32.mxu0 0.0
    %3445 = vmatmul.mubr.f32.gmra.mrb[0].mxu0 %v3357
    %v3446 = vpop.f32.mrb[0].mxu0
    %v3447 = vadd.f32 0.0, %v3446
    %v3448 = vpop.f32.mrb[0].mxu0
    %3449 = vdwg.mxu0
    %3450 = vmatprep.subr.mxu0 0.0
    %3451 = vmatpush1.msra.mxu0 %v3340
    %3452 = vmatprep.subr.mxu0 0.0
    %3453 = vmatpush1.msra.mxu0 %v3341
    %3454 = vmatprep.subr.mxu0 0.0
    %3455 = vmatpush1.msra.mxu0 %v3342
    %3456 = vmatprep.subr.mxu0 0.0
    %3457 = vmatpush1.msra.mxu0 %v3343
    %3458 = vmatprep.subr.mxu0 0.0
    %3459 = vmatpush1.msra.mxu0 %v3344
    %3460 = vmatprep.subr.mxu0 0.0
    %3461 = vmatpush1.msra.mxu0 %v3345
    %3462 = vmatprep.subr.mxu0 0.0
    %3463 = vmatpush1.msra.mxu0 %v3346
    %3464 = vmatprep.subr.mxu0 0.0
    %3465 = vmatpush1.msra.mxu0 %v3347
    %3466 = vmatprep.subr.mxu0 0.0
    %3467 = vmatpush1.msra.mxu0 %v3348
    %3468 = vmatprep.subr.mxu0 0.0
    %3469 = vmatpush1.msra.mxu0 %v3349
    %3470 = vmatprep.subr.mxu0 0.0
    %3471 = vmatpush1.msra.mxu0 %v3350
    %3472 = vmatprep.subr.mxu0 0.0
    %3473 = vmatpush1.msra.mxu0 %v3351
    %3474 = vmatprep.subr.mxu0 0.0
    %3475 = vmatpush1.msra.mxu0 %v3352
    %3476 = vmatprep.subr.mxu0 0.0
    %3477 = vmatpush1.msra.mxu0 %v3353
    %3478 = vmatprep.subr.mxu0 0.0
    %3479 = vmatpush1.msra.mxu0 %v3354
    %3480 = vmatprep.subr.mxu0 0.0
    %3481 = vmatpush1.msra.mxu0 %v3355
    %3482 = vmatprep.subr.mxu0 0.0
    %3483 = vmatpush1.msra.mxu0 0.0
    %3484 = vmatprep.subr.mxu0 0.0
    %3485 = vmatpush1.msra.mxu0 0.0
    %3486 = vmatprep.subr.mxu0 0.0
    %3487 = vmatpush1.msra.mxu0 0.0
    %3488 = vmatprep.subr.mxu0 0.0
    %3489 = vmatpush1.msra.mxu0 0.0
    %3490 = vmatprep.subr.mxu0 0.0
    %3491 = vmatpush1.msra.mxu0 0.0
    %3492 = vmatprep.subr.mxu0 0.0
    %3493 = vmatpush1.msra.mxu0 0.0
    %3494 = vmatprep.subr.mxu0 0.0
    %3495 = vmatpush1.msra.mxu0 0.0
    %3496 = vmatprep.subr.mxu0 0.0
    %3497 = vmatpush1.msra.mxu0 0.0
    %3498 = vmatprep.subr.mxu0 0.0
    %3499 = vmatpush1.msra.mxu0 0.0
    %3500 = vmatprep.subr.mxu0 0.0
    %3501 = vmatpush1.msra.mxu0 0.0
    %3502 = vmatprep.subr.mxu0 0.0
    %3503 = vmatpush1.msra.mxu0 0.0
    %3504 = vmatprep.subr.mxu0 0.0
    %3505 = vmatpush1.msra.mxu0 0.0
    %3506 = vmatprep.subr.mxu0 0.0
    %3507 = vmatpush1.msra.mxu0 0.0
    %3508 = vmatprep.subr.mxu0 0.0
    %3509 = vmatpush1.msra.mxu0 0.0
    %3510 = vmatprep.subr.mxu0 0.0
    %3511 = vmatpush1.msra.mxu0 0.0
    %3512 = vmatprep.subr.mxu0 0.0
    %3513 = vmatpush1.msra.mxu0 0.0
    %3514 = vmatprep.mubr.f32.mxu0 0.0
    %3515 = vmatmul.mubr.f32.gmra.mrb[0].mxu0 %v3338
    %v3516 = vpop.f32.mrb[0].mxu0
    %v3517 = vadd.f32 %v3442, %v3516
    %v3518 = vpop.f32.mrb[0].mxu0
    %3519 = vmatprep.mubr.f32.mxu0 0.0
    %3520 = vmatmul.mubr.f32.gmra.mrb[0].mxu0 %v3339
    %v3521 = vpop.f32.mrb[0].mxu0
    %v3522 = vadd.f32 %v3447, %v3521
    %v3523 = vpop.f32.mrb[0].mxu0
    %3524 = vdwg.mxu0
    %v3525 = vld [vmem:[%s1625] sm:$0xff]
    %v3526 = vld [vmem:[%s1625 + $0x8] sm:$0xff]
    %s3527 = scalar_lea.vmem [#allocation10], 256
    %v3528 = vld [vmem:[%s3527] sm:$0xff]
    %v3529 = vld [vmem:[%s3527 + $0x8] sm:$0xff]
    %v3530 = vld [vmem:[%s3527 + $0x10] sm:$0xff]
    %v3531 = vld [vmem:[%s3527 + $0x18] sm:$0xff]
    %v3532 = vld [vmem:[%s3527 + $0x20] sm:$0xff]
    %v3533 = vld [vmem:[%s3527 + $0x28] sm:$0xff]
    %v3534 = vld [vmem:[%s3527 + $0x30] sm:$0xff]
    %v3535 = vld [vmem:[%s3527 + $0x38] sm:$0xff]
    %v3536 = vld [vmem:[%s3527 + $0x40] sm:$0xff]
    %v3537 = vld [vmem:[%s3527 + $0x48] sm:$0xff]
    %v3538 = vld [vmem:[%s3527 + $0x50] sm:$0xff]
    %v3539 = vld [vmem:[%s3527 + $0x58] sm:$0xff]
    %v3540 = vld [vmem:[%s3527 + $0x60] sm:$0xff]
    %v3541 = vld [vmem:[%s3527 + $0x68] sm:$0xff]
    %v3542 = vld [vmem:[%s3527 + $0x70] sm:$0xff]
    %v3543 = vld [vmem:[%s3527 + $0x78] sm:$0xff]
    %3544 = vmatprep.subr.mxu0 0.0
    %3545 = vmatpush1.msra.mxu0 %v3528
    %3546 = vmatprep.subr.mxu0 0.0
    %3547 = vmatpush1.msra.mxu0 %v3529
    %3548 = vmatprep.subr.mxu0 0.0
    %3549 = vmatpush1.msra.mxu0 %v3530
    %3550 = vmatprep.subr.mxu0 0.0
    %3551 = vmatpush1.msra.mxu0 %v3531
    %3552 = vmatprep.subr.mxu0 0.0
    %3553 = vmatpush1.msra.mxu0 %v3532
    %3554 = vmatprep.subr.mxu0 0.0
    %3555 = vmatpush1.msra.mxu0 %v3533
    %3556 = vmatprep.subr.mxu0 0.0
    %3557 = vmatpush1.msra.mxu0 %v3534
    %3558 = vmatprep.subr.mxu0 0.0
    %3559 = vmatpush1.msra.mxu0 %v3535
    %3560 = vmatprep.subr.mxu0 0.0
    %3561 = vmatpush1.msra.mxu0 %v3536
    %3562 = vmatprep.subr.mxu0 0.0
    %3563 = vmatpush1.msra.mxu0 %v3537
    %3564 = vmatprep.subr.mxu0 0.0
    %3565 = vmatpush1.msra.mxu0 %v3538
    %3566 = vmatprep.subr.mxu0 0.0
    %3567 = vmatpush1.msra.mxu0 %v3539
    %3568 = vmatprep.subr.mxu0 0.0
    %3569 = vmatpush1.msra.mxu0 %v3540
    %3570 = vmatprep.subr.mxu0 0.0
    %3571 = vmatpush1.msra.mxu0 %v3541
    %3572 = vmatprep.subr.mxu0 0.0
    %3573 = vmatpush1.msra.mxu0 %v3542
    %3574 = vmatprep.subr.mxu0 0.0
    %3575 = vmatpush1.msra.mxu0 %v3543
    %3576 = vmatprep.subr.mxu0 0.0
    %3577 = vmatpush1.msra.mxu0 0.0
    %3578 = vmatprep.subr.mxu0 0.0
    %3579 = vmatpush1.msra.mxu0 0.0
    %3580 = vmatprep.subr.mxu0 0.0
    %3581 = vmatpush1.msra.mxu0 0.0
    %3582 = vmatprep.subr.mxu0 0.0
    %3583 = vmatpush1.msra.mxu0 0.0
    %3584 = vmatprep.subr.mxu0 0.0
    %3585 = vmatpush1.msra.mxu0 0.0
    %3586 = vmatprep.subr.mxu0 0.0
    %3587 = vmatpush1.msra.mxu0 0.0
    %3588 = vmatprep.subr.mxu0 0.0
    %3589 = vmatpush1.msra.mxu0 0.0
    %3590 = vmatprep.subr.mxu0 0.0
    %3591 = vmatpush1.msra.mxu0 0.0
    %3592 = vmatprep.subr.mxu0 0.0
    %3593 = vmatpush1.msra.mxu0 0.0
    %3594 = vmatprep.subr.mxu0 0.0
    %3595 = vmatpush1.msra.mxu0 0.0
    %3596 = vmatprep.subr.mxu0 0.0
    %3597 = vmatpush1.msra.mxu0 0.0
    %3598 = vmatprep.subr.mxu0 0.0
    %3599 = vmatpush1.msra.mxu0 0.0
    %3600 = vmatprep.subr.mxu0 0.0
    %3601 = vmatpush1.msra.mxu0 0.0
    %3602 = vmatprep.subr.mxu0 0.0
    %3603 = vmatpush1.msra.mxu0 0.0
    %3604 = vmatprep.subr.mxu0 0.0
    %3605 = vmatpush1.msra.mxu0 0.0
    %3606 = vmatprep.subr.mxu0 0.0
    %3607 = vmatpush1.msra.mxu0 0.0
    %3608 = vmatprep.mubr.f32.mxu0 0.0
    %3609 = vmatmul.mubr.f32.gmra.mrb[0].mxu0 %v3525
    %v3610 = vpop.f32.mrb[0].mxu0
    %v3611 = vadd.f32 0.0, %v3610
    %v3612 = vpop.f32.mrb[0].mxu0
    %3613 = vmatprep.mubr.f32.mxu0 0.0
    %3614 = vmatmul.mubr.f32.gmra.mrb[0].mxu0 %v3526
    %v3615 = vpop.f32.mrb[0].mxu0
    %v3616 = vadd.f32 0.0, %v3615
    %v3617 = vpop.f32.mrb[0].mxu0
    %3618 = vdwg.mxu0
    %v3619 = vadd.f32 %v3517, %v3611
    %v3620 = vadd.f32 %v3522, %v3616
    %v3621 = vld [vmem:[%s1967] sm:$0xff]
    %v3622 = vld [vmem:[%s1967 + $0x8] sm:$0xff]
    %s3623 = scalar_lea.vmem [#allocation10], 384
    %v3624 = vld [vmem:[%s3623] sm:$0xff]
    %v3625 = vld [vmem:[%s3623 + $0x8] sm:$0xff]
    %v3626 = vld [vmem:[%s3623 + $0x10] sm:$0xff]
    %v3627 = vld [vmem:[%s3623 + $0x18] sm:$0xff]
    %v3628 = vld [vmem:[%s3623 + $0x20] sm:$0xff]
    %v3629 = vld [vmem:[%s3623 + $0x28] sm:$0xff]
    %v3630 = vld [vmem:[%s3623 + $0x30] sm:$0xff]
    %v3631 = vld [vmem:[%s3623 + $0x38] sm:$0xff]
    %v3632 = vld [vmem:[%s3623 + $0x40] sm:$0xff]
    %v3633 = vld [vmem:[%s3623 + $0x48] sm:$0xff]
    %v3634 = vld [vmem:[%s3623 + $0x50] sm:$0xff]
    %v3635 = vld [vmem:[%s3623 + $0x58] sm:$0xff]
    %v3636 = vld [vmem:[%s3623 + $0x60] sm:$0xff]
    %v3637 = vld [vmem:[%s3623 + $0x68] sm:$0xff]
    %v3638 = vld [vmem:[%s3623 + $0x70] sm:$0xff]
    %v3639 = vld [vmem:[%s3623 + $0x78] sm:$0xff]
    %3640 = vmatprep.subr.mxu0 0.0
    %3641 = vmatpush1.msra.mxu0 %v3624
    %3642 = vmatprep.subr.mxu0 0.0
    %3643 = vmatpush1.msra.mxu0 %v3625
    %3644 = vmatprep.subr.mxu0 0.0
    %3645 = vmatpush1.msra.mxu0 %v3626
    %3646 = vmatprep.subr.mxu0 0.0
    %3647 = vmatpush1.msra.mxu0 %v3627
    %3648 = vmatprep.subr.mxu0 0.0
    %3649 = vmatpush1.msra.mxu0 %v3628
    %3650 = vmatprep.subr.mxu0 0.0
    %3651 = vmatpush1.msra.mxu0 %v3629
    %3652 = vmatprep.subr.mxu0 0.0
    %3653 = vmatpush1.msra.mxu0 %v3630
    %3654 = vmatprep.subr.mxu0 0.0
    %3655 = vmatpush1.msra.mxu0 %v3631
    %3656 = vmatprep.subr.mxu0 0.0
    %3657 = vmatpush1.msra.mxu0 %v3632
    %3658 = vmatprep.subr.mxu0 0.0
    %3659 = vmatpush1.msra.mxu0 %v3633
    %3660 = vmatprep.subr.mxu0 0.0
    %3661 = vmatpush1.msra.mxu0 %v3634
    %3662 = vmatprep.subr.mxu0 0.0
    %3663 = vmatpush1.msra.mxu0 %v3635
    %3664 = vmatprep.subr.mxu0 0.0
    %3665 = vmatpush1.msra.mxu0 %v3636
    %3666 = vmatprep.subr.mxu0 0.0
    %3667 = vmatpush1.msra.mxu0 %v3637
    %3668 = vmatprep.subr.mxu0 0.0
    %3669 = vmatpush1.msra.mxu0 %v3638
    %3670 = vmatprep.subr.mxu0 0.0
    %3671 = vmatpush1.msra.mxu0 %v3639
    %3672 = vmatprep.subr.mxu0 0.0
    %3673 = vmatpush1.msra.mxu0 0.0
    %3674 = vmatprep.subr.mxu0 0.0
    %3675 = vmatpush1.msra.mxu0 0.0
    %3676 = vmatprep.subr.mxu0 0.0
    %3677 = vmatpush1.msra.mxu0 0.0
    %3678 = vmatprep.subr.mxu0 0.0
    %3679 = vmatpush1.msra.mxu0 0.0
    %3680 = vmatprep.subr.mxu0 0.0
    %3681 = vmatpush1.msra.mxu0 0.0
    %3682 = vmatprep.subr.mxu0 0.0
    %3683 = vmatpush1.msra.mxu0 0.0
    %3684 = vmatprep.subr.mxu0 0.0
    %3685 = vmatpush1.msra.mxu0 0.0
    %3686 = vmatprep.subr.mxu0 0.0
    %3687 = vmatpush1.msra.mxu0 0.0
    %3688 = vmatprep.subr.mxu0 0.0
    %3689 = vmatpush1.msra.mxu0 0.0
    %3690 = vmatprep.subr.mxu0 0.0
    %3691 = vmatpush1.msra.mxu0 0.0
    %3692 = vmatprep.subr.mxu0 0.0
    %3693 = vmatpush1.msra.mxu0 0.0
    %3694 = vmatprep.subr.mxu0 0.0
    %3695 = vmatpush1.msra.mxu0 0.0
    %3696 = vmatprep.subr.mxu0 0.0
    %3697 = vmatpush1.msra.mxu0 0.0
    %3698 = vmatprep.subr.mxu0 0.0
    %3699 = vmatpush1.msra.mxu0 0.0
    %3700 = vmatprep.subr.mxu0 0.0
    %3701 = vmatpush1.msra.mxu0 0.0
    %3702 = vmatprep.subr.mxu0 0.0
    %3703 = vmatpush1.msra.mxu0 0.0
    %3704 = vmatprep.mubr.f32.mxu0 0.0
    %3705 = vmatmul.mubr.f32.gmra.mrb[0].mxu0 %v3621
    %v3706 = vpop.f32.mrb[0].mxu0
    %v3707 = vadd.f32 0.0, %v3706
    %v3708 = vpop.f32.mrb[0].mxu0
    %3709 = vmatprep.mubr.f32.mxu0 0.0
    %3710 = vmatmul.mubr.f32.gmra.mrb[0].mxu0 %v3622
    %v3711 = vpop.f32.mrb[0].mxu0
    %v3712 = vadd.f32 0.0, %v3711
    %v3713 = vpop.f32.mrb[0].mxu0
    %3714 = vdwg.mxu0
    %v3715 = vadd.f32 %v3619, %v3707
    %v3716 = vadd.f32 %v3620, %v3712
    %v3717 = vld [vmem:[%s2309] sm:$0xff]
    %v3718 = vld [vmem:[%s2309 + $0x8] sm:$0xff]
    %s3719 = scalar_lea.vmem [#allocation10], 512
    %v3720 = vld [vmem:[%s3719] sm:$0xff]
    %v3721 = vld [vmem:[%s3719 + $0x8] sm:$0xff]
    %v3722 = vld [vmem:[%s3719 + $0x10] sm:$0xff]
    %v3723 = vld [vmem:[%s3719 + $0x18] sm:$0xff]
    %v3724 = vld [vmem:[%s3719 + $0x20] sm:$0xff]
    %v3725 = vld [vmem:[%s3719 + $0x28] sm:$0xff]
    %v3726 = vld [vmem:[%s3719 + $0x30] sm:$0xff]
    %v3727 = vld [vmem:[%s3719 + $0x38] sm:$0xff]
    %v3728 = vld [vmem:[%s3719 + $0x40] sm:$0xff]
    %v3729 = vld [vmem:[%s3719 + $0x48] sm:$0xff]
    %v3730 = vld [vmem:[%s3719 + $0x50] sm:$0xff]
    %v3731 = vld [vmem:[%s3719 + $0x58] sm:$0xff]
    %v3732 = vld [vmem:[%s3719 + $0x60] sm:$0xff]
    %v3733 = vld [vmem:[%s3719 + $0x68] sm:$0xff]
    %v3734 = vld [vmem:[%s3719 + $0x70] sm:$0xff]
    %v3735 = vld [vmem:[%s3719 + $0x78] sm:$0xff]
    %3736 = vmatprep.subr.mxu0 0.0
    %3737 = vmatpush1.msra.mxu0 %v3720
    %3738 = vmatprep.subr.mxu0 0.0
    %3739 = vmatpush1.msra.mxu0 %v3721
    %3740 = vmatprep.subr.mxu0 0.0
    %3741 = vmatpush1.msra.mxu0 %v3722
    %3742 = vmatprep.subr.mxu0 0.0
    %3743 = vmatpush1.msra.mxu0 %v3723
    %3744 = vmatprep.subr.mxu0 0.0
    %3745 = vmatpush1.msra.mxu0 %v3724
    %3746 = vmatprep.subr.mxu0 0.0
    %3747 = vmatpush1.msra.mxu0 %v3725
    %3748 = vmatprep.subr.mxu0 0.0
    %3749 = vmatpush1.msra.mxu0 %v3726
    %3750 = vmatprep.subr.mxu0 0.0
    %3751 = vmatpush1.msra.mxu0 %v3727
    %3752 = vmatprep.subr.mxu0 0.0
    %3753 = vmatpush1.msra.mxu0 %v3728
    %3754 = vmatprep.subr.mxu0 0.0
    %3755 = vmatpush1.msra.mxu0 %v3729
    %3756 = vmatprep.subr.mxu0 0.0
    %3757 = vmatpush1.msra.mxu0 %v3730
    %3758 = vmatprep.subr.mxu0 0.0
    %3759 = vmatpush1.msra.mxu0 %v3731
    %3760 = vmatprep.subr.mxu0 0.0
    %3761 = vmatpush1.msra.mxu0 %v3732
    %3762 = vmatprep.subr.mxu0 0.0
    %3763 = vmatpush1.msra.mxu0 %v3733
    %3764 = vmatprep.subr.mxu0 0.0
    %3765 = vmatpush1.msra.mxu0 %v3734
    %3766 = vmatprep.subr.mxu0 0.0
    %3767 = vmatpush1.msra.mxu0 %v3735
    %3768 = vmatprep.subr.mxu0 0.0
    %3769 = vmatpush1.msra.mxu0 0.0
    %3770 = vmatprep.subr.mxu0 0.0
    %3771 = vmatpush1.msra.mxu0 0.0
    %3772 = vmatprep.subr.mxu0 0.0
    %3773 = vmatpush1.msra.mxu0 0.0
    %3774 = vmatprep.subr.mxu0 0.0
    %3775 = vmatpush1.msra.mxu0 0.0
    %3776 = vmatprep.subr.mxu0 0.0
    %3777 = vmatpush1.msra.mxu0 0.0
    %3778 = vmatprep.subr.mxu0 0.0
    %3779 = vmatpush1.msra.mxu0 0.0
    %3780 = vmatprep.subr.mxu0 0.0
    %3781 = vmatpush1.msra.mxu0 0.0
    %3782 = vmatprep.subr.mxu0 0.0
    %3783 = vmatpush1.msra.mxu0 0.0
    %3784 = vmatprep.subr.mxu0 0.0
    %3785 = vmatpush1.msra.mxu0 0.0
    %3786 = vmatprep.subr.mxu0 0.0
    %3787 = vmatpush1.msra.mxu0 0.0
    %3788 = vmatprep.subr.mxu0 0.0
    %3789 = vmatpush1.msra.mxu0 0.0
    %3790 = vmatprep.subr.mxu0 0.0
    %3791 = vmatpush1.msra.mxu0 0.0
    %3792 = vmatprep.subr.mxu0 0.0
    %3793 = vmatpush1.msra.mxu0 0.0
    %3794 = vmatprep.subr.mxu0 0.0
    %3795 = vmatpush1.msra.mxu0 0.0
    %3796 = vmatprep.subr.mxu0 0.0
    %3797 = vmatpush1.msra.mxu0 0.0
    %3798 = vmatprep.subr.mxu0 0.0
    %3799 = vmatpush1.msra.mxu0 0.0
    %3800 = vmatprep.mubr.f32.mxu0 0.0
    %3801 = vmatmul.mubr.f32.gmra.mrb[0].mxu0 %v3717
    %v3802 = vpop.f32.mrb[0].mxu0
    %v3803 = vadd.f32 0.0, %v3802
    %v3804 = vpop.f32.mrb[0].mxu0
    %3805 = vmatprep.mubr.f32.mxu0 0.0
    %3806 = vmatmul.mubr.f32.gmra.mrb[0].mxu0 %v3718
    %v3807 = vpop.f32.mrb[0].mxu0
    %v3808 = vadd.f32 0.0, %v3807
    %v3809 = vpop.f32.mrb[0].mxu0
    %3810 = vdwg.mxu0
    %v3811 = vadd.f32 %v3715, %v3803
    %v3812 = vadd.f32 %v3716, %v3808
    %v3813 = vld [vmem:[%s2651] sm:$0xff]
    %v3814 = vld [vmem:[%s2651 + $0x8] sm:$0xff]
    %s3815 = scalar_lea.vmem [#allocation10], 640
    %v3816 = vld [vmem:[%s3815] sm:$0xff]
    %v3817 = vld [vmem:[%s3815 + $0x8] sm:$0xff]
    %v3818 = vld [vmem:[%s3815 + $0x10] sm:$0xff]
    %v3819 = vld [vmem:[%s3815 + $0x18] sm:$0xff]
    %v3820 = vld [vmem:[%s3815 + $0x20] sm:$0xff]
    %v3821 = vld [vmem:[%s3815 + $0x28] sm:$0xff]
    %v3822 = vld [vmem:[%s3815 + $0x30] sm:$0xff]
    %v3823 = vld [vmem:[%s3815 + $0x38] sm:$0xff]
    %v3824 = vld [vmem:[%s3815 + $0x40] sm:$0xff]
    %v3825 = vld [vmem:[%s3815 + $0x48] sm:$0xff]
    %v3826 = vld [vmem:[%s3815 + $0x50] sm:$0xff]
    %v3827 = vld [vmem:[%s3815 + $0x58] sm:$0xff]
    %v3828 = vld [vmem:[%s3815 + $0x60] sm:$0xff]
    %v3829 = vld [vmem:[%s3815 + $0x68] sm:$0xff]
    %v3830 = vld [vmem:[%s3815 + $0x70] sm:$0xff]
    %v3831 = vld [vmem:[%s3815 + $0x78] sm:$0xff]
    %3832 = vmatprep.subr.mxu0 0.0
    %3833 = vmatpush1.msra.mxu0 %v3816
    %3834 = vmatprep.subr.mxu0 0.0
    %3835 = vmatpush1.msra.mxu0 %v3817
    %3836 = vmatprep.subr.mxu0 0.0
    %3837 = vmatpush1.msra.mxu0 %v3818
    %3838 = vmatprep.subr.mxu0 0.0
    %3839 = vmatpush1.msra.mxu0 %v3819
    %3840 = vmatprep.subr.mxu0 0.0
    %3841 = vmatpush1.msra.mxu0 %v3820
    %3842 = vmatprep.subr.mxu0 0.0
    %3843 = vmatpush1.msra.mxu0 %v3821
    %3844 = vmatprep.subr.mxu0 0.0
    %3845 = vmatpush1.msra.mxu0 %v3822
    %3846 = vmatprep.subr.mxu0 0.0
    %3847 = vmatpush1.msra.mxu0 %v3823
    %3848 = vmatprep.subr.mxu0 0.0
    %3849 = vmatpush1.msra.mxu0 %v3824
    %3850 = vmatprep.subr.mxu0 0.0
    %3851 = vmatpush1.msra.mxu0 %v3825
    %3852 = vmatprep.subr.mxu0 0.0
    %3853 = vmatpush1.msra.mxu0 %v3826
    %3854 = vmatprep.subr.mxu0 0.0
    %3855 = vmatpush1.msra.mxu0 %v3827
    %3856 = vmatprep.subr.mxu0 0.0
    %3857 = vmatpush1.msra.mxu0 %v3828
    %3858 = vmatprep.subr.mxu0 0.0
    %3859 = vmatpush1.msra.mxu0 %v3829
    %3860 = vmatprep.subr.mxu0 0.0
    %3861 = vmatpush1.msra.mxu0 %v3830
    %3862 = vmatprep.subr.mxu0 0.0
    %3863 = vmatpush1.msra.mxu0 %v3831
    %3864 = vmatprep.subr.mxu0 0.0
    %3865 = vmatpush1.msra.mxu0 0.0
    %3866 = vmatprep.subr.mxu0 0.0
    %3867 = vmatpush1.msra.mxu0 0.0
    %3868 = vmatprep.subr.mxu0 0.0
    %3869 = vmatpush1.msra.mxu0 0.0
    %3870 = vmatprep.subr.mxu0 0.0
    %3871 = vmatpush1.msra.mxu0 0.0
    %3872 = vmatprep.subr.mxu0 0.0
    %3873 = vmatpush1.msra.mxu0 0.0
    %3874 = vmatprep.subr.mxu0 0.0
    %3875 = vmatpush1.msra.mxu0 0.0
    %3876 = vmatprep.subr.mxu0 0.0
    %3877 = vmatpush1.msra.mxu0 0.0
    %3878 = vmatprep.subr.mxu0 0.0
    %3879 = vmatpush1.msra.mxu0 0.0
    %3880 = vmatprep.subr.mxu0 0.0
    %3881 = vmatpush1.msra.mxu0 0.0
    %3882 = vmatprep.subr.mxu0 0.0
    %3883 = vmatpush1.msra.mxu0 0.0
    %3884 = vmatprep.subr.mxu0 0.0
    %3885 = vmatpush1.msra.mxu0 0.0
    %3886 = vmatprep.subr.mxu0 0.0
    %3887 = vmatpush1.msra.mxu0 0.0
    %3888 = vmatprep.subr.mxu0 0.0
    %3889 = vmatpush1.msra.mxu0 0.0
    %3890 = vmatprep.subr.mxu0 0.0
    %3891 = vmatpush1.msra.mxu0 0.0
    %3892 = vmatprep.subr.mxu0 0.0
    %3893 = vmatpush1.msra.mxu0 0.0
    %3894 = vmatprep.subr.mxu0 0.0
    %3895 = vmatpush1.msra.mxu0 0.0
    %3896 = vmatprep.mubr.f32.mxu0 0.0
    %3897 = vmatmul.mubr.f32.gmra.mrb[0].mxu0 %v3813
    %v3898 = vpop.f32.mrb[0].mxu0
    %v3899 = vadd.f32 0.0, %v3898
    %v3900 = vpop.f32.mrb[0].mxu0
    %3901 = vmatprep.mubr.f32.mxu0 0.0
    %3902 = vmatmul.mubr.f32.gmra.mrb[0].mxu0 %v3814
    %v3903 = vpop.f32.mrb[0].mxu0
    %v3904 = vadd.f32 0.0, %v3903
    %v3905 = vpop.f32.mrb[0].mxu0
    %3906 = vdwg.mxu0
    %v3907 = vadd.f32 %v3811, %v3899
    %v3908 = vadd.f32 %v3812, %v3904
    %v3909 = vld [vmem:[%s2993] sm:$0xff]
    %v3910 = vld [vmem:[%s2993 + $0x8] sm:$0xff]
    %s3911 = scalar_lea.vmem [#allocation10], 768
    %v3912 = vld [vmem:[%s3911] sm:$0xff]
    %v3913 = vld [vmem:[%s3911 + $0x8] sm:$0xff]
    %v3914 = vld [vmem:[%s3911 + $0x10] sm:$0xff]
    %v3915 = vld [vmem:[%s3911 + $0x18] sm:$0xff]
    %v3916 = vld [vmem:[%s3911 + $0x20] sm:$0xff]
    %v3917 = vld [vmem:[%s3911 + $0x28] sm:$0xff]
    %v3918 = vld [vmem:[%s3911 + $0x30] sm:$0xff]
    %v3919 = vld [vmem:[%s3911 + $0x38] sm:$0xff]
    %v3920 = vld [vmem:[%s3911 + $0x40] sm:$0xff]
    %v3921 = vld [vmem:[%s3911 + $0x48] sm:$0xff]
    %v3922 = vld [vmem:[%s3911 + $0x50] sm:$0xff]
    %v3923 = vld [vmem:[%s3911 + $0x58] sm:$0xff]
    %v3924 = vld [vmem:[%s3911 + $0x60] sm:$0xff]
    %v3925 = vld [vmem:[%s3911 + $0x68] sm:$0xff]
    %v3926 = vld [vmem:[%s3911 + $0x70] sm:$0xff]
    %v3927 = vld [vmem:[%s3911 + $0x78] sm:$0xff]
    %3928 = vmatprep.subr.mxu0 0.0
    %3929 = vmatpush1.msra.mxu0 %v3912
    %3930 = vmatprep.subr.mxu0 0.0
    %3931 = vmatpush1.msra.mxu0 %v3913
    %3932 = vmatprep.subr.mxu0 0.0
    %3933 = vmatpush1.msra.mxu0 %v3914
    %3934 = vmatprep.subr.mxu0 0.0
    %3935 = vmatpush1.msra.mxu0 %v3915
    %3936 = vmatprep.subr.mxu0 0.0
    %3937 = vmatpush1.msra.mxu0 %v3916
    %3938 = vmatprep.subr.mxu0 0.0
    %3939 = vmatpush1.msra.mxu0 %v3917
    %3940 = vmatprep.subr.mxu0 0.0
    %3941 = vmatpush1.msra.mxu0 %v3918
    %3942 = vmatprep.subr.mxu0 0.0
    %3943 = vmatpush1.msra.mxu0 %v3919
    %3944 = vmatprep.subr.mxu0 0.0
    %3945 = vmatpush1.msra.mxu0 %v3920
    %3946 = vmatprep.subr.mxu0 0.0
    %3947 = vmatpush1.msra.mxu0 %v3921
    %3948 = vmatprep.subr.mxu0 0.0
    %3949 = vmatpush1.msra.mxu0 %v3922
    %3950 = vmatprep.subr.mxu0 0.0
    %3951 = vmatpush1.msra.mxu0 %v3923
    %3952 = vmatprep.subr.mxu0 0.0
    %3953 = vmatpush1.msra.mxu0 %v3924
    %3954 = vmatprep.subr.mxu0 0.0
    %3955 = vmatpush1.msra.mxu0 %v3925
    %3956 = vmatprep.subr.mxu0 0.0
    %3957 = vmatpush1.msra.mxu0 %v3926
    %3958 = vmatprep.subr.mxu0 0.0
    %3959 = vmatpush1.msra.mxu0 %v3927
    %3960 = vmatprep.subr.mxu0 0.0
    %3961 = vmatpush1.msra.mxu0 0.0
    %3962 = vmatprep.subr.mxu0 0.0
    %3963 = vmatpush1.msra.mxu0 0.0
    %3964 = vmatprep.subr.mxu0 0.0
    %3965 = vmatpush1.msra.mxu0 0.0
    %3966 = vmatprep.subr.mxu0 0.0
    %3967 = vmatpush1.msra.mxu0 0.0
    %3968 = vmatprep.subr.mxu0 0.0
    %3969 = vmatpush1.msra.mxu0 0.0
    %3970 = vmatprep.subr.mxu0 0.0
    %3971 = vmatpush1.msra.mxu0 0.0
    %3972 = vmatprep.subr.mxu0 0.0
    %3973 = vmatpush1.msra.mxu0 0.0
    %3974 = vmatprep.subr.mxu0 0.0
    %3975 = vmatpush1.msra.mxu0 0.0
    %3976 = vmatprep.subr.mxu0 0.0
    %3977 = vmatpush1.msra.mxu0 0.0
    %3978 = vmatprep.subr.mxu0 0.0
    %3979 = vmatpush1.msra.mxu0 0.0
    %3980 = vmatprep.subr.mxu0 0.0
    %3981 = vmatpush1.msra.mxu0 0.0
    %3982 = vmatprep.subr.mxu0 0.0
    %3983 = vmatpush1.msra.mxu0 0.0
    %3984 = vmatprep.subr.mxu0 0.0
    %3985 = vmatpush1.msra.mxu0 0.0
    %3986 = vmatprep.subr.mxu0 0.0
    %3987 = vmatpush1.msra.mxu0 0.0
    %3988 = vmatprep.subr.mxu0 0.0
    %3989 = vmatpush1.msra.mxu0 0.0
    %3990 = vmatprep.subr.mxu0 0.0
    %3991 = vmatpush1.msra.mxu0 0.0
    %3992 = vmatprep.mubr.f32.mxu0 0.0
    %3993 = vmatmul.mubr.f32.gmra.mrb[0].mxu0 %v3909
    %v3994 = vpop.f32.mrb[0].mxu0
    %v3995 = vadd.f32 0.0, %v3994
    %v3996 = vpop.f32.mrb[0].mxu0
    %3997 = vmatprep.mubr.f32.mxu0 0.0
    %3998 = vmatmul.mubr.f32.gmra.mrb[0].mxu0 %v3910
    %v3999 = vpop.f32.mrb[0].mxu0
    %v4000 = vadd.f32 0.0, %v3999
    %v4001 = vpop.f32.mrb[0].mxu0
    %4002 = vdwg.mxu0
    %v4003 = vadd.f32 %v3907, %v3995
    %v4004 = vadd.f32 %v3908, %v4000
    %v4005 = vld [vmem:[%s3335] sm:$0xff]
    %v4006 = vld [vmem:[%s3335 + $0x8] sm:$0xff]
    %s4007 = scalar_lea.vmem [#allocation10], 896
    %v4008 = vld [vmem:[%s4007] sm:$0xff]
    %v4009 = vld [vmem:[%s4007 + $0x8] sm:$0xff]
    %v4010 = vld [vmem:[%s4007 + $0x10] sm:$0xff]
    %v4011 = vld [vmem:[%s4007 + $0x18] sm:$0xff]
    %v4012 = vld [vmem:[%s4007 + $0x20] sm:$0xff]
    %v4013 = vld [vmem:[%s4007 + $0x28] sm:$0xff]
    %v4014 = vld [vmem:[%s4007 + $0x30] sm:$0xff]
    %v4015 = vld [vmem:[%s4007 + $0x38] sm:$0xff]
    %v4016 = vld [vmem:[%s4007 + $0x40] sm:$0xff]
    %v4017 = vld [vmem:[%s4007 + $0x48] sm:$0xff]
    %v4018 = vld [vmem:[%s4007 + $0x50] sm:$0xff]
    %v4019 = vld [vmem:[%s4007 + $0x58] sm:$0xff]
    %v4020 = vld [vmem:[%s4007 + $0x60] sm:$0xff]
    %v4021 = vld [vmem:[%s4007 + $0x68] sm:$0xff]
    %v4022 = vld [vmem:[%s4007 + $0x70] sm:$0xff]
    %v4023 = vld [vmem:[%s4007 + $0x78] sm:$0xff]
    %4024 = vmatprep.subr.mxu0 0.0
    %4025 = vmatpush1.msra.mxu0 %v4008
    %4026 = vmatprep.subr.mxu0 0.0
    %4027 = vmatpush1.msra.mxu0 %v4009
    %4028 = vmatprep.subr.mxu0 0.0
    %4029 = vmatpush1.msra.mxu0 %v4010
    %4030 = vmatprep.subr.mxu0 0.0
    %4031 = vmatpush1.msra.mxu0 %v4011
    %4032 = vmatprep.subr.mxu0 0.0
    %4033 = vmatpush1.msra.mxu0 %v4012
    %4034 = vmatprep.subr.mxu0 0.0
    %4035 = vmatpush1.msra.mxu0 %v4013
    %4036 = vmatprep.subr.mxu0 0.0
    %4037 = vmatpush1.msra.mxu0 %v4014
    %4038 = vmatprep.subr.mxu0 0.0
    %4039 = vmatpush1.msra.mxu0 %v4015
    %4040 = vmatprep.subr.mxu0 0.0
    %4041 = vmatpush1.msra.mxu0 %v4016
    %4042 = vmatprep.subr.mxu0 0.0
    %4043 = vmatpush1.msra.mxu0 %v4017
    %4044 = vmatprep.subr.mxu0 0.0
    %4045 = vmatpush1.msra.mxu0 %v4018
    %4046 = vmatprep.subr.mxu0 0.0
    %4047 = vmatpush1.msra.mxu0 %v4019
    %4048 = vmatprep.subr.mxu0 0.0
    %4049 = vmatpush1.msra.mxu0 %v4020
    %4050 = vmatprep.subr.mxu0 0.0
    %4051 = vmatpush1.msra.mxu0 %v4021
    %4052 = vmatprep.subr.mxu0 0.0
    %4053 = vmatpush1.msra.mxu0 %v4022
    %4054 = vmatprep.subr.mxu0 0.0
    %4055 = vmatpush1.msra.mxu0 %v4023
    %4056 = vmatprep.subr.mxu0 0.0
    %4057 = vmatpush1.msra.mxu0 0.0
    %4058 = vmatprep.subr.mxu0 0.0
    %4059 = vmatpush1.msra.mxu0 0.0
    %4060 = vmatprep.subr.mxu0 0.0
    %4061 = vmatpush1.msra.mxu0 0.0
    %4062 = vmatprep.subr.mxu0 0.0
    %4063 = vmatpush1.msra.mxu0 0.0
    %4064 = vmatprep.subr.mxu0 0.0
    %4065 = vmatpush1.msra.mxu0 0.0
    %4066 = vmatprep.subr.mxu0 0.0
    %4067 = vmatpush1.msra.mxu0 0.0
    %4068 = vmatprep.subr.mxu0 0.0
    %4069 = vmatpush1.msra.mxu0 0.0
    %4070 = vmatprep.subr.mxu0 0.0
    %4071 = vmatpush1.msra.mxu0 0.0
    %4072 = vmatprep.subr.mxu0 0.0
    %4073 = vmatpush1.msra.mxu0 0.0
    %4074 = vmatprep.subr.mxu0 0.0
    %4075 = vmatpush1.msra.mxu0 0.0
    %4076 = vmatprep.subr.mxu0 0.0
    %4077 = vmatpush1.msra.mxu0 0.0
    %4078 = vmatprep.subr.mxu0 0.0
    %4079 = vmatpush1.msra.mxu0 0.0
    %4080 = vmatprep.subr.mxu0 0.0
    %4081 = vmatpush1.msra.mxu0 0.0
    %4082 = vmatprep.subr.mxu0 0.0
    %4083 = vmatpush1.msra.mxu0 0.0
    %4084 = vmatprep.subr.mxu0 0.0
    %4085 = vmatpush1.msra.mxu0 0.0
    %4086 = vmatprep.subr.mxu0 0.0
    %4087 = vmatpush1.msra.mxu0 0.0
    %4088 = vmatprep.mubr.f32.mxu0 0.0
    %4089 = vmatmul.mubr.f32.gmra.mrb[0].mxu0 %v4005
    %v4090 = vpop.f32.mrb[0].mxu0
    %v4091 = vadd.f32 0.0, %v4090
    %v4092 = vpop.f32.mrb[0].mxu0
    %4093 = vmatprep.mubr.f32.mxu0 0.0
    %4094 = vmatmul.mubr.f32.gmra.mrb[0].mxu0 %v4006
    %v4095 = vpop.f32.mrb[0].mxu0
    %v4096 = vadd.f32 0.0, %v4095
    %v4097 = vpop.f32.mrb[0].mxu0
    %4098 = vdwg.mxu0
    %v4099 = vadd.f32 %v4003, %v4091
    %v4100 = vadd.f32 %v4004, %v4096
    %v4101 = vld [vmem:[%s4] sm:$0x1]
    %v4103 = vlaneseq
    %v4104 = vshrl.u32 %v4103, 7
    %v4105 = vsub.s32 0, %v4104
    %v4106 = vrot.slane %v4101, %v4105
    %v4108 = vadd.f32 %v4099, %v4106
    %v4109 = vadd.f32 %v4100, %v4106
    %v4110 = vmax.f32 %v4108, 0.0
    %v4111 = vmax.f32 %v4109, 0.0
    %v4112 = vld [vmem:[#allocation12] sm:$0xff]
    %v4113 = vld [vmem:[#allocation12 + $0x8] sm:$0xff]
    %v4114 = vld [vmem:[#allocation12 + $0x10] sm:$0xff]
    %v4115 = vld [vmem:[#allocation12 + $0x18] sm:$0xff]
    %v4116 = vld [vmem:[#allocation12 + $0x20] sm:$0xff]
    %v4117 = vld [vmem:[#allocation12 + $0x28] sm:$0xff]
    %v4118 = vld [vmem:[#allocation12 + $0x30] sm:$0xff]
    %v4119 = vld [vmem:[#allocation12 + $0x38] sm:$0xff]
    %v4120 = vld [vmem:[#allocation12 + $0x40] sm:$0xff]
    %v4121 = vld [vmem:[#allocation12 + $0x48] sm:$0xff]
    %v4122 = vld [vmem:[#allocation12 + $0x50] sm:$0xff]
    %v4123 = vld [vmem:[#allocation12 + $0x58] sm:$0xff]
    %v4124 = vld [vmem:[#allocation12 + $0x60] sm:$0xff]
    %v4125 = vld [vmem:[#allocation12 + $0x68] sm:$0xff]
    %v4126 = vld [vmem:[#allocation12 + $0x70] sm:$0xff]
    %v4127 = vld [vmem:[#allocation12 + $0x78] sm:$0xff]
    %v4128 = vld [vmem:[%s6] sm:$0x1]
    %v4130 = vlaneseq
    %v4131 = vshrl.u32 %v4130, 7
    %v4132 = vsub.s32 0, %v4131
    %v4133 = vrot.slane %v4128, %v4132
    %4135 = vmatprep.subr.mxu0 0.0
    %4136 = vmatpush1.msra.mxu0 %v4112
    %4137 = vmatprep.subr.mxu0 0.0
    %4138 = vmatpush1.msra.mxu0 %v4113
    %4139 = vmatprep.subr.mxu0 0.0
    %4140 = vmatpush1.msra.mxu0 %v4114
    %4141 = vmatprep.subr.mxu0 0.0
    %4142 = vmatpush1.msra.mxu0 %v4115
    %4143 = vmatprep.subr.mxu0 0.0
    %4144 = vmatpush1.msra.mxu0 %v4116
    %4145 = vmatprep.subr.mxu0 0.0
    %4146 = vmatpush1.msra.mxu0 %v4117
    %4147 = vmatprep.subr.mxu0 0.0
    %4148 = vmatpush1.msra.mxu0 %v4118
    %4149 = vmatprep.subr.mxu0 0.0
    %4150 = vmatpush1.msra.mxu0 %v4119
    %4151 = vmatprep.subr.mxu0 0.0
    %4152 = vmatpush1.msra.mxu0 %v4120
    %4153 = vmatprep.subr.mxu0 0.0
    %4154 = vmatpush1.msra.mxu0 %v4121
    %4155 = vmatprep.subr.mxu0 0.0
    %4156 = vmatpush1.msra.mxu0 %v4122
    %4157 = vmatprep.subr.mxu0 0.0
    %4158 = vmatpush1.msra.mxu0 %v4123
    %4159 = vmatprep.subr.mxu0 0.0
    %4160 = vmatpush1.msra.mxu0 %v4124
    %4161 = vmatprep.subr.mxu0 0.0
    %4162 = vmatpush1.msra.mxu0 %v4125
    %4163 = vmatprep.subr.mxu0 0.0
    %4164 = vmatpush1.msra.mxu0 %v4126
    %4165 = vmatprep.subr.mxu0 0.0
    %4166 = vmatpush1.msra.mxu0 %v4127
    %4167 = vmatprep.subr.mxu0 0.0
    %4168 = vmatpush1.msra.mxu0 0.0
    %4169 = vmatprep.subr.mxu0 0.0
    %4170 = vmatpush1.msra.mxu0 0.0
    %4171 = vmatprep.subr.mxu0 0.0
    %4172 = vmatpush1.msra.mxu0 0.0
    %4173 = vmatprep.subr.mxu0 0.0
    %4174 = vmatpush1.msra.mxu0 0.0
    %4175 = vmatprep.subr.mxu0 0.0
    %4176 = vmatpush1.msra.mxu0 0.0
    %4177 = vmatprep.subr.mxu0 0.0
    %4178 = vmatpush1.msra.mxu0 0.0
    %4179 = vmatprep.subr.mxu0 0.0
    %4180 = vmatpush1.msra.mxu0 0.0
    %4181 = vmatprep.subr.mxu0 0.0
    %4182 = vmatpush1.msra.mxu0 0.0
    %4183 = vmatprep.subr.mxu0 0.0
    %4184 = vmatpush1.msra.mxu0 0.0
    %4185 = vmatprep.subr.mxu0 0.0
    %4186 = vmatpush1.msra.mxu0 0.0
    %4187 = vmatprep.subr.mxu0 0.0
    %4188 = vmatpush1.msra.mxu0 0.0
    %4189 = vmatprep.subr.mxu0 0.0
    %4190 = vmatpush1.msra.mxu0 0.0
    %4191 = vmatprep.subr.mxu0 0.0
    %4192 = vmatpush1.msra.mxu0 0.0
    %4193 = vmatprep.subr.mxu0 0.0
    %4194 = vmatpush1.msra.mxu0 0.0
    %4195 = vmatprep.subr.mxu0 0.0
    %4196 = vmatpush1.msra.mxu0 0.0
    %4197 = vmatprep.subr.mxu0 0.0
    %4198 = vmatpush1.msra.mxu0 0.0
    %4199 = vmatprep.mubr.f32.mxu0 0.0
    %4200 = vmatmul.mubr.f32.gmra.mrb[0].mxu0 %v4110
    %v4201 = vpop.f32.mrb[0].mxu0
    %v4202 = vadd.f32 %v4133, %v4201
    %v4203 = vpop.f32.mrb[0].mxu0
    %4204 = vmatprep.mubr.f32.mxu0 0.0
    %4205 = vmatmul.mubr.f32.gmra.mrb[0].mxu0 %v4111
    %v4206 = vpop.f32.mrb[0].mxu0
    %v4207 = vadd.f32 %v4133, %v4206
    %v4208 = vpop.f32.mrb[0].mxu0
    %4209 = vdwg.mxu0
    %4210 = vst [vmem:[#allocation13] sm:$0xff] %v4202
    %4211 = vst [vmem:[#allocation13 + $0x8] sm:$0xff] %v4207
    // Predicated region
    $region50: #{tpu_custom_call.1} parent=1 // pred_check
      _
    $region51: #{tpu_custom_call.1} parent=1 // pred_check_branch
      %4213 = sbr.rel (0) target = $region53
    $region52: #{tpu_custom_call.1} parent=1 // pred_region
      %s4215 = ssub.s32 256, 256
      %4216 = vsyncadd [#allocation6], %s4215
      %s4217 = sshll.u32 [#allocation13], 4
      %s4218 = int_to_ptr.vmem [resolvable:$true] %s4217
      %4223 = dma.vmem_to_hbm [thread:$0]  %s4218, 256, %s7, [#allocation6], 128, 128, 8
    $region53: #{tpu_custom_call.1} parent=1 // pred_fallthru
      _
    // Predicated region
    $region54: #{tpu_custom_call.1} parent=1 // pred_check
      _
    $region55: #{tpu_custom_call.1} parent=1 // pred_check_branch
      %4225 = sbr.rel (0) target = $region57
    $region56: #{tpu_custom_call.1} parent=1 // pred_region
      %4226 = dma.done [#allocation6], 256
    $region57: #{tpu_custom_call.1} parent=1 // pred_fallthru
      _
    %4227 = vsyncpa [#allocation5], 1
    %4228 = vsyncpa [#allocation8], 1
    %4229 = vsyncpa [#allocation11], 1
    %4230 = vsyncpa [#allocation6], 1

</llo_original>
